<compile_context>
chip_gen: v7x
topology: tpu7x:2x2x1
jax: 0.10.0
libtpu: 0.0.40
codegen_flags: <defaults>
</compile_context>

<pallas_src>
import functools

import jax
import jax.numpy as jnp
from jax.experimental import pallas as pl
from jax.experimental.pallas import tpu as pltpu


def mlp_kernel(x_ref, w1_ref, b1_ref, w2_ref, b2_ref, w3_ref, b3_ref,
               wo_ref, bo_ref, out_ref, *, num_classes):
    # bf16 MXU operands, f32 accumulate / elementwise. x cast happens here
    # (VPU op hidden under the MXU) rather than in the wrapper.
    x = x_ref[...].astype(jnp.bfloat16)
    h = jnp.dot(x, w1_ref[...], preferred_element_type=jnp.float32)
    h = jnp.maximum(h + b1_ref[...], 0.0).astype(jnp.bfloat16)
    h = jnp.dot(h, w2_ref[...], preferred_element_type=jnp.float32)
    h = jnp.maximum(h + b2_ref[...], 0.0).astype(jnp.bfloat16)
    h = jnp.dot(h, w3_ref[...], preferred_element_type=jnp.float32)
    h = jnp.maximum(h + b3_ref[...], 0.0).astype(jnp.bfloat16)
    logits = jnp.dot(h, wo_ref[...], preferred_element_type=jnp.float32)
    logits = logits + bo_ref[...]

    # Softmax over the lane-dense padded class dim. Padded columns are masked
    # explicitly and the normalization uses an exact divide so each row sums
    # to 1 to f32 precision (approx reciprocal previously broke this).
    col = jax.lax.broadcasted_iota(jnp.int32, logits.shape, 1)
    valid = col < num_classes
    logits = jnp.where(valid, logits, jnp.float32(-1e30))
    m = jnp.max(logits, axis=1, keepdims=True)
    e = jnp.where(valid, jnp.exp(logits - m), 0.0)
    denom = jnp.sum(e, axis=1, keepdims=True)
    out_ref[...] = (e / denom).astype(out_ref.dtype)


def prepare_params(params, *, num_classes=None):
    """One-time parameter prep, hoisted out of the forward path (perf review):
      * hidden/output weights -> bf16 (MXU operands),
      * biases -> f32 [1, out],
      * output layer padded to a lane-dense multiple of 128 classes with zero
        weight columns / zero bias (the kernel masks the padded columns).
    Weight layout is [in, out] (transposed vs. PyTorch nn.Linear.weight)."""
    H, C = params["wo"].shape
    if num_classes is None:
        num_classes = C
    C_pad = max(128, pl.cdiv(num_classes, 128) * 128)
    wo = jnp.zeros((H, C_pad), jnp.float32).at[:, :num_classes].set(params["wo"])
    bo = jnp.zeros((1, C_pad), jnp.float32).at[:, :num_classes].set(params["bo"])
    return {
        "w1": params["w1"].astype(jnp.bfloat16),
        "w2": params["w2"].astype(jnp.bfloat16),
        "w3": params["w3"].astype(jnp.bfloat16),
        "wo": wo.astype(jnp.bfloat16),
        "b1": params["b1"].astype(jnp.float32),
        "b2": params["b2"].astype(jnp.float32),
        "b3": params["b3"].astype(jnp.float32),
        "bo": bo,
    }


def _choose_batch_tile(batch, tm_request):
    """Largest sublane-aligned batch tile <= request; keep >= 2 grid steps when
    possible so v7x megacore ("parallel" batch axis) has work on both TCs."""
    b_aligned = max(8, pl.cdiv(batch, 8) * 8)
    tm = max(8, (min(tm_request, b_aligned) // 8) * 8)
    if b_aligned // tm < 2 and b_aligned >= 16:
        tm = max(8, pl.cdiv(b_aligned // 2, 8) * 8)
    b_pad = pl.cdiv(batch, tm) * tm
    return tm, b_pad


@functools.partial(jax.jit,
                   static_argnames=("num_classes", "tm", "single_buffer_weights"))
def number_classifier_forward(x, prepared, *, num_classes, tm=512,
                              single_buffer_weights=True):
    """x: [B, D_in]. prepared: output of prepare_params().
    Returns [B, num_classes] f32 softmax probabilities."""
    x = x.astype(jnp.float32)                     # matches `feature.float()`
    B, D = x.shape
    H = prepared["w1"].shape[1]
    C_pad = prepared["wo"].shape[1]

    tm_eff, B_pad = _choose_batch_tile(B, tm)
    if B_pad != B:
        x = jnp.pad(x, ((0, B_pad - B), (0, 0)))
    grid = (B_pad // tm_eff,)

    if single_buffer_weights:
        # Constant index_map -> block never changes; Buffered(1) avoids the
        # default 2x VMEM double-buffer for these resident constants.
        resident = lambda shape: pl.BlockSpec(shape, lambda i: (0, 0),
                                              pipeline_mode=pl.Buffered(1))
    else:
        resident = lambda shape: pl.BlockSpec(shape, lambda i: (0, 0))

    w1, w2, w3, wo = (prepared[k] for k in ("w1", "w2", "w3", "wo"))
    b1, b2, b3, bo = (prepared[k] for k in ("b1", "b2", "b3", "bo"))

    weight_bytes = sum(int(a.size) * a.dtype.itemsize
                       for a in (w1, w2, w3, wo, b1, b2, b3, bo))
    est_vmem = (weight_bytes * (1 if single_buffer_weights else 2)
                + 2 * tm_eff * D * 4          # double-buffered x tile (f32)
                + 2 * tm_eff * C_pad * 4      # double-buffered out tile (f32)
                + 4 * tm_eff * H * 4)         # f32 intermediates headroom
    vmem_limit = int(min(max(2 * est_vmem, 32 * 1024 * 1024), 64 * 1024 * 1024))

    flops = 2 * B_pad * (D * H + 2 * H * H + H * C_pad)
    bytes_accessed = B_pad * D * 4 + weight_bytes + B_pad * C_pad * 4
    cost = pl.CostEstimate(flops=flops, transcendentals=B_pad * C_pad,
                           bytes_accessed=bytes_accessed)

    out = pl.pallas_call(
        functools.partial(mlp_kernel, num_classes=num_classes),
        out_shape=jax.ShapeDtypeStruct((B_pad, C_pad), jnp.float32),
        grid_spec=pltpu.PrefetchScalarGridSpec(
            num_scalar_prefetch=0,
            grid=grid,
            in_specs=[
                pl.BlockSpec((tm_eff, D), lambda i: (i, 0)),   # x tile, pipelined
                resident((D, H)), resident((1, H)),            # w1, b1
                resident((H, H)), resident((1, H)),            # w2, b2
                resident((H, H)), resident((1, H)),            # w3, b3
                resident((H, C_pad)), resident((1, C_pad)),    # wo, bo
            ],
            out_specs=pl.BlockSpec((tm_eff, C_pad), lambda i: (i, 0)),
        ),
        compiler_params=pltpu.CompilerParams(
            dimension_semantics=("parallel",),                 # megacore on v7x
            vmem_limit_bytes=vmem_limit),
        cost_estimate=cost,
    )(x, w1, b1, w2, b2, w3, b3, wo, bo)

    # TODO(synk): if a downstream consumer can read the padded (B_pad, C_pad)
    # layout directly, drop this slice (saves one HBM pass over the output).
    return out[:B, :num_classes]


def reference_forward(x, params):
    """Pure-JAX reference with the same bf16 operand casts (for validation)."""
    h = x.astype(jnp.float32)
    for k in ("1", "2", "3"):
        h = jnp.dot(h.astype(jnp.bfloat16), params["w" + k].astype(jnp.bfloat16),
                    preferred_element_type=jnp.float32) + params["b" + k]
        h = jnp.maximum(h, 0.0)
    logits = jnp.dot(h.astype(jnp.bfloat16), params["wo"].astype(jnp.bfloat16),
                     preferred_element_type=jnp.float32) + params["bo"]
    return jax.nn.softmax(logits, axis=1)


def init_params(key, d_in, d_hidden, num_classes):
    """Deterministic init mimicking PyTorch Linear default (uniform +-1/sqrt(fan_in))."""
    def linear(k, fan_in, fan_out):
        kw, kb = jax.random.split(k)
        bound = 1.0 / jnp.sqrt(jnp.float32(fan_in))
        w = jax.random.uniform(kw, (fan_in, fan_out), jnp.float32, -bound, bound)
        b = jax.random.uniform(kb, (1, fan_out), jnp.float32, -bound, bound)
        return w, b

    k1, k2, k3, ko = jax.random.split(key, 4)
    w1, b1 = linear(k1, d_in, d_hidden)
    w2, b2 = linear(k2, d_hidden, d_hidden)
    w3, b3 = linear(k3, d_hidden, d_hidden)
    wo, bo = linear(ko, d_hidden, num_classes)
    return {"w1": w1, "b1": b1, "w2": w2, "b2": b2,
            "w3": w3, "b3": b3, "wo": wo, "bo": bo}


if __name__ == "__main__":
    # Small shapes consistent with the module (num_layers=3, output_size=10).
    # Feature dim 256 keeps lanes dense; batch 256 exercises a 2-step batch
    # grid (tm clamps to 128 so both v7x TensorCores get a tile).
    B, D, NUM_CLASSES = 256, 256, 10

    key = jax.random.PRNGKey(0)
    kx, kp = jax.random.split(key)
    x = jax.random.normal(kx, (B, D), jnp.float32)
    params = init_params(kp, D, D, NUM_CLASSES)

    prepared = prepare_params(params, num_classes=NUM_CLASSES)  # once, not per call

    def run(single_buffer):
        o = number_classifier_forward(x, prepared, num_classes=NUM_CLASSES,
                                      single_buffer_weights=single_buffer)
        return jax.block_until_ready(o)

    try:
        out = run(True)
    except Exception:
        # pl.Buffered(1) single-buffering is a newer feature; fall back to the
        # default (double-buffered) resident specs if the lowering rejects it.
        out = run(False)

    # sanity: shape, rows sum to 1 (exact softmax), matches JAX reference.
    assert out.shape == (B, NUM_CLASSES)
    row_sums = jnp.sum(out, axis=1)
    assert bool(jnp.all(jnp.abs(row_sums - 1.0) < 1e-3)), "softmax rows must sum to 1"
    ref = reference_forward(x, params)
    assert bool(jnp.max(jnp.abs(out - ref)) < 1e-2), "mismatch vs JAX reference"

    print("KERNEL_OK")
</pallas_src>

<mosaic_0001>
module attributes {stable_mosaic.version = 11 : i64} {
  func.func @mlp_kernel(%arg0: i32, %arg1: memref<128x256xf32, #tpu.memory_space<vmem>>, %arg2: memref<256x256xbf16, #tpu.memory_space<vmem>>, %arg3: memref<1x256xf32, #tpu.memory_space<vmem>>, %arg4: memref<256x256xbf16, #tpu.memory_space<vmem>>, %arg5: memref<1x256xf32, #tpu.memory_space<vmem>>, %arg6: memref<256x256xbf16, #tpu.memory_space<vmem>>, %arg7: memref<1x256xf32, #tpu.memory_space<vmem>>, %arg8: memref<256x128xbf16, #tpu.memory_space<vmem>>, %arg9: memref<1x128xf32, #tpu.memory_space<vmem>>, %arg10: memref<128x128xf32, #tpu.memory_space<vmem>>) attributes {dimension_semantics = [#tpu.dimension_semantics<parallel>], iteration_bounds = array<i64: 2>, scalar_prefetch = 0 : i64, scratch_operands = 0 : i64, tpu.core_type = #tpu.core_type<tc>, window_params = [{transform_indices = @transform_0, window_bounds = array<i64: 128, 256>}, {pipeline_mode = #tpu.pipeline_mode<synchronous>, transform_indices = @transform_1, window_bounds = array<i64: 256, 256>}, {pipeline_mode = #tpu.pipeline_mode<synchronous>, transform_indices = @transform_2, window_bounds = array<i64: 1, 256>}, {pipeline_mode = #tpu.pipeline_mode<synchronous>, transform_indices = @transform_3, window_bounds = array<i64: 256, 256>}, {pipeline_mode = #tpu.pipeline_mode<synchronous>, transform_indices = @transform_4, window_bounds = array<i64: 1, 256>}, {pipeline_mode = #tpu.pipeline_mode<synchronous>, transform_indices = @transform_5, window_bounds = array<i64: 256, 256>}, {pipeline_mode = #tpu.pipeline_mode<synchronous>, transform_indices = @transform_6, window_bounds = array<i64: 1, 256>}, {pipeline_mode = #tpu.pipeline_mode<synchronous>, transform_indices = @transform_7, window_bounds = array<i64: 256, 128>}, {pipeline_mode = #tpu.pipeline_mode<synchronous>, transform_indices = @transform_8, window_bounds = array<i64: 1, 128>}, {transform_indices = @transform_9, window_bounds = array<i64: 128, 128>}]} {
    %c0 = arith.constant 0 : index
    %c0_0 = arith.constant 0 : index
    %0 = vector.load %arg1[%c0, %c0_0] : memref<128x256xf32, #tpu.memory_space<vmem>>, vector<128x256xf32>
    %1 = arith.truncf %0 : vector<128x256xf32> to vector<128x256xbf16>
    %c0_1 = arith.constant 0 : index
    %c0_2 = arith.constant 0 : index
    %2 = vector.load %arg2[%c0_1, %c0_2] : memref<256x256xbf16, #tpu.memory_space<vmem>>, vector<256x256xbf16>
    %cst = arith.constant dense<0.000000e+00> : vector<128x256xf32>
    %3 = tpu.matmul %1, %2, %cst {dimension_numbers = #tpu.dot_dimension_numbers<[1], [0], [0], [1], [0, 0, 1, 1], [], []>} : vector<128x256xbf16>, vector<256x256xbf16>, vector<128x256xf32> -> vector<128x256xf32>
    %c0_3 = arith.constant 0 : index
    %c0_4 = arith.constant 0 : index
    %4 = vector.load %arg3[%c0_3, %c0_4] : memref<1x256xf32, #tpu.memory_space<vmem>>, vector<1x256xf32>
    %5 = vector.broadcast %4 : vector<1x256xf32> to vector<128x256xf32>
    %6 = arith.addf %3, %5 : vector<128x256xf32>
    %cst_5 = arith.constant 0.000000e+00 : f32
    %7 = vector.broadcast %cst_5 : f32 to vector<128x256xf32>
    %8 = arith.maximumf %6, %7 : vector<128x256xf32>
    %9 = arith.truncf %8 : vector<128x256xf32> to vector<128x256xbf16>
    %c0_6 = arith.constant 0 : index
    %c0_7 = arith.constant 0 : index
    %10 = vector.load %arg4[%c0_6, %c0_7] : memref<256x256xbf16, #tpu.memory_space<vmem>>, vector<256x256xbf16>
    %cst_8 = arith.constant dense<0.000000e+00> : vector<128x256xf32>
    %11 = tpu.matmul %9, %10, %cst_8 {dimension_numbers = #tpu.dot_dimension_numbers<[1], [0], [0], [1], [0, 0, 1, 1], [], []>} : vector<128x256xbf16>, vector<256x256xbf16>, vector<128x256xf32> -> vector<128x256xf32>
    %c0_9 = arith.constant 0 : index
    %c0_10 = arith.constant 0 : index
    %12 = vector.load %arg5[%c0_9, %c0_10] : memref<1x256xf32, #tpu.memory_space<vmem>>, vector<1x256xf32>
    %13 = vector.broadcast %12 : vector<1x256xf32> to vector<128x256xf32>
    %14 = arith.addf %11, %13 : vector<128x256xf32>
    %cst_11 = arith.constant 0.000000e+00 : f32
    %15 = vector.broadcast %cst_11 : f32 to vector<128x256xf32>
    %16 = arith.maximumf %14, %15 : vector<128x256xf32>
    %17 = arith.truncf %16 : vector<128x256xf32> to vector<128x256xbf16>
    %c0_12 = arith.constant 0 : index
    %c0_13 = arith.constant 0 : index
    %18 = vector.load %arg6[%c0_12, %c0_13] : memref<256x256xbf16, #tpu.memory_space<vmem>>, vector<256x256xbf16>
    %cst_14 = arith.constant dense<0.000000e+00> : vector<128x256xf32>
    %19 = tpu.matmul %17, %18, %cst_14 {dimension_numbers = #tpu.dot_dimension_numbers<[1], [0], [0], [1], [0, 0, 1, 1], [], []>} : vector<128x256xbf16>, vector<256x256xbf16>, vector<128x256xf32> -> vector<128x256xf32>
    %c0_15 = arith.constant 0 : index
    %c0_16 = arith.constant 0 : index
    %20 = vector.load %arg7[%c0_15, %c0_16] : memref<1x256xf32, #tpu.memory_space<vmem>>, vector<1x256xf32>
    %21 = vector.broadcast %20 : vector<1x256xf32> to vector<128x256xf32>
    %22 = arith.addf %19, %21 : vector<128x256xf32>
    %cst_17 = arith.constant 0.000000e+00 : f32
    %23 = vector.broadcast %cst_17 : f32 to vector<128x256xf32>
    %24 = arith.maximumf %22, %23 : vector<128x256xf32>
    %25 = arith.truncf %24 : vector<128x256xf32> to vector<128x256xbf16>
    %c0_18 = arith.constant 0 : index
    %c0_19 = arith.constant 0 : index
    %26 = vector.load %arg8[%c0_18, %c0_19] : memref<256x128xbf16, #tpu.memory_space<vmem>>, vector<256x128xbf16>
    %cst_20 = arith.constant dense<0.000000e+00> : vector<128x128xf32>
    %27 = tpu.matmul %25, %26, %cst_20 {dimension_numbers = #tpu.dot_dimension_numbers<[1], [0], [0], [1], [0, 0, 1, 1], [], []>} : vector<128x256xbf16>, vector<256x128xbf16>, vector<128x128xf32> -> vector<128x128xf32>
    %c0_21 = arith.constant 0 : index
    %c0_22 = arith.constant 0 : index
    %28 = vector.load %arg9[%c0_21, %c0_22] : memref<1x128xf32, #tpu.memory_space<vmem>>, vector<1x128xf32>
    %29 = vector.broadcast %28 : vector<1x128xf32> to vector<128x128xf32>
    %30 = arith.addf %27, %29 : vector<128x128xf32>
    %31 = tpu.iota {dimensions = array<i32: 1>} : vector<128x128xi32>
    %c10_i32 = arith.constant 10 : i32
    %32 = vector.broadcast %c10_i32 : i32 to vector<128x128xi32>
    %33 = arith.cmpi slt, %31, %32 : vector<128x128xi32>
    %cst_23 = arith.constant -1.000000e+30 : f32
    %34 = vector.broadcast %cst_23 : f32 to vector<128x128xf32>
    %35 = arith.select %33, %30, %34 : vector<128x128xi1>, vector<128x128xf32>
    %cst_24 = arith.constant dense<0xFF800000> : vector<128xf32>
    %36 = vector.multi_reduction <maximumf>, %35, %cst_24 [1] : vector<128x128xf32> to vector<128xf32>
    %37 = vector.shape_cast %36 : vector<128xf32> to vector<128x1xf32>
    %38 = vector.broadcast %37 : vector<128x1xf32> to vector<128x128xf32>
    %39 = arith.subf %35, %38 : vector<128x128xf32>
    %40 = math.exp %39 : vector<128x128xf32>
    %cst_25 = arith.constant 0.000000e+00 : f32
    %41 = vector.broadcast %cst_25 : f32 to vector<128x128xf32>
    %42 = arith.select %33, %40, %41 : vector<128x128xi1>, vector<128x128xf32>
    %cst_26 = arith.constant dense<0.000000e+00> : vector<128xf32>
    %43 = vector.multi_reduction <add>, %42, %cst_26 [1] : vector<128x128xf32> to vector<128xf32>
    %44 = vector.shape_cast %43 : vector<128xf32> to vector<128x1xf32>
    %45 = vector.broadcast %44 : vector<128x1xf32> to vector<128x128xf32>
    %46 = arith.divf %42, %45 : vector<128x128xf32>
    %c0_27 = arith.constant 0 : index
    %c0_28 = arith.constant 0 : index
    %47 = vector.load %arg10[%c0_27, %c0_28] : memref<128x128xf32, #tpu.memory_space<vmem>>, vector<128x128xf32>
    tpu.vector_store %arg10[%c0_27, %c0_28], %46 {strides = array<i32>} : memref<128x128xf32, #tpu.memory_space<vmem>>, vector<128x128xf32>,
    return
  }
  func.func @transform_0(%arg0: i32) -> (i32, i32) {
    %c0_i32 = arith.constant 0 : i32
    %c0_i32_0 = arith.constant 0 : i32
    return %arg0, %c0_i32 : i32, i32
  }
  func.func @transform_1(%arg0: i32) -> (i32, i32) {
    %c0_i32 = arith.constant 0 : i32
    %c0_i32_0 = arith.constant 0 : i32
    %c0_i32_1 = arith.constant 0 : i32
    return %c0_i32, %c0_i32_0 : i32, i32
  }
  func.func @transform_2(%arg0: i32) -> (i32, i32) {
    %c0_i32 = arith.constant 0 : i32
    %c0_i32_0 = arith.constant 0 : i32
    %c0_i32_1 = arith.constant 0 : i32
    return %c0_i32, %c0_i32_0 : i32, i32
  }
  func.func @transform_3(%arg0: i32) -> (i32, i32) {
    %c0_i32 = arith.constant 0 : i32
    %c0_i32_0 = arith.constant 0 : i32
    %c0_i32_1 = arith.constant 0 : i32
    return %c0_i32, %c0_i32_0 : i32, i32
  }
  func.func @transform_4(%arg0: i32) -> (i32, i32) {
    %c0_i32 = arith.constant 0 : i32
    %c0_i32_0 = arith.constant 0 : i32
    %c0_i32_1 = arith.constant 0 : i32
    return %c0_i32, %c0_i32_0 : i32, i32
  }
  func.func @transform_5(%arg0: i32) -> (i32, i32) {
    %c0_i32 = arith.constant 0 : i32
    %c0_i32_0 = arith.constant 0 : i32
    %c0_i32_1 = arith.constant 0 : i32
    return %c0_i32, %c0_i32_0 : i32, i32
  }
  func.func @transform_6(%arg0: i32) -> (i32, i32) {
    %c0_i32 = arith.constant 0 : i32
    %c0_i32_0 = arith.constant 0 : i32
    %c0_i32_1 = arith.constant 0 : i32
    return %c0_i32, %c0_i32_0 : i32, i32
  }
  func.func @transform_7(%arg0: i32) -> (i32, i32) {
    %c0_i32 = arith.constant 0 : i32
    %c0_i32_0 = arith.constant 0 : i32
    %c0_i32_1 = arith.constant 0 : i32
    return %c0_i32, %c0_i32_0 : i32, i32
  }
  func.func @transform_8(%arg0: i32) -> (i32, i32) {
    %c0_i32 = arith.constant 0 : i32
    %c0_i32_0 = arith.constant 0 : i32
    %c0_i32_1 = arith.constant 0 : i32
    return %c0_i32, %c0_i32_0 : i32, i32
  }
  func.func @transform_9(%arg0: i32) -> (i32, i32) {
    %c0_i32 = arith.constant 0 : i32
    %c0_i32_0 = arith.constant 0 : i32
    return %arg0, %c0_i32 : i32, i32
  }
}

module attributes {stable_mosaic.version = 11 : i64} {
  func.func @mlp_kernel(%arg0: i32, %arg1: memref<128x256xf32, #tpu.memory_space<vmem>>, %arg2: memref<256x256xbf16, #tpu.memory_space<vmem>>, %arg3: memref<1x256xf32, #tpu.memory_space<vmem>>, %arg4: memref<256x256xbf16, #tpu.memory_space<vmem>>, %arg5: memref<1x256xf32, #tpu.memory_space<vmem>>, %arg6: memref<256x256xbf16, #tpu.memory_space<vmem>>, %arg7: memref<1x256xf32, #tpu.memory_space<vmem>>, %arg8: memref<256x128xbf16, #tpu.memory_space<vmem>>, %arg9: memref<1x128xf32, #tpu.memory_space<vmem>>, %arg10: memref<128x128xf32, #tpu.memory_space<vmem>>) attributes {dimension_semantics = [#tpu.dimension_semantics<parallel>], iteration_bounds = array<i64: 2>, scalar_prefetch = 0 : i64, scratch_operands = 0 : i64, tpu.core_type = #tpu.core_type<tc>, window_params = [{transform_indices = @transform_0, window_bounds = array<i64: 128, 256>}, {pipeline_mode = #tpu.pipeline_mode<synchronous>, transform_indices = @transform_1, window_bounds = array<i64: 256, 256>}, {pipeline_mode = #tpu.pipeline_mode<synchronous>, transform_indices = @transform_2, window_bounds = array<i64: 1, 256>}, {pipeline_mode = #tpu.pipeline_mode<synchronous>, transform_indices = @transform_3, window_bounds = array<i64: 256, 256>}, {pipeline_mode = #tpu.pipeline_mode<synchronous>, transform_indices = @transform_4, window_bounds = array<i64: 1, 256>}, {pipeline_mode = #tpu.pipeline_mode<synchronous>, transform_indices = @transform_5, window_bounds = array<i64: 256, 256>}, {pipeline_mode = #tpu.pipeline_mode<synchronous>, transform_indices = @transform_6, window_bounds = array<i64: 1, 256>}, {pipeline_mode = #tpu.pipeline_mode<synchronous>, transform_indices = @transform_7, window_bounds = array<i64: 256, 128>}, {pipeline_mode = #tpu.pipeline_mode<synchronous>, transform_indices = @transform_8, window_bounds = array<i64: 1, 128>}, {transform_indices = @transform_9, window_bounds = array<i64: 128, 128>}]} {
    %c0 = arith.constant 0 : index
    %c0_0 = arith.constant 0 : index
    %0 = vector.load %arg1[%c0, %c0_0] : memref<128x256xf32, #tpu.memory_space<vmem>>, vector<128x256xf32>
    %1 = arith.truncf %0 : vector<128x256xf32> to vector<128x256xbf16>
    %c0_1 = arith.constant 0 : index
    %c0_2 = arith.constant 0 : index
    %2 = vector.load %arg2[%c0_1, %c0_2] : memref<256x256xbf16, #tpu.memory_space<vmem>>, vector<256x256xbf16>
    %cst = arith.constant dense<0.000000e+00> : vector<128x256xf32>
    %3 = tpu.matmul %1, %2, %cst {dimension_numbers = #tpu.dot_dimension_numbers<[1], [0], [0], [1], [0, 0, 1, 1], [], []>} : vector<128x256xbf16>, vector<256x256xbf16>, vector<128x256xf32> -> vector<128x256xf32>
    %c0_3 = arith.constant 0 : index
    %c0_4 = arith.constant 0 : index
    %4 = vector.load %arg3[%c0_3, %c0_4] : memref<1x256xf32, #tpu.memory_space<vmem>>, vector<1x256xf32>
    %5 = vector.broadcast %4 : vector<1x256xf32> to vector<128x256xf32>
    %6 = arith.addf %3, %5 : vector<128x256xf32>
    %cst_5 = arith.constant 0.000000e+00 : f32
    %7 = vector.broadcast %cst_5 : f32 to vector<128x256xf32>
    %8 = arith.maximumf %6, %7 : vector<128x256xf32>
    %9 = arith.truncf %8 : vector<128x256xf32> to vector<128x256xbf16>
    %c0_6 = arith.constant 0 : index
    %c0_7 = arith.constant 0 : index
    %10 = vector.load %arg4[%c0_6, %c0_7] : memref<256x256xbf16, #tpu.memory_space<vmem>>, vector<256x256xbf16>
    %cst_8 = arith.constant dense<0.000000e+00> : vector<128x256xf32>
    %11 = tpu.matmul %9, %10, %cst_8 {dimension_numbers = #tpu.dot_dimension_numbers<[1], [0], [0], [1], [0, 0, 1, 1], [], []>} : vector<128x256xbf16>, vector<256x256xbf16>, vector<128x256xf32> -> vector<128x256xf32>
    %c0_9 = arith.constant 0 : index
    %c0_10 = arith.constant 0 : index
    %12 = vector.load %arg5[%c0_9, %c0_10] : memref<1x256xf32, #tpu.memory_space<vmem>>, vector<1x256xf32>
    %13 = vector.broadcast %12 : vector<1x256xf32> to vector<128x256xf32>
    %14 = arith.addf %11, %13 : vector<128x256xf32>
    %cst_11 = arith.constant 0.000000e+00 : f32
    %15 = vector.broadcast %cst_11 : f32 to vector<128x256xf32>
    %16 = arith.maximumf %14, %15 : vector<128x256xf32>
    %17 = arith.truncf %16 : vector<128x256xf32> to vector<128x256xbf16>
    %c0_12 = arith.constant 0 : index
    %c0_13 = arith.constant 0 : index
    %18 = vector.load %arg6[%c0_12, %c0_13] : memref<256x256xbf16, #tpu.memory_space<vmem>>, vector<256x256xbf16>
    %cst_14 = arith.constant dense<0.000000e+00> : vector<128x256xf32>
    %19 = tpu.matmul %17, %18, %cst_14 {dimension_numbers = #tpu.dot_dimension_numbers<[1], [0], [0], [1], [0, 0, 1, 1], [], []>} : vector<128x256xbf16>, vector<256x256xbf16>, vector<128x256xf32> -> vector<128x256xf32>
    %c0_15 = arith.constant 0 : index
    %c0_16 = arith.constant 0 : index
    %20 = vector.load %arg7[%c0_15, %c0_16] : memref<1x256xf32, #tpu.memory_space<vmem>>, vector<1x256xf32>
    %21 = vector.broadcast %20 : vector<1x256xf32> to vector<128x256xf32>
    %22 = arith.addf %19, %21 : vector<128x256xf32>
    %cst_17 = arith.constant 0.000000e+00 : f32
    %23 = vector.broadcast %cst_17 : f32 to vector<128x256xf32>
    %24 = arith.maximumf %22, %23 : vector<128x256xf32>
    %25 = arith.truncf %24 : vector<128x256xf32> to vector<128x256xbf16>
    %c0_18 = arith.constant 0 : index
    %c0_19 = arith.constant 0 : index
    %26 = vector.load %arg8[%c0_18, %c0_19] : memref<256x128xbf16, #tpu.memory_space<vmem>>, vector<256x128xbf16>
    %cst_20 = arith.constant dense<0.000000e+00> : vector<128x128xf32>
    %27 = tpu.matmul %25, %26, %cst_20 {dimension_numbers = #tpu.dot_dimension_numbers<[1], [0], [0], [1], [0, 0, 1, 1], [], []>} : vector<128x256xbf16>, vector<256x128xbf16>, vector<128x128xf32> -> vector<128x128xf32>
    %c0_21 = arith.constant 0 : index
    %c0_22 = arith.constant 0 : index
    %28 = vector.load %arg9[%c0_21, %c0_22] : memref<1x128xf32, #tpu.memory_space<vmem>>, vector<1x128xf32>
    %29 = vector.broadcast %28 : vector<1x128xf32> to vector<128x128xf32>
    %30 = arith.addf %27, %29 : vector<128x128xf32>
    %31 = tpu.iota {dimensions = array<i32: 1>} : vector<128x128xi32>
    %c10_i32 = arith.constant 10 : i32
    %32 = vector.broadcast %c10_i32 : i32 to vector<128x128xi32>
    %33 = arith.cmpi slt, %31, %32 : vector<128x128xi32>
    %cst_23 = arith.constant -1.000000e+30 : f32
    %34 = vector.broadcast %cst_23 : f32 to vector<128x128xf32>
    %35 = arith.select %33, %30, %34 : vector<128x128xi1>, vector<128x128xf32>
    %cst_24 = arith.constant dense<0xFF800000> : vector<128xf32>
    %36 = vector.multi_reduction <maximumf>, %35, %cst_24 [1] : vector<128x128xf32> to vector<128xf32>
    %37 = vector.shape_cast %36 : vector<128xf32> to vector<128x1xf32>
    %38 = vector.broadcast %37 : vector<128x1xf32> to vector<128x128xf32>
    %39 = arith.subf %35, %38 : vector<128x128xf32>
    %40 = math.exp %39 : vector<128x128xf32>
    %cst_25 = arith.constant 0.000000e+00 : f32
    %41 = vector.broadcast %cst_25 : f32 to vector<128x128xf32>
    %42 = arith.select %33, %40, %41 : vector<128x128xi1>, vector<128x128xf32>
    %cst_26 = arith.constant dense<0.000000e+00> : vector<128xf32>
    %43 = vector.multi_reduction <add>, %42, %cst_26 [1] : vector<128x128xf32> to vector<128xf32>
    %44 = vector.shape_cast %43 : vector<128xf32> to vector<128x1xf32>
    %45 = vector.broadcast %44 : vector<128x1xf32> to vector<128x128xf32>
    %46 = arith.divf %42, %45 : vector<128x128xf32>
    %c0_27 = arith.constant 0 : index
    %c0_28 = arith.constant 0 : index
    %47 = vector.load %arg10[%c0_27, %c0_28] : memref<128x128xf32, #tpu.memory_space<vmem>>, vector<128x128xf32>
    tpu.vector_store %arg10[%c0_27, %c0_28], %46 {strides = array<i32>} : memref<128x128xf32, #tpu.memory_space<vmem>>, vector<128x128xf32>,
    return
  }
  func.func @transform_0(%arg0: i32) -> (i32, i32) {
    %c0_i32 = arith.constant 0 : i32
    %c0_i32_0 = arith.constant 0 : i32
    return %arg0, %c0_i32 : i32, i32
  }
  func.func @transform_1(%arg0: i32) -> (i32, i32) {
    %c0_i32 = arith.constant 0 : i32
    %c0_i32_0 = arith.constant 0 : i32
    %c0_i32_1 = arith.constant 0 : i32
    return %c0_i32, %c0_i32_0 : i32, i32
  }
  func.func @transform_2(%arg0: i32) -> (i32, i32) {
    %c0_i32 = arith.constant 0 : i32
    %c0_i32_0 = arith.constant 0 : i32
    %c0_i32_1 = arith.constant 0 : i32
    return %c0_i32, %c0_i32_0 : i32, i32
  }
  func.func @transform_3(%arg0: i32) -> (i32, i32) {
    %c0_i32 = arith.constant 0 : i32
    %c0_i32_0 = arith.constant 0 : i32
    %c0_i32_1 = arith.constant 0 : i32
    return %c0_i32, %c0_i32_0 : i32, i32
  }
  func.func @transform_4(%arg0: i32) -> (i32, i32) {
    %c0_i32 = arith.constant 0 : i32
    %c0_i32_0 = arith.constant 0 : i32
    %c0_i32_1 = arith.constant 0 : i32
    return %c0_i32, %c0_i32_0 : i32, i32
  }
  func.func @transform_5(%arg0: i32) -> (i32, i32) {
    %c0_i32 = arith.constant 0 : i32
    %c0_i32_0 = arith.constant 0 : i32
    %c0_i32_1 = arith.constant 0 : i32
    return %c0_i32, %c0_i32_0 : i32, i32
  }
  func.func @transform_6(%arg0: i32) -> (i32, i32) {
    %c0_i32 = arith.constant 0 : i32
    %c0_i32_0 = arith.constant 0 : i32
    %c0_i32_1 = arith.constant 0 : i32
    return %c0_i32, %c0_i32_0 : i32, i32
  }
  func.func @transform_7(%arg0: i32) -> (i32, i32) {
    %c0_i32 = arith.constant 0 : i32
    %c0_i32_0 = arith.constant 0 : i32
    %c0_i32_1 = arith.constant 0 : i32
    return %c0_i32, %c0_i32_0 : i32, i32
  }
  func.func @transform_8(%arg0: i32) -> (i32, i32) {
    %c0_i32 = arith.constant 0 : i32
    %c0_i32_0 = arith.constant 0 : i32
    %c0_i32_1 = arith.constant 0 : i32
    return %c0_i32, %c0_i32_0 : i32, i32
  }
  func.func @transform_9(%arg0: i32) -> (i32, i32) {
    %c0_i32 = arith.constant 0 : i32
    %c0_i32_0 = arith.constant 0 : i32
    return %arg0, %c0_i32 : i32, i32
  }
}

</mosaic_0001>

<llo_original>
// kernel: number_classifier_forward.1
$region0: #{number_classifier_forward.1}
  #allocation0 [shape = 'u32[]', space=smem, size = 0x4, offset = 0x4, fixed_abs, tag = 'smem constant byte address 0x4 - core index']
  #allocation1 [shape = 'u32[144,128]{1,0:T(1,128)}', space=vmem, size = 0x12000, scoped, tag = 'internal scratch']
  %s0 = inlined_call_operand.hbm [shape: f32[256,256], index: 0, kind: input, shape index: {}]
  %s1 = inlined_call_operand.hbm [shape: bf16[256,256], index: 1, kind: input, shape index: {}]
  %s2 = inlined_call_operand.vmem [shape: f32[1,256], index: 2, kind: input, shape index: {}]
  %s3 = inlined_call_operand.hbm [shape: bf16[256,256], index: 3, kind: input, shape index: {}]
  %s4 = inlined_call_operand.vmem [shape: f32[1,256], index: 4, kind: input, shape index: {}]
  %s5 = inlined_call_operand.hbm [shape: bf16[256,256], index: 5, kind: input, shape index: {}]
  %s6 = inlined_call_operand.vmem [shape: f32[1,256], index: 6, kind: input, shape index: {}]
  %s7 = inlined_call_operand.hbm [shape: bf16[256,128], index: 7, kind: input, shape index: {}]
  %s8 = inlined_call_operand.vmem [shape: f32[1,128], index: 8, kind: input, shape index: {}]
  %s9 = inlined_call_operand.vmem [shape: f32[256,128], index: 9, kind: output, shape index: {}]
  %s10 = sld [smem:[#allocation0]]
  $region89: #{number_classifier_forward.1} parent=0
    _
  %s12 = ssub.s32 1, %s10
  %s13 = scalar_select 0, %s12, %s10
  $region1: #{number_classifier_forward.1} parent=0
    #allocation2 [shape = 'u8[262144]{0}', space=vmem, size = 0x40000, scoped, tag = 'input window, operand 0']
    #allocation3 [shape = 's32[2]{0}', space=sflag, size = 0x8, scoped, tag = 'scoped memory for number_classifier_forward.1']
    #allocation4 [shape = 'u8[131072]{0}', space=vmem, size = 0x20000, scoped, tag = 'input window, operand 1, single buffered']
    #allocation5 [shape = 's32[1]{0}', space=sflag, size = 0x4, scoped, tag = 'scoped memory for number_classifier_forward.1']
    #allocation6 [shape = 'u8[131072]{0}', space=vmem, size = 0x20000, scoped, tag = 'input window, operand 3, single buffered']
    #allocation7 [shape = 'u8[131072]{0}', space=vmem, size = 0x20000, scoped, tag = 'input window, operand 5, single buffered']
    #allocation8 [shape = 's32[1]{0}', space=sflag, size = 0x4, scoped, tag = 'scoped memory for number_classifier_forward.1']
    #allocation9 [shape = 'u8[65536]{0}', space=vmem, size = 0x10000, scoped, tag = 'input window, operand 7, single buffered']
    %14 = vsyncpa [#allocation3], 0
    %s15 = scalar_lea.sflag [#allocation3], 1
    %16 = vsyncpa %s15, 0
    %17 = vsyncpa [#allocation5], 0
    %18 = vsyncpa [#allocation8], 0
    loop: start=0, step=1, limit=4
    $region2: #{number_classifier_forward.1} parent=1 // loop_pre_header
      _
    $region3: #{number_classifier_forward.1} parent=1 // loop_header
      %s20 = sphi 0, %s24
      %p21 = scmp.ge.s32.totalorder %s20, 4
      %s30 = sphi 0, %s32
      %s33 = sphi 0, %s30
      %s34 = sphi 0, %s33
      %s50 = sphi 0, %s34
      %s54 = sphi 0, %s54
      %s56 = sphi 0, %s54
      %s57 = sphi 0, %s56
      %s71 = sphi 0, %s57
      %s75 = sphi 0, %s75
      %s77 = sphi 0, %s75
      %s78 = sphi 0, %s77
      %s92 = sphi 0, %s78
      %s96 = sphi 0, %s96
      %s98 = sphi 0, %s96
      %s99 = sphi 0, %s98
      %s113 = sphi 0, %s99
      %s117 = sphi 0, %s117
      %s119 = sphi 0, %s117
      %s120 = sphi 0, %s119
      %s134 = sphi 0, %s120
      %s138 = sphi 0, %s138
      %s140 = sphi 0, %s138
      %s141 = sphi 0, %s140
      %s155 = sphi 0, %s141
      %s159 = sphi 0, %s159
      %s161 = sphi 0, %s159
      %s162 = sphi 0, %s161
      %s176 = sphi 0, %s162
      %s180 = sphi 0, %s180
      %s182 = sphi 0, %s180
      %s183 = sphi 0, %s182
      %s197 = sphi 0, %s183
      %s201 = sphi 0, %s201
      %s203 = sphi 0, %s201
      %s204 = sphi 0, %s203
      %s218 = sphi 0, %s204
      %s224 = sphi 0, %s226
      %s227 = sphi 0, %s224
      %s228 = sphi 0, %s227
      %s244 = sphi 0, %s228
    $region4: #{number_classifier_forward.1} parent=1 // loop_header_branch
      %23 = sbr.rel (%p21) target = $region8
    $region5: #{number_classifier_forward.1} parent=1 // loop_body
      %s25 = ssub.s32 %s20, 1
      %s26 = ssub.s32 %s20, 2
      %s27 = sadd.s32 %s20, 1
      %s28 = ssub.s32 %s20, %s27
      %p29 = scmp.eq.s32.totalorder %s28, 0
      %s31 = sadd.s32 %s30, 1
      %s32 = scalar_select %p29, %s30, %s31
      %p35 = pneg %p29
      %p36 = scmp.eq.s32.totalorder %s20, 1
      %p37 = por %p35, %p36
      %p38 = scmp.ne.s32.totalorder %s30, %s33
      %p39 = scmp.eq.s32.totalorder %s20, 0
      %p40 = por %p38, %p39
      %p41 = scmp.ne.s32.totalorder %s30, %s33
      %p42 = scmp.eq.s32.totalorder %s25, 1
      %p43 = por %p41, %p42
      %p44 = scmp.ne.s32.totalorder %s33, %s34
      %p45 = scmp.eq.s32.totalorder %s25, 0
      %p46 = por %p44, %p45
      %p47 = scmp.ne.s32.totalorder %s33, %s34
      %p48 = scmp.eq.s32.totalorder %s26, 1
      %p49 = por %p47, %p48
      %p51 = scmp.ne.s32.totalorder %s34, %s50
      %p52 = scmp.eq.s32.totalorder %s26, 0
      %p53 = por %p51, %p52
      %s55 = sadd.s32 %s54, 1
      %p58 = scmp.eq.s32.totalorder %s20, 1
      %p59 = scmp.ne.s32.totalorder %s54, %s56
      %p60 = scmp.eq.s32.totalorder %s20, 0
      %p61 = por %p59, %p60
      %p62 = scmp.ne.s32.totalorder %s54, %s56
      %p63 = scmp.eq.s32.totalorder %s25, 1
      %p64 = por %p62, %p63
      %p65 = scmp.ne.s32.totalorder %s56, %s57
      %p66 = scmp.eq.s32.totalorder %s25, 0
      %p67 = por %p65, %p66
      %p68 = scmp.ne.s32.totalorder %s56, %s57
      %p69 = scmp.eq.s32.totalorder %s26, 1
      %p70 = por %p68, %p69
      %p72 = scmp.ne.s32.totalorder %s57, %s71
      %p73 = scmp.eq.s32.totalorder %s26, 0
      %p74 = por %p72, %p73
      %s76 = sadd.s32 %s75, 1
      %p79 = scmp.eq.s32.totalorder %s20, 1
      %p80 = scmp.ne.s32.totalorder %s75, %s77
      %p81 = scmp.eq.s32.totalorder %s20, 0
      %p82 = por %p80, %p81
      %p83 = scmp.ne.s32.totalorder %s75, %s77
      %p84 = scmp.eq.s32.totalorder %s25, 1
      %p85 = por %p83, %p84
      %p86 = scmp.ne.s32.totalorder %s77, %s78
      %p87 = scmp.eq.s32.totalorder %s25, 0
      %p88 = por %p86, %p87
      %p89 = scmp.ne.s32.totalorder %s77, %s78
      %p90 = scmp.eq.s32.totalorder %s26, 1
      %p91 = por %p89, %p90
      %p93 = scmp.ne.s32.totalorder %s78, %s92
      %p94 = scmp.eq.s32.totalorder %s26, 0
      %p95 = por %p93, %p94
      %s97 = sadd.s32 %s96, 1
      %p100 = scmp.eq.s32.totalorder %s20, 1
      %p101 = scmp.ne.s32.totalorder %s96, %s98
      %p102 = scmp.eq.s32.totalorder %s20, 0
      %p103 = por %p101, %p102
      %p104 = scmp.ne.s32.totalorder %s96, %s98
      %p105 = scmp.eq.s32.totalorder %s25, 1
      %p106 = por %p104, %p105
      %p107 = scmp.ne.s32.totalorder %s98, %s99
      %p108 = scmp.eq.s32.totalorder %s25, 0
      %p109 = por %p107, %p108
      %p110 = scmp.ne.s32.totalorder %s98, %s99
      %p111 = scmp.eq.s32.totalorder %s26, 1
      %p112 = por %p110, %p111
      %p114 = scmp.ne.s32.totalorder %s99, %s113
      %p115 = scmp.eq.s32.totalorder %s26, 0
      %p116 = por %p114, %p115
      %s118 = sadd.s32 %s117, 1
      %p121 = scmp.eq.s32.totalorder %s20, 1
      %p122 = scmp.ne.s32.totalorder %s117, %s119
      %p123 = scmp.eq.s32.totalorder %s20, 0
      %p124 = por %p122, %p123
      %p125 = scmp.ne.s32.totalorder %s117, %s119
      %p126 = scmp.eq.s32.totalorder %s25, 1
      %p127 = por %p125, %p126
      %p128 = scmp.ne.s32.totalorder %s119, %s120
      %p129 = scmp.eq.s32.totalorder %s25, 0
      %p130 = por %p128, %p129
      %p131 = scmp.ne.s32.totalorder %s119, %s120
      %p132 = scmp.eq.s32.totalorder %s26, 1
      %p133 = por %p131, %p132
      %p135 = scmp.ne.s32.totalorder %s120, %s134
      %p136 = scmp.eq.s32.totalorder %s26, 0
      %p137 = por %p135, %p136
      %s139 = sadd.s32 %s138, 1
      %p142 = scmp.eq.s32.totalorder %s20, 1
      %p143 = scmp.ne.s32.totalorder %s138, %s140
      %p144 = scmp.eq.s32.totalorder %s20, 0
      %p145 = por %p143, %p144
      %p146 = scmp.ne.s32.totalorder %s138, %s140
      %p147 = scmp.eq.s32.totalorder %s25, 1
      %p148 = por %p146, %p147
      %p149 = scmp.ne.s32.totalorder %s140, %s141
      %p150 = scmp.eq.s32.totalorder %s25, 0
      %p151 = por %p149, %p150
      %p152 = scmp.ne.s32.totalorder %s140, %s141
      %p153 = scmp.eq.s32.totalorder %s26, 1
      %p154 = por %p152, %p153
      %p156 = scmp.ne.s32.totalorder %s141, %s155
      %p157 = scmp.eq.s32.totalorder %s26, 0
      %p158 = por %p156, %p157
      %s160 = sadd.s32 %s159, 1
      %p163 = scmp.eq.s32.totalorder %s20, 1
      %p164 = scmp.ne.s32.totalorder %s159, %s161
      %p165 = scmp.eq.s32.totalorder %s20, 0
      %p166 = por %p164, %p165
      %p167 = scmp.ne.s32.totalorder %s159, %s161
      %p168 = scmp.eq.s32.totalorder %s25, 1
      %p169 = por %p167, %p168
      %p170 = scmp.ne.s32.totalorder %s161, %s162
      %p171 = scmp.eq.s32.totalorder %s25, 0
      %p172 = por %p170, %p171
      %p173 = scmp.ne.s32.totalorder %s161, %s162
      %p174 = scmp.eq.s32.totalorder %s26, 1
      %p175 = por %p173, %p174
      %p177 = scmp.ne.s32.totalorder %s162, %s176
      %p178 = scmp.eq.s32.totalorder %s26, 0
      %p179 = por %p177, %p178
      %s181 = sadd.s32 %s180, 1
      %p184 = scmp.eq.s32.totalorder %s20, 1
      %p185 = scmp.ne.s32.totalorder %s180, %s182
      %p186 = scmp.eq.s32.totalorder %s20, 0
      %p187 = por %p185, %p186
      %p188 = scmp.ne.s32.totalorder %s180, %s182
      %p189 = scmp.eq.s32.totalorder %s25, 1
      %p190 = por %p188, %p189
      %p191 = scmp.ne.s32.totalorder %s182, %s183
      %p192 = scmp.eq.s32.totalorder %s25, 0
      %p193 = por %p191, %p192
      %p194 = scmp.ne.s32.totalorder %s182, %s183
      %p195 = scmp.eq.s32.totalorder %s26, 1
      %p196 = por %p194, %p195
      %p198 = scmp.ne.s32.totalorder %s183, %s197
      %p199 = scmp.eq.s32.totalorder %s26, 0
      %p200 = por %p198, %p199
      %s202 = sadd.s32 %s201, 1
      %p205 = scmp.eq.s32.totalorder %s20, 1
      %p206 = scmp.ne.s32.totalorder %s201, %s203
      %p207 = scmp.eq.s32.totalorder %s20, 0
      %p208 = por %p206, %p207
      %p209 = scmp.ne.s32.totalorder %s201, %s203
      %p210 = scmp.eq.s32.totalorder %s25, 1
      %p211 = por %p209, %p210
      %p212 = scmp.ne.s32.totalorder %s203, %s204
      %p213 = scmp.eq.s32.totalorder %s25, 0
      %p214 = por %p212, %p213
      %p215 = scmp.ne.s32.totalorder %s203, %s204
      %p216 = scmp.eq.s32.totalorder %s26, 1
      %p217 = por %p215, %p216
      %p219 = scmp.ne.s32.totalorder %s204, %s218
      %p220 = scmp.eq.s32.totalorder %s26, 0
      %p221 = por %p219, %p220
      %s222 = ssub.s32 %s20, %s27
      %p223 = scmp.eq.s32.totalorder %s222, 0
      %s225 = sadd.s32 %s224, 1
      %s226 = scalar_select %p223, %s224, %s225
      %p229 = pneg %p223
      %p230 = scmp.eq.s32.totalorder %s20, 1
      %p231 = por %p229, %p230
      %p232 = scmp.ne.s32.totalorder %s224, %s227
      %p233 = scmp.eq.s32.totalorder %s20, 0
      %p234 = por %p232, %p233
      %p235 = scmp.ne.s32.totalorder %s224, %s227
      %p236 = scmp.eq.s32.totalorder %s25, 1
      %p237 = por %p235, %p236
      %p238 = scmp.ne.s32.totalorder %s227, %s228
      %p239 = scmp.eq.s32.totalorder %s25, 0
      %p240 = por %p238, %p239
      %p241 = scmp.ne.s32.totalorder %s227, %s228
      %p242 = scmp.eq.s32.totalorder %s26, 1
      %p243 = por %p241, %p242
      %p245 = scmp.ne.s32.totalorder %s228, %s244
      %p246 = scmp.eq.s32.totalorder %s26, 0
      %p247 = por %p245, %p246
      %p248 = scmp.le.s32.totalorder 1, %s20
      %p249 = scmp.lt.s32.totalorder %s20, 3
      %p250 = pnand %p248, %p249
      %p251 = pneg %p250
      // Predicated region
      $region9: #{number_classifier_forward.1} parent=5 // pred_check
        _
      $region10: #{number_classifier_forward.1} parent=5 // pred_check_branch
        %253 = sbr.rel (%p250) target = $region12
      $region11: #{number_classifier_forward.1} parent=5 // pred_region
        %s254 = ssub.s32 %s20, 1
        // Predicated region
        $region13: #{number_classifier_forward.1} parent=11 // pred_check
          %p255 = pneg %p67
        $region14: #{number_classifier_forward.1} parent=11 // pred_check_branch
          %257 = sbr.rel (%p255) target = $region16
        $region15: #{number_classifier_forward.1} parent=11 // pred_region
          %s259 = ssub.s32 4096, 4096
          %260 = vsyncadd [#allocation5], %s259
          %s261 = sshll.u32 [#allocation4], 4
          %s262 = int_to_ptr.vmem [resolvable:$true] %s261
          %267 = dma.hbm_to_vmem [thread:$0]  %s1, 4096, %s262, [#allocation5], 128, 128, 8
        $region16: #{number_classifier_forward.1} parent=11 // pred_fallthru
          _
        // Predicated region
        $region17: #{number_classifier_forward.1} parent=11 // pred_check
          %p268 = pneg %p88
        $region18: #{number_classifier_forward.1} parent=11 // pred_check_branch
          %270 = sbr.rel (%p268) target = $region20
        $region19: #{number_classifier_forward.1} parent=11 // pred_region
          _
        $region20: #{number_classifier_forward.1} parent=11 // pred_fallthru
          _
        // Predicated region
        $region21: #{number_classifier_forward.1} parent=11 // pred_check
          %p271 = pneg %p109
        $region22: #{number_classifier_forward.1} parent=11 // pred_check_branch
          %273 = sbr.rel (%p271) target = $region24
        $region23: #{number_classifier_forward.1} parent=11 // pred_region
          %s275 = ssub.s32 4096, 4096
          %276 = vsyncadd [#allocation5], %s275
          %s277 = sshll.u32 [#allocation6], 4
          %s278 = int_to_ptr.vmem [resolvable:$true] %s277
          %283 = dma.hbm_to_vmem [thread:$0]  %s3, 4096, %s278, [#allocation5], 128, 128, 8
        $region24: #{number_classifier_forward.1} parent=11 // pred_fallthru
          _
        // Predicated region
        $region25: #{number_classifier_forward.1} parent=11 // pred_check
          %p284 = pneg %p130
        $region26: #{number_classifier_forward.1} parent=11 // pred_check_branch
          %286 = sbr.rel (%p284) target = $region28
        $region27: #{number_classifier_forward.1} parent=11 // pred_region
          _
        $region28: #{number_classifier_forward.1} parent=11 // pred_fallthru
          _
        // Predicated region
        $region29: #{number_classifier_forward.1} parent=11 // pred_check
          %p287 = pneg %p151
        $region30: #{number_classifier_forward.1} parent=11 // pred_check_branch
          %289 = sbr.rel (%p287) target = $region32
        $region31: #{number_classifier_forward.1} parent=11 // pred_region
          %s291 = ssub.s32 4096, 4096
          %292 = vsyncadd [#allocation8], %s291
          %s293 = sshll.u32 [#allocation7], 4
          %s294 = int_to_ptr.vmem [resolvable:$true] %s293
          %299 = dma.hbm_to_vmem [thread:$0]  %s5, 4096, %s294, [#allocation8], 128, 128, 8
        $region32: #{number_classifier_forward.1} parent=11 // pred_fallthru
          _
        // Predicated region
        $region33: #{number_classifier_forward.1} parent=11 // pred_check
          %p300 = pneg %p172
        $region34: #{number_classifier_forward.1} parent=11 // pred_check_branch
          %302 = sbr.rel (%p300) target = $region36
        $region35: #{number_classifier_forward.1} parent=11 // pred_region
          _
        $region36: #{number_classifier_forward.1} parent=11 // pred_fallthru
          _
        // Predicated region
        $region37: #{number_classifier_forward.1} parent=11 // pred_check
          %p303 = pneg %p193
        $region38: #{number_classifier_forward.1} parent=11 // pred_check_branch
          %305 = sbr.rel (%p303) target = $region40
        $region39: #{number_classifier_forward.1} parent=11 // pred_region
          %s307 = ssub.s32 2048, 2048
          %308 = vsyncadd [#allocation8], %s307
          %s309 = sshll.u32 [#allocation9], 4
          %s310 = int_to_ptr.vmem [resolvable:$true] %s309
          %315 = dma.hbm_to_vmem [thread:$0]  %s7, 2048, %s310, [#allocation8], 64, 64, 4
        $region40: #{number_classifier_forward.1} parent=11 // pred_fallthru
          _
        // Predicated region
        $region41: #{number_classifier_forward.1} parent=11 // pred_check
          %p316 = pneg %p214
        $region42: #{number_classifier_forward.1} parent=11 // pred_check_branch
          %318 = sbr.rel (%p316) target = $region44
        $region43: #{number_classifier_forward.1} parent=11 // pred_region
          _
        $region44: #{number_classifier_forward.1} parent=11 // pred_fallthru
          _
      $region12: #{number_classifier_forward.1} parent=5 // pred_fallthru
        _
      %p319 = scmp.lt.s32.totalorder %s20, 2
      // Predicated region
      $region45: #{number_classifier_forward.1} parent=5 // pred_check
        %p320 = pneg %p319
      $region46: #{number_classifier_forward.1} parent=5 // pred_check_branch
        %322 = sbr.rel (%p320) target = $region48
      $region47: #{number_classifier_forward.1} parent=5 // pred_region
        // Predicated region
        $region49: #{number_classifier_forward.1} parent=47 // pred_check
          %p323 = pneg %p40
        $region50: #{number_classifier_forward.1} parent=47 // pred_check_branch
          %325 = sbr.rel (%p323) target = $region52
        $region51: #{number_classifier_forward.1} parent=47 // pred_region
          %s326 = sand.u32 %s30, 1
          %s327 = scalar_lea.sflag [#allocation3], %s326
          %s328 = sand.u32 %s30, 1
          %s329 = smul.addr %s328, 256
          %s330 = scalar_lea.vmem [#allocation2], %s329
          %s331 = smul.u32 16, %s20
          %s333 = ssub.s32 4096, 4096
          %334 = vsyncadd %s327, %s333
          %s335 = smul.addr %s331, 2
          %s336 = smul.addr %s335, 128
          %s337 = scalar_lea.hbm %s0, %s336
          %s338 = sshll.u32 %s330, 4
          %s339 = int_to_ptr.vmem [resolvable:$true] %s338
          %344 = dma.hbm_to_vmem [thread:$0]  %s337, 4096, %s339, %s327, 256, 256, 16
        $region52: #{number_classifier_forward.1} parent=47 // pred_fallthru
          _
      $region48: #{number_classifier_forward.1} parent=5 // pred_fallthru
        _
      %p345 = scmp.le.s32.totalorder 1, %s20
      %p346 = scmp.lt.s32.totalorder %s20, 3
      %p347 = pnand %p345, %p346
      %p348 = pneg %p347
      // Predicated region
      $region53: #{number_classifier_forward.1} parent=5 // pred_check
        _
      $region54: #{number_classifier_forward.1} parent=5 // pred_check_branch
        %350 = sbr.rel (%p347) target = $region56
      $region55: #{number_classifier_forward.1} parent=5 // pred_region
        %s351 = ssub.s32 %s20, 1
        %s352 = sand.u32 %s33, 1
        %s353 = scalar_lea.sflag [#allocation3], %s352
        %s354 = sand.u32 %s33, 1
        %s355 = smul.addr %s354, 256
        %s356 = scalar_lea.vmem [#allocation2], %s355
        // Predicated region
        $region57: #{number_classifier_forward.1} parent=55 // pred_check
          %p357 = pneg %p46
        $region58: #{number_classifier_forward.1} parent=55 // pred_check_branch
          %359 = sbr.rel (%p357) target = $region60
        $region59: #{number_classifier_forward.1} parent=55 // pred_region
          %360 = dma.done %s353, 4096
        $region60: #{number_classifier_forward.1} parent=55 // pred_fallthru
          _
        // Predicated region
        $region61: #{number_classifier_forward.1} parent=55 // pred_check
          %p361 = pneg %p67
        $region62: #{number_classifier_forward.1} parent=55 // pred_check_branch
          %363 = sbr.rel (%p361) target = $region64
        $region63: #{number_classifier_forward.1} parent=55 // pred_region
          %364 = dma.done [#allocation5], 4096
        $region64: #{number_classifier_forward.1} parent=55 // pred_fallthru
          _
        // Predicated region
        $region65: #{number_classifier_forward.1} parent=55 // pred_check
          %p365 = pneg %p109
        $region66: #{number_classifier_forward.1} parent=55 // pred_check_branch
          %367 = sbr.rel (%p365) target = $region68
        $region67: #{number_classifier_forward.1} parent=55 // pred_region
          %368 = dma.done [#allocation5], 4096
        $region68: #{number_classifier_forward.1} parent=55 // pred_fallthru
          _
        // Predicated region
        $region69: #{number_classifier_forward.1} parent=55 // pred_check
          %p369 = pneg %p151
        $region70: #{number_classifier_forward.1} parent=55 // pred_check_branch
          %371 = sbr.rel (%p369) target = $region72
        $region71: #{number_classifier_forward.1} parent=55 // pred_region
          %372 = dma.done [#allocation8], 4096
        $region72: #{number_classifier_forward.1} parent=55 // pred_fallthru
          _
        // Predicated region
        $region73: #{number_classifier_forward.1} parent=55 // pred_check
          %p373 = pneg %p193
        $region74: #{number_classifier_forward.1} parent=55 // pred_check_branch
          %375 = sbr.rel (%p373) target = $region76
        $region75: #{number_classifier_forward.1} parent=55 // pred_region
          %376 = dma.done [#allocation8], 2048
        $region76: #{number_classifier_forward.1} parent=55 // pred_fallthru
          _
        %s377 = sand.u32 %s33, 1
        %s378 = scalar_lea.sflag [#allocation3], %s377
        %s379 = sand.u32 %s33, 1
        %s380 = smul.addr %s379, 256
        %s381 = scalar_lea.vmem [#allocation2], %s380
        %p382 = pneg %p46
        %p383 = pneg %p43
        %p384 = pneg %p67
        %p385 = pneg %p64
        %p386 = pneg %p88
        %p387 = pneg %p85
        %p388 = pneg %p109
        %p389 = pneg %p106
        %p390 = pneg %p130
        %p391 = pneg %p127
        %p392 = pneg %p151
        %p393 = pneg %p148
        %p394 = pneg %p172
        %p395 = pneg %p169
        %p396 = pneg %p193
        %p397 = pneg %p190
        %p398 = pneg %p214
        %p399 = pneg %p211
        %p400 = pneg %p240
        %p401 = pneg %p237
        %s402 = smul.u32 16, %s25
        %p403 = scmp.lt.s32.totalorder %s402, 31
        %s404 = scalar_select %p403, %s402, 31
        %s405 = smul.addr %s404, 8
        %s406 = scalar_lea.vmem %s9, %s405
        %s407 = smul.u32 16, %s25
        %s408 = smul.u32 16, %s25
        %p409 = scmp.lt.s32.totalorder %s408, 31
        %s410 = scalar_select %p409, %s408, 31
        %s411 = smul.addr %s410, 8
        %s412 = scalar_lea.vmem %s9, %s411
        %s413 = smul.u32 16, %s25
        %v415 = vld [vmem:[%s356] sm:$0xff]
        %v416 = vld [vmem:[%s356 + $0x8] sm:$0xff]
        %v417 = vld [vmem:[%s356 + $0x10] sm:$0xff]
        %v418 = vld [vmem:[%s356 + $0x18] sm:$0xff]
        %v419 = vld [vmem:[%s356 + $0x20] sm:$0xff]
        %v420 = vld [vmem:[%s356 + $0x28] sm:$0xff]
        %v421 = vld [vmem:[%s356 + $0x30] sm:$0xff]
        %v422 = vld [vmem:[%s356 + $0x38] sm:$0xff]
        %v423 = vld [vmem:[%s356 + $0x40] sm:$0xff]
        %v424 = vld [vmem:[%s356 + $0x48] sm:$0xff]
        %v425 = vld [vmem:[%s356 + $0x50] sm:$0xff]
        %v426 = vld [vmem:[%s356 + $0x58] sm:$0xff]
        %v427 = vld [vmem:[%s356 + $0x60] sm:$0xff]
        %v428 = vld [vmem:[%s356 + $0x68] sm:$0xff]
        %v429 = vld [vmem:[%s356 + $0x70] sm:$0xff]
        %v430 = vld [vmem:[%s356 + $0x78] sm:$0xff]
        %v431 = vld [vmem:[%s356 + $0x80] sm:$0xff]
        %v432 = vld [vmem:[%s356 + $0x88] sm:$0xff]
        %v433 = vld [vmem:[%s356 + $0x90] sm:$0xff]
        %v434 = vld [vmem:[%s356 + $0x98] sm:$0xff]
        %v435 = vld [vmem:[%s356 + $0xa0] sm:$0xff]
        %v436 = vld [vmem:[%s356 + $0xa8] sm:$0xff]
        %v437 = vld [vmem:[%s356 + $0xb0] sm:$0xff]
        %v438 = vld [vmem:[%s356 + $0xb8] sm:$0xff]
        %v439 = vld [vmem:[%s356 + $0xc0] sm:$0xff]
        %v440 = vld [vmem:[%s356 + $0xc8] sm:$0xff]
        %v441 = vld [vmem:[%s356 + $0xd0] sm:$0xff]
        %v442 = vld [vmem:[%s356 + $0xd8] sm:$0xff]
        %v443 = vld [vmem:[%s356 + $0xe0] sm:$0xff]
        %v444 = vld [vmem:[%s356 + $0xe8] sm:$0xff]
        %v445 = vld [vmem:[%s356 + $0xf0] sm:$0xff]
        %v446 = vld [vmem:[%s356 + $0xf8] sm:$0xff]
        %v447 = vpack.c.bf16 %v417, %v415
        %v448 = vpack.c.bf16 %v418, %v416
        %v449 = vpack.c.bf16 %v421, %v419
        %v450 = vpack.c.bf16 %v422, %v420
        %v451 = vpack.c.bf16 %v425, %v423
        %v452 = vpack.c.bf16 %v426, %v424
        %v453 = vpack.c.bf16 %v429, %v427
        %v454 = vpack.c.bf16 %v430, %v428
        %v455 = vpack.c.bf16 %v433, %v431
        %v456 = vpack.c.bf16 %v434, %v432
        %v457 = vpack.c.bf16 %v437, %v435
        %v458 = vpack.c.bf16 %v438, %v436
        %v459 = vpack.c.bf16 %v441, %v439
        %v460 = vpack.c.bf16 %v442, %v440
        %v461 = vpack.c.bf16 %v445, %v443
        %v462 = vpack.c.bf16 %v446, %v444
        %v463 = vld [vmem:[#allocation4] sm:$0xff]
        %v464 = vld [vmem:[#allocation4 + $0x8] sm:$0xff]
        %v465 = vld [vmem:[#allocation4 + $0x10] sm:$0xff]
        %v466 = vld [vmem:[#allocation4 + $0x18] sm:$0xff]
        %v467 = vld [vmem:[#allocation4 + $0x20] sm:$0xff]
        %v468 = vld [vmem:[#allocation4 + $0x28] sm:$0xff]
        %v469 = vld [vmem:[#allocation4 + $0x30] sm:$0xff]
        %v470 = vld [vmem:[#allocation4 + $0x38] sm:$0xff]
        %v471 = vld [vmem:[#allocation4 + $0x40] sm:$0xff]
        %v472 = vld [vmem:[#allocation4 + $0x48] sm:$0xff]
        %v473 = vld [vmem:[#allocation4 + $0x50] sm:$0xff]
        %v474 = vld [vmem:[#allocation4 + $0x58] sm:$0xff]
        %v475 = vld [vmem:[#allocation4 + $0x60] sm:$0xff]
        %v476 = vld [vmem:[#allocation4 + $0x68] sm:$0xff]
        %v477 = vld [vmem:[#allocation4 + $0x70] sm:$0xff]
        %v478 = vld [vmem:[#allocation4 + $0x78] sm:$0xff]
        %v479 = vld [vmem:[#allocation4 + $0x80] sm:$0xff]
        %v480 = vld [vmem:[#allocation4 + $0x88] sm:$0xff]
        %v481 = vld [vmem:[#allocation4 + $0x90] sm:$0xff]
        %v482 = vld [vmem:[#allocation4 + $0x98] sm:$0xff]
        %v483 = vld [vmem:[#allocation4 + $0xa0] sm:$0xff]
        %v484 = vld [vmem:[#allocation4 + $0xa8] sm:$0xff]
        %v485 = vld [vmem:[#allocation4 + $0xb0] sm:$0xff]
        %v486 = vld [vmem:[#allocation4 + $0xb8] sm:$0xff]
        %v487 = vld [vmem:[#allocation4 + $0xc0] sm:$0xff]
        %v488 = vld [vmem:[#allocation4 + $0xc8] sm:$0xff]
        %v489 = vld [vmem:[#allocation4 + $0xd0] sm:$0xff]
        %v490 = vld [vmem:[#allocation4 + $0xd8] sm:$0xff]
        %v491 = vld [vmem:[#allocation4 + $0xe0] sm:$0xff]
        %v492 = vld [vmem:[#allocation4 + $0xe8] sm:$0xff]
        %v493 = vld [vmem:[#allocation4 + $0xf0] sm:$0xff]
        %v494 = vld [vmem:[#allocation4 + $0xf8] sm:$0xff]
        %v495 = vld [vmem:[%s2] sm:$0x3]
        %v497 = vlaneseq
        %v498 = vshrl.u32 %v497, 7
        %v499 = vsub.s32 0, %v498
        %v500 = vrot.slane %v495, %v499
        %v501 = vlaneseq
        %v502 = vshrl.u32 %v501, 7
        %v503 = vsub.s32 1, %v502
        %v504 = vrot.slane %v495, %v503
        %v539 = vunpack.c.l.b16 %v463
        %v540 = vunpack.c.h.b16 %v463
        %v541 = vunpack.c.l.b16 %v464
        %v542 = vunpack.c.h.b16 %v464
        %v543 = vunpack.c.l.b16 %v465
        %v544 = vunpack.c.h.b16 %v465
        %v545 = vunpack.c.l.b16 %v466
        %v546 = vunpack.c.h.b16 %v466
        %v547 = vunpack.c.l.b16 %v467
        %v548 = vunpack.c.h.b16 %v467
        %v549 = vunpack.c.l.b16 %v468
        %v550 = vunpack.c.h.b16 %v468
        %v551 = vunpack.c.l.b16 %v469
        %v552 = vunpack.c.h.b16 %v469
        %v553 = vunpack.c.l.b16 %v470
        %v554 = vunpack.c.h.b16 %v470
        %v555 = vunpack.c.l.b16 %v471
        %v556 = vunpack.c.h.b16 %v471
        %v557 = vunpack.c.l.b16 %v472
        %v558 = vunpack.c.h.b16 %v472
        %v559 = vunpack.c.l.b16 %v473
        %v560 = vunpack.c.h.b16 %v473
        %v561 = vunpack.c.l.b16 %v474
        %v562 = vunpack.c.h.b16 %v474
        %v563 = vunpack.c.l.b16 %v475
        %v564 = vunpack.c.h.b16 %v475
        %v565 = vunpack.c.l.b16 %v476
        %v566 = vunpack.c.h.b16 %v476
        %v567 = vunpack.c.l.b16 %v477
        %v568 = vunpack.c.h.b16 %v477
        %v569 = vunpack.c.l.b16 %v478
        %v570 = vunpack.c.h.b16 %v478
        %v571 = vunpack.c.l.b16 %v479
        %v572 = vunpack.c.h.b16 %v479
        %v573 = vunpack.c.l.b16 %v480
        %v574 = vunpack.c.h.b16 %v480
        %v575 = vunpack.c.l.b16 %v481
        %v576 = vunpack.c.h.b16 %v481
        %v577 = vunpack.c.l.b16 %v482
        %v578 = vunpack.c.h.b16 %v482
        %v579 = vunpack.c.l.b16 %v483
        %v580 = vunpack.c.h.b16 %v483
        %v581 = vunpack.c.l.b16 %v484
        %v582 = vunpack.c.h.b16 %v484
        %v583 = vunpack.c.l.b16 %v485
        %v584 = vunpack.c.h.b16 %v485
        %v585 = vunpack.c.l.b16 %v486
        %v586 = vunpack.c.h.b16 %v486
        %v587 = vunpack.c.l.b16 %v487
        %v588 = vunpack.c.h.b16 %v487
        %v589 = vunpack.c.l.b16 %v488
        %v590 = vunpack.c.h.b16 %v488
        %v591 = vunpack.c.l.b16 %v489
        %v592 = vunpack.c.h.b16 %v489
        %v593 = vunpack.c.l.b16 %v490
        %v594 = vunpack.c.h.b16 %v490
        %v595 = vunpack.c.l.b16 %v491
        %v596 = vunpack.c.h.b16 %v491
        %v597 = vunpack.c.l.b16 %v492
        %v598 = vunpack.c.h.b16 %v492
        %v599 = vunpack.c.l.b16 %v493
        %v600 = vunpack.c.h.b16 %v493
        %v601 = vunpack.c.l.b16 %v494
        %v602 = vunpack.c.h.b16 %v494
        %v603 = vpack.c.b16 %v541, %v539
        %v604 = vpack.c.b16 %v542, %v540
        %v605 = vpack.c.b16 %v545, %v543
        %v606 = vpack.c.b16 %v546, %v544
        %v607 = vpack.c.b16 %v549, %v547
        %v608 = vpack.c.b16 %v550, %v548
        %v609 = vpack.c.b16 %v553, %v551
        %v610 = vpack.c.b16 %v554, %v552
        %v611 = vpack.c.b16 %v557, %v555
        %v612 = vpack.c.b16 %v558, %v556
        %v613 = vpack.c.b16 %v561, %v559
        %v614 = vpack.c.b16 %v562, %v560
        %v615 = vpack.c.b16 %v565, %v563
        %v616 = vpack.c.b16 %v566, %v564
        %v617 = vpack.c.b16 %v569, %v567
        %v618 = vpack.c.b16 %v570, %v568
        %v619 = vpack.c.b16 %v573, %v571
        %v620 = vpack.c.b16 %v574, %v572
        %v621 = vpack.c.b16 %v577, %v575
        %v622 = vpack.c.b16 %v578, %v576
        %v623 = vpack.c.b16 %v581, %v579
        %v624 = vpack.c.b16 %v582, %v580
        %v625 = vpack.c.b16 %v585, %v583
        %v626 = vpack.c.b16 %v586, %v584
        %v627 = vpack.c.b16 %v589, %v587
        %v628 = vpack.c.b16 %v590, %v588
        %v629 = vpack.c.b16 %v593, %v591
        %v630 = vpack.c.b16 %v594, %v592
        %v631 = vpack.c.b16 %v597, %v595
        %v632 = vpack.c.b16 %v598, %v596
        %v633 = vpack.c.b16 %v601, %v599
        %v634 = vpack.c.b16 %v602, %v600
        %667 = vmatprep.subr.bf16.mxu0 %v604
        %668 = vmatpush1.bf16.msra.mxu0 %v603
        %669 = vmatprep.subr.bf16.mxu0 %v606
        %670 = vmatpush1.bf16.msra.mxu0 %v605
        %671 = vmatprep.subr.bf16.mxu0 %v608
        %672 = vmatpush1.bf16.msra.mxu0 %v607
        %673 = vmatprep.subr.bf16.mxu0 %v610
        %674 = vmatpush1.bf16.msra.mxu0 %v609
        %675 = vmatprep.subr.bf16.mxu0 %v612
        %676 = vmatpush1.bf16.msra.mxu0 %v611
        %677 = vmatprep.subr.bf16.mxu0 %v614
        %678 = vmatpush1.bf16.msra.mxu0 %v613
        %679 = vmatprep.subr.bf16.mxu0 %v616
        %680 = vmatpush1.bf16.msra.mxu0 %v615
        %681 = vmatprep.subr.bf16.mxu0 %v618
        %682 = vmatpush1.bf16.msra.mxu0 %v617
        %683 = vmatprep.subr.bf16.mxu0 %v620
        %684 = vmatpush1.bf16.msra.mxu0 %v619
        %685 = vmatprep.subr.bf16.mxu0 %v622
        %686 = vmatpush1.bf16.msra.mxu0 %v621
        %687 = vmatprep.subr.bf16.mxu0 %v624
        %688 = vmatpush1.bf16.msra.mxu0 %v623
        %689 = vmatprep.subr.bf16.mxu0 %v626
        %690 = vmatpush1.bf16.msra.mxu0 %v625
        %691 = vmatprep.subr.bf16.mxu0 %v628
        %692 = vmatpush1.bf16.msra.mxu0 %v627
        %693 = vmatprep.subr.bf16.mxu0 %v630
        %694 = vmatpush1.bf16.msra.mxu0 %v629
        %695 = vmatprep.subr.bf16.mxu0 %v632
        %696 = vmatpush1.bf16.msra.mxu0 %v631
        %697 = vmatprep.subr.bf16.mxu0 %v634
        %698 = vmatpush1.bf16.msra.mxu0 %v633
        %699 = vmatprep.mubr.bf16.mxu0 %v448
        %700 = vmatmul.mubr.bf16.gmra.mrb[0].mxu0 %v447
        %v701 = vpop.f32.mrb[0].mxu0
        %v702 = vadd.f32 %v500, %v701
        %v703 = vpop.f32.mrb[0].mxu0
        %v704 = vadd.f32 %v504, %v703
        %v705 = vpop.f32.mrb[0].mxu0
        %v706 = vadd.f32 %v500, %v705
        %v707 = vpop.f32.mrb[0].mxu0
        %v708 = vadd.f32 %v504, %v707
        %709 = vmatprep.mubr.bf16.mxu0 %v450
        %710 = vmatmul.mubr.bf16.gmra.mrb[0].mxu0 %v449
        %v711 = vpop.f32.mrb[0].mxu0
        %v712 = vadd.f32 %v500, %v711
        %v713 = vpop.f32.mrb[0].mxu0
        %v714 = vadd.f32 %v504, %v713
        %v715 = vpop.f32.mrb[0].mxu0
        %v716 = vadd.f32 %v500, %v715
        %v717 = vpop.f32.mrb[0].mxu0
        %v718 = vadd.f32 %v504, %v717
        %719 = vmatprep.mubr.bf16.mxu0 %v452
        %720 = vmatmul.mubr.bf16.gmra.mrb[0].mxu0 %v451
        %v721 = vpop.f32.mrb[0].mxu0
        %v722 = vadd.f32 %v500, %v721
        %v723 = vpop.f32.mrb[0].mxu0
        %v724 = vadd.f32 %v504, %v723
        %v725 = vpop.f32.mrb[0].mxu0
        %v726 = vadd.f32 %v500, %v725
        %v727 = vpop.f32.mrb[0].mxu0
        %v728 = vadd.f32 %v504, %v727
        %729 = vmatprep.mubr.bf16.mxu0 %v454
        %730 = vmatmul.mubr.bf16.gmra.mrb[0].mxu0 %v453
        %v731 = vpop.f32.mrb[0].mxu0
        %v732 = vadd.f32 %v500, %v731
        %v733 = vpop.f32.mrb[0].mxu0
        %v734 = vadd.f32 %v504, %v733
        %v735 = vpop.f32.mrb[0].mxu0
        %v736 = vadd.f32 %v500, %v735
        %v737 = vpop.f32.mrb[0].mxu0
        %v738 = vadd.f32 %v504, %v737
        %739 = vmatprep.mubr.bf16.mxu0 %v456
        %740 = vmatmul.mubr.bf16.gmra.mrb[0].mxu0 %v455
        %v741 = vpop.f32.mrb[0].mxu0
        %v742 = vadd.f32 %v500, %v741
        %v743 = vpop.f32.mrb[0].mxu0
        %v744 = vadd.f32 %v504, %v743
        %v745 = vpop.f32.mrb[0].mxu0
        %v746 = vadd.f32 %v500, %v745
        %v747 = vpop.f32.mrb[0].mxu0
        %v748 = vadd.f32 %v504, %v747
        %749 = vmatprep.mubr.bf16.mxu0 %v458
        %750 = vmatmul.mubr.bf16.gmra.mrb[0].mxu0 %v457
        %v751 = vpop.f32.mrb[0].mxu0
        %v752 = vadd.f32 %v500, %v751
        %v753 = vpop.f32.mrb[0].mxu0
        %v754 = vadd.f32 %v504, %v753
        %v755 = vpop.f32.mrb[0].mxu0
        %v756 = vadd.f32 %v500, %v755
        %v757 = vpop.f32.mrb[0].mxu0
        %v758 = vadd.f32 %v504, %v757
        %759 = vmatprep.mubr.bf16.mxu0 %v460
        %760 = vmatmul.mubr.bf16.gmra.mrb[0].mxu0 %v459
        %v761 = vpop.f32.mrb[0].mxu0
        %v762 = vadd.f32 %v500, %v761
        %v763 = vpop.f32.mrb[0].mxu0
        %v764 = vadd.f32 %v504, %v763
        %v765 = vpop.f32.mrb[0].mxu0
        %v766 = vadd.f32 %v500, %v765
        %v767 = vpop.f32.mrb[0].mxu0
        %v768 = vadd.f32 %v504, %v767
        %769 = vmatprep.mubr.bf16.mxu0 %v462
        %770 = vmatmul.mubr.bf16.gmra.mrb[0].mxu0 %v461
        %v771 = vpop.f32.mrb[0].mxu0
        %v772 = vadd.f32 %v500, %v771
        %v773 = vpop.f32.mrb[0].mxu0
        %v774 = vadd.f32 %v504, %v773
        %v775 = vpop.f32.mrb[0].mxu0
        %v776 = vadd.f32 %v500, %v775
        %v777 = vpop.f32.mrb[0].mxu0
        %v778 = vadd.f32 %v504, %v777
        %779 = vdwg.mxu0
        %v780 = vmax.f32 %v702, 0.0
        %v781 = vmax.f32 %v704, 0.0
        %v782 = vmax.f32 %v706, 0.0
        %v783 = vmax.f32 %v708, 0.0
        %v784 = vmax.f32 %v712, 0.0
        %v785 = vmax.f32 %v714, 0.0
        %v786 = vmax.f32 %v716, 0.0
        %v787 = vmax.f32 %v718, 0.0
        %v788 = vmax.f32 %v722, 0.0
        %v789 = vmax.f32 %v724, 0.0
        %v790 = vmax.f32 %v726, 0.0
        %v791 = vmax.f32 %v728, 0.0
        %v792 = vmax.f32 %v732, 0.0
        %v793 = vmax.f32 %v734, 0.0
        %v794 = vmax.f32 %v736, 0.0
        %v795 = vmax.f32 %v738, 0.0
        %v796 = vmax.f32 %v742, 0.0
        %v797 = vmax.f32 %v744, 0.0
        %v798 = vmax.f32 %v746, 0.0
        %v799 = vmax.f32 %v748, 0.0
        %v800 = vmax.f32 %v752, 0.0
        %v801 = vmax.f32 %v754, 0.0
        %v802 = vmax.f32 %v756, 0.0
        %v803 = vmax.f32 %v758, 0.0
        %v804 = vmax.f32 %v762, 0.0
        %v805 = vmax.f32 %v764, 0.0
        %v806 = vmax.f32 %v766, 0.0
        %v807 = vmax.f32 %v768, 0.0
        %v808 = vmax.f32 %v772, 0.0
        %v809 = vmax.f32 %v774, 0.0
        %v810 = vmax.f32 %v776, 0.0
        %v811 = vmax.f32 %v778, 0.0
        %v812 = vpack.c.bf16 %v782, %v780
        %v813 = vpack.c.bf16 %v783, %v781
        %v814 = vpack.c.bf16 %v786, %v784
        %v815 = vpack.c.bf16 %v787, %v785
        %v816 = vpack.c.bf16 %v790, %v788
        %v817 = vpack.c.bf16 %v791, %v789
        %v818 = vpack.c.bf16 %v794, %v792
        %v819 = vpack.c.bf16 %v795, %v793
        %v820 = vpack.c.bf16 %v798, %v796
        %v821 = vpack.c.bf16 %v799, %v797
        %v822 = vpack.c.bf16 %v802, %v800
        %v823 = vpack.c.bf16 %v803, %v801
        %v824 = vpack.c.bf16 %v806, %v804
        %v825 = vpack.c.bf16 %v807, %v805
        %v826 = vpack.c.bf16 %v810, %v808
        %v827 = vpack.c.bf16 %v811, %v809
        %v828 = vld [vmem:[#allocation6] sm:$0xff]
        %v829 = vld [vmem:[#allocation6 + $0x8] sm:$0xff]
        %v830 = vld [vmem:[#allocation6 + $0x10] sm:$0xff]
        %v831 = vld [vmem:[#allocation6 + $0x18] sm:$0xff]
        %v832 = vld [vmem:[#allocation6 + $0x20] sm:$0xff]
        %v833 = vld [vmem:[#allocation6 + $0x28] sm:$0xff]
        %v834 = vld [vmem:[#allocation6 + $0x30] sm:$0xff]
        %v835 = vld [vmem:[#allocation6 + $0x38] sm:$0xff]
        %v836 = vld [vmem:[#allocation6 + $0x40] sm:$0xff]
        %v837 = vld [vmem:[#allocation6 + $0x48] sm:$0xff]
        %v838 = vld [vmem:[#allocation6 + $0x50] sm:$0xff]
        %v839 = vld [vmem:[#allocation6 + $0x58] sm:$0xff]
        %v840 = vld [vmem:[#allocation6 + $0x60] sm:$0xff]
        %v841 = vld [vmem:[#allocation6 + $0x68] sm:$0xff]
        %v842 = vld [vmem:[#allocation6 + $0x70] sm:$0xff]
        %v843 = vld [vmem:[#allocation6 + $0x78] sm:$0xff]
        %v844 = vld [vmem:[#allocation6 + $0x80] sm:$0xff]
        %v845 = vld [vmem:[#allocation6 + $0x88] sm:$0xff]
        %v846 = vld [vmem:[#allocation6 + $0x90] sm:$0xff]
        %v847 = vld [vmem:[#allocation6 + $0x98] sm:$0xff]
        %v848 = vld [vmem:[#allocation6 + $0xa0] sm:$0xff]
        %v849 = vld [vmem:[#allocation6 + $0xa8] sm:$0xff]
        %v850 = vld [vmem:[#allocation6 + $0xb0] sm:$0xff]
        %v851 = vld [vmem:[#allocation6 + $0xb8] sm:$0xff]
        %v852 = vld [vmem:[#allocation6 + $0xc0] sm:$0xff]
        %v853 = vld [vmem:[#allocation6 + $0xc8] sm:$0xff]
        %v854 = vld [vmem:[#allocation6 + $0xd0] sm:$0xff]
        %v855 = vld [vmem:[#allocation6 + $0xd8] sm:$0xff]
        %v856 = vld [vmem:[#allocation6 + $0xe0] sm:$0xff]
        %v857 = vld [vmem:[#allocation6 + $0xe8] sm:$0xff]
        %v858 = vld [vmem:[#allocation6 + $0xf0] sm:$0xff]
        %v859 = vld [vmem:[#allocation6 + $0xf8] sm:$0xff]
        %v860 = vld [vmem:[%s4] sm:$0x3]
        %v862 = vlaneseq
        %v863 = vshrl.u32 %v862, 7
        %v864 = vsub.s32 0, %v863
        %v865 = vrot.slane %v860, %v864
        %v866 = vlaneseq
        %v867 = vshrl.u32 %v866, 7
        %v868 = vsub.s32 1, %v867
        %v869 = vrot.slane %v860, %v868
        %v904 = vunpack.c.l.b16 %v828
        %v905 = vunpack.c.h.b16 %v828
        %v906 = vunpack.c.l.b16 %v829
        %v907 = vunpack.c.h.b16 %v829
        %v908 = vunpack.c.l.b16 %v830
        %v909 = vunpack.c.h.b16 %v830
        %v910 = vunpack.c.l.b16 %v831
        %v911 = vunpack.c.h.b16 %v831
        %v912 = vunpack.c.l.b16 %v832
        %v913 = vunpack.c.h.b16 %v832
        %v914 = vunpack.c.l.b16 %v833
        %v915 = vunpack.c.h.b16 %v833
        %v916 = vunpack.c.l.b16 %v834
        %v917 = vunpack.c.h.b16 %v834
        %v918 = vunpack.c.l.b16 %v835
        %v919 = vunpack.c.h.b16 %v835
        %v920 = vunpack.c.l.b16 %v836
        %v921 = vunpack.c.h.b16 %v836
        %v922 = vunpack.c.l.b16 %v837
        %v923 = vunpack.c.h.b16 %v837
        %v924 = vunpack.c.l.b16 %v838
        %v925 = vunpack.c.h.b16 %v838
        %v926 = vunpack.c.l.b16 %v839
        %v927 = vunpack.c.h.b16 %v839
        %v928 = vunpack.c.l.b16 %v840
        %v929 = vunpack.c.h.b16 %v840
        %v930 = vunpack.c.l.b16 %v841
        %v931 = vunpack.c.h.b16 %v841
        %v932 = vunpack.c.l.b16 %v842
        %v933 = vunpack.c.h.b16 %v842
        %v934 = vunpack.c.l.b16 %v843
        %v935 = vunpack.c.h.b16 %v843
        %v936 = vunpack.c.l.b16 %v844
        %v937 = vunpack.c.h.b16 %v844
        %v938 = vunpack.c.l.b16 %v845
        %v939 = vunpack.c.h.b16 %v845
        %v940 = vunpack.c.l.b16 %v846
        %v941 = vunpack.c.h.b16 %v846
        %v942 = vunpack.c.l.b16 %v847
        %v943 = vunpack.c.h.b16 %v847
        %v944 = vunpack.c.l.b16 %v848
        %v945 = vunpack.c.h.b16 %v848
        %v946 = vunpack.c.l.b16 %v849
        %v947 = vunpack.c.h.b16 %v849
        %v948 = vunpack.c.l.b16 %v850
        %v949 = vunpack.c.h.b16 %v850
        %v950 = vunpack.c.l.b16 %v851
        %v951 = vunpack.c.h.b16 %v851
        %v952 = vunpack.c.l.b16 %v852
        %v953 = vunpack.c.h.b16 %v852
        %v954 = vunpack.c.l.b16 %v853
        %v955 = vunpack.c.h.b16 %v853
        %v956 = vunpack.c.l.b16 %v854
        %v957 = vunpack.c.h.b16 %v854
        %v958 = vunpack.c.l.b16 %v855
        %v959 = vunpack.c.h.b16 %v855
        %v960 = vunpack.c.l.b16 %v856
        %v961 = vunpack.c.h.b16 %v856
        %v962 = vunpack.c.l.b16 %v857
        %v963 = vunpack.c.h.b16 %v857
        %v964 = vunpack.c.l.b16 %v858
        %v965 = vunpack.c.h.b16 %v858
        %v966 = vunpack.c.l.b16 %v859
        %v967 = vunpack.c.h.b16 %v859
        %v968 = vpack.c.b16 %v906, %v904
        %v969 = vpack.c.b16 %v907, %v905
        %v970 = vpack.c.b16 %v910, %v908
        %v971 = vpack.c.b16 %v911, %v909
        %v972 = vpack.c.b16 %v914, %v912
        %v973 = vpack.c.b16 %v915, %v913
        %v974 = vpack.c.b16 %v918, %v916
        %v975 = vpack.c.b16 %v919, %v917
        %v976 = vpack.c.b16 %v922, %v920
        %v977 = vpack.c.b16 %v923, %v921
        %v978 = vpack.c.b16 %v926, %v924
        %v979 = vpack.c.b16 %v927, %v925
        %v980 = vpack.c.b16 %v930, %v928
        %v981 = vpack.c.b16 %v931, %v929
        %v982 = vpack.c.b16 %v934, %v932
        %v983 = vpack.c.b16 %v935, %v933
        %v984 = vpack.c.b16 %v938, %v936
        %v985 = vpack.c.b16 %v939, %v937
        %v986 = vpack.c.b16 %v942, %v940
        %v987 = vpack.c.b16 %v943, %v941
        %v988 = vpack.c.b16 %v946, %v944
        %v989 = vpack.c.b16 %v947, %v945
        %v990 = vpack.c.b16 %v950, %v948
        %v991 = vpack.c.b16 %v951, %v949
        %v992 = vpack.c.b16 %v954, %v952
        %v993 = vpack.c.b16 %v955, %v953
        %v994 = vpack.c.b16 %v958, %v956
        %v995 = vpack.c.b16 %v959, %v957
        %v996 = vpack.c.b16 %v962, %v960
        %v997 = vpack.c.b16 %v963, %v961
        %v998 = vpack.c.b16 %v966, %v964
        %v999 = vpack.c.b16 %v967, %v965
        %1032 = vmatprep.subr.bf16.mxu0 %v969
        %1033 = vmatpush1.bf16.msra.mxu0 %v968
        %1034 = vmatprep.subr.bf16.mxu0 %v971
        %1035 = vmatpush1.bf16.msra.mxu0 %v970
        %1036 = vmatprep.subr.bf16.mxu0 %v973
        %1037 = vmatpush1.bf16.msra.mxu0 %v972
        %1038 = vmatprep.subr.bf16.mxu0 %v975
        %1039 = vmatpush1.bf16.msra.mxu0 %v974
        %1040 = vmatprep.subr.bf16.mxu0 %v977
        %1041 = vmatpush1.bf16.msra.mxu0 %v976
        %1042 = vmatprep.subr.bf16.mxu0 %v979
        %1043 = vmatpush1.bf16.msra.mxu0 %v978
        %1044 = vmatprep.subr.bf16.mxu0 %v981
        %1045 = vmatpush1.bf16.msra.mxu0 %v980
        %1046 = vmatprep.subr.bf16.mxu0 %v983
        %1047 = vmatpush1.bf16.msra.mxu0 %v982
        %1048 = vmatprep.subr.bf16.mxu0 %v985
        %1049 = vmatpush1.bf16.msra.mxu0 %v984
        %1050 = vmatprep.subr.bf16.mxu0 %v987
        %1051 = vmatpush1.bf16.msra.mxu0 %v986
        %1052 = vmatprep.subr.bf16.mxu0 %v989
        %1053 = vmatpush1.bf16.msra.mxu0 %v988
        %1054 = vmatprep.subr.bf16.mxu0 %v991
        %1055 = vmatpush1.bf16.msra.mxu0 %v990
        %1056 = vmatprep.subr.bf16.mxu0 %v993
        %1057 = vmatpush1.bf16.msra.mxu0 %v992
        %1058 = vmatprep.subr.bf16.mxu0 %v995
        %1059 = vmatpush1.bf16.msra.mxu0 %v994
        %1060 = vmatprep.subr.bf16.mxu0 %v997
        %1061 = vmatpush1.bf16.msra.mxu0 %v996
        %1062 = vmatprep.subr.bf16.mxu0 %v999
        %1063 = vmatpush1.bf16.msra.mxu0 %v998
        %1064 = vmatprep.mubr.bf16.mxu0 %v813
        %1065 = vmatmul.mubr.bf16.gmra.mrb[0].mxu0 %v812
        %v1066 = vpop.f32.mrb[0].mxu0
        %v1067 = vadd.f32 %v865, %v1066
        %v1068 = vpop.f32.mrb[0].mxu0
        %v1069 = vadd.f32 %v869, %v1068
        %v1070 = vpop.f32.mrb[0].mxu0
        %v1071 = vadd.f32 %v865, %v1070
        %v1072 = vpop.f32.mrb[0].mxu0
        %v1073 = vadd.f32 %v869, %v1072
        %1074 = vmatprep.mubr.bf16.mxu0 %v815
        %1075 = vmatmul.mubr.bf16.gmra.mrb[0].mxu0 %v814
        %v1076 = vpop.f32.mrb[0].mxu0
        %v1077 = vadd.f32 %v865, %v1076
        %v1078 = vpop.f32.mrb[0].mxu0
        %v1079 = vadd.f32 %v869, %v1078
        %v1080 = vpop.f32.mrb[0].mxu0
        %v1081 = vadd.f32 %v865, %v1080
        %v1082 = vpop.f32.mrb[0].mxu0
        %v1083 = vadd.f32 %v869, %v1082
        %1084 = vmatprep.mubr.bf16.mxu0 %v817
        %1085 = vmatmul.mubr.bf16.gmra.mrb[0].mxu0 %v816
        %v1086 = vpop.f32.mrb[0].mxu0
        %v1087 = vadd.f32 %v865, %v1086
        %v1088 = vpop.f32.mrb[0].mxu0
        %v1089 = vadd.f32 %v869, %v1088
        %v1090 = vpop.f32.mrb[0].mxu0
        %v1091 = vadd.f32 %v865, %v1090
        %v1092 = vpop.f32.mrb[0].mxu0
        %v1093 = vadd.f32 %v869, %v1092
        %1094 = vmatprep.mubr.bf16.mxu0 %v819
        %1095 = vmatmul.mubr.bf16.gmra.mrb[0].mxu0 %v818
        %v1096 = vpop.f32.mrb[0].mxu0
        %v1097 = vadd.f32 %v865, %v1096
        %v1098 = vpop.f32.mrb[0].mxu0
        %v1099 = vadd.f32 %v869, %v1098
        %v1100 = vpop.f32.mrb[0].mxu0
        %v1101 = vadd.f32 %v865, %v1100
        %v1102 = vpop.f32.mrb[0].mxu0
        %v1103 = vadd.f32 %v869, %v1102
        %1104 = vmatprep.mubr.bf16.mxu0 %v821
        %1105 = vmatmul.mubr.bf16.gmra.mrb[0].mxu0 %v820
        %v1106 = vpop.f32.mrb[0].mxu0
        %v1107 = vadd.f32 %v865, %v1106
        %v1108 = vpop.f32.mrb[0].mxu0
        %v1109 = vadd.f32 %v869, %v1108
        %v1110 = vpop.f32.mrb[0].mxu0
        %v1111 = vadd.f32 %v865, %v1110
        %v1112 = vpop.f32.mrb[0].mxu0
        %v1113 = vadd.f32 %v869, %v1112
        %1114 = vmatprep.mubr.bf16.mxu0 %v823
        %1115 = vmatmul.mubr.bf16.gmra.mrb[0].mxu0 %v822
        %v1116 = vpop.f32.mrb[0].mxu0
        %v1117 = vadd.f32 %v865, %v1116
        %v1118 = vpop.f32.mrb[0].mxu0
        %v1119 = vadd.f32 %v869, %v1118
        %v1120 = vpop.f32.mrb[0].mxu0
        %v1121 = vadd.f32 %v865, %v1120
        %v1122 = vpop.f32.mrb[0].mxu0
        %v1123 = vadd.f32 %v869, %v1122
        %1124 = vmatprep.mubr.bf16.mxu0 %v825
        %1125 = vmatmul.mubr.bf16.gmra.mrb[0].mxu0 %v824
        %v1126 = vpop.f32.mrb[0].mxu0
        %v1127 = vadd.f32 %v865, %v1126
        %v1128 = vpop.f32.mrb[0].mxu0
        %v1129 = vadd.f32 %v869, %v1128
        %v1130 = vpop.f32.mrb[0].mxu0
        %v1131 = vadd.f32 %v865, %v1130
        %v1132 = vpop.f32.mrb[0].mxu0
        %v1133 = vadd.f32 %v869, %v1132
        %1134 = vmatprep.mubr.bf16.mxu0 %v827
        %1135 = vmatmul.mubr.bf16.gmra.mrb[0].mxu0 %v826
        %v1136 = vpop.f32.mrb[0].mxu0
        %v1137 = vadd.f32 %v865, %v1136
        %v1138 = vpop.f32.mrb[0].mxu0
        %v1139 = vadd.f32 %v869, %v1138
        %v1140 = vpop.f32.mrb[0].mxu0
        %v1141 = vadd.f32 %v865, %v1140
        %v1142 = vpop.f32.mrb[0].mxu0
        %v1143 = vadd.f32 %v869, %v1142
        %1144 = vdwg.mxu0
        %v1145 = vmax.f32 %v1067, 0.0
        %v1146 = vmax.f32 %v1069, 0.0
        %v1147 = vmax.f32 %v1071, 0.0
        %v1148 = vmax.f32 %v1073, 0.0
        %v1149 = vmax.f32 %v1077, 0.0
        %v1150 = vmax.f32 %v1079, 0.0
        %v1151 = vmax.f32 %v1081, 0.0
        %v1152 = vmax.f32 %v1083, 0.0
        %v1153 = vmax.f32 %v1087, 0.0
        %v1154 = vmax.f32 %v1089, 0.0
        %v1155 = vmax.f32 %v1091, 0.0
        %v1156 = vmax.f32 %v1093, 0.0
        %v1157 = vmax.f32 %v1097, 0.0
        %v1158 = vmax.f32 %v1099, 0.0
        %v1159 = vmax.f32 %v1101, 0.0
        %v1160 = vmax.f32 %v1103, 0.0
        %v1161 = vmax.f32 %v1107, 0.0
        %v1162 = vmax.f32 %v1109, 0.0
        %v1163 = vmax.f32 %v1111, 0.0
        %v1164 = vmax.f32 %v1113, 0.0
        %v1165 = vmax.f32 %v1117, 0.0
        %v1166 = vmax.f32 %v1119, 0.0
        %v1167 = vmax.f32 %v1121, 0.0
        %v1168 = vmax.f32 %v1123, 0.0
        %v1169 = vmax.f32 %v1127, 0.0
        %v1170 = vmax.f32 %v1129, 0.0
        %v1171 = vmax.f32 %v1131, 0.0
        %v1172 = vmax.f32 %v1133, 0.0
        %v1173 = vmax.f32 %v1137, 0.0
        %v1174 = vmax.f32 %v1139, 0.0
        %v1175 = vmax.f32 %v1141, 0.0
        %v1176 = vmax.f32 %v1143, 0.0
        %v1177 = vpack.c.bf16 %v1147, %v1145
        %v1178 = vpack.c.bf16 %v1148, %v1146
        %v1179 = vpack.c.bf16 %v1151, %v1149
        %v1180 = vpack.c.bf16 %v1152, %v1150
        %v1181 = vpack.c.bf16 %v1155, %v1153
        %v1182 = vpack.c.bf16 %v1156, %v1154
        %v1183 = vpack.c.bf16 %v1159, %v1157
        %v1184 = vpack.c.bf16 %v1160, %v1158
        %v1185 = vpack.c.bf16 %v1163, %v1161
        %v1186 = vpack.c.bf16 %v1164, %v1162
        %v1187 = vpack.c.bf16 %v1167, %v1165
        %v1188 = vpack.c.bf16 %v1168, %v1166
        %v1189 = vpack.c.bf16 %v1171, %v1169
        %v1190 = vpack.c.bf16 %v1172, %v1170
        %v1191 = vpack.c.bf16 %v1175, %v1173
        %v1192 = vpack.c.bf16 %v1176, %v1174
        %v1193 = vld [vmem:[#allocation7] sm:$0xff]
        %v1194 = vld [vmem:[#allocation7 + $0x8] sm:$0xff]
        %v1195 = vld [vmem:[#allocation7 + $0x10] sm:$0xff]
        %v1196 = vld [vmem:[#allocation7 + $0x18] sm:$0xff]
        %v1197 = vld [vmem:[#allocation7 + $0x20] sm:$0xff]
        %v1198 = vld [vmem:[#allocation7 + $0x28] sm:$0xff]
        %v1199 = vld [vmem:[#allocation7 + $0x30] sm:$0xff]
        %v1200 = vld [vmem:[#allocation7 + $0x38] sm:$0xff]
        %v1201 = vld [vmem:[#allocation7 + $0x40] sm:$0xff]
        %v1202 = vld [vmem:[#allocation7 + $0x48] sm:$0xff]
        %v1203 = vld [vmem:[#allocation7 + $0x50] sm:$0xff]
        %v1204 = vld [vmem:[#allocation7 + $0x58] sm:$0xff]
        %v1205 = vld [vmem:[#allocation7 + $0x60] sm:$0xff]
        %v1206 = vld [vmem:[#allocation7 + $0x68] sm:$0xff]
        %v1207 = vld [vmem:[#allocation7 + $0x70] sm:$0xff]
        %v1208 = vld [vmem:[#allocation7 + $0x78] sm:$0xff]
        %v1209 = vld [vmem:[#allocation7 + $0x80] sm:$0xff]
        %v1210 = vld [vmem:[#allocation7 + $0x88] sm:$0xff]
        %v1211 = vld [vmem:[#allocation7 + $0x90] sm:$0xff]
        %v1212 = vld [vmem:[#allocation7 + $0x98] sm:$0xff]
        %v1213 = vld [vmem:[#allocation7 + $0xa0] sm:$0xff]
        %v1214 = vld [vmem:[#allocation7 + $0xa8] sm:$0xff]
        %v1215 = vld [vmem:[#allocation7 + $0xb0] sm:$0xff]
        %v1216 = vld [vmem:[#allocation7 + $0xb8] sm:$0xff]
        %v1217 = vld [vmem:[#allocation7 + $0xc0] sm:$0xff]
        %v1218 = vld [vmem:[#allocation7 + $0xc8] sm:$0xff]
        %v1219 = vld [vmem:[#allocation7 + $0xd0] sm:$0xff]
        %v1220 = vld [vmem:[#allocation7 + $0xd8] sm:$0xff]
        %v1221 = vld [vmem:[#allocation7 + $0xe0] sm:$0xff]
        %v1222 = vld [vmem:[#allocation7 + $0xe8] sm:$0xff]
        %v1223 = vld [vmem:[#allocation7 + $0xf0] sm:$0xff]
        %v1224 = vld [vmem:[#allocation7 + $0xf8] sm:$0xff]
        %v1225 = vld [vmem:[%s6] sm:$0x3]
        %v1227 = vlaneseq
        %v1228 = vshrl.u32 %v1227, 7
        %v1229 = vsub.s32 0, %v1228
        %v1230 = vrot.slane %v1225, %v1229
        %v1231 = vlaneseq
        %v1232 = vshrl.u32 %v1231, 7
        %v1233 = vsub.s32 1, %v1232
        %v1234 = vrot.slane %v1225, %v1233
        %v1269 = vunpack.c.l.b16 %v1193
        %v1270 = vunpack.c.h.b16 %v1193
        %v1271 = vunpack.c.l.b16 %v1194
        %v1272 = vunpack.c.h.b16 %v1194
        %v1273 = vunpack.c.l.b16 %v1195
        %v1274 = vunpack.c.h.b16 %v1195
        %v1275 = vunpack.c.l.b16 %v1196
        %v1276 = vunpack.c.h.b16 %v1196
        %v1277 = vunpack.c.l.b16 %v1197
        %v1278 = vunpack.c.h.b16 %v1197
        %v1279 = vunpack.c.l.b16 %v1198
        %v1280 = vunpack.c.h.b16 %v1198
        %v1281 = vunpack.c.l.b16 %v1199
        %v1282 = vunpack.c.h.b16 %v1199
        %v1283 = vunpack.c.l.b16 %v1200
        %v1284 = vunpack.c.h.b16 %v1200
        %v1285 = vunpack.c.l.b16 %v1201
        %v1286 = vunpack.c.h.b16 %v1201
        %v1287 = vunpack.c.l.b16 %v1202
        %v1288 = vunpack.c.h.b16 %v1202
        %v1289 = vunpack.c.l.b16 %v1203
        %v1290 = vunpack.c.h.b16 %v1203
        %v1291 = vunpack.c.l.b16 %v1204
        %v1292 = vunpack.c.h.b16 %v1204
        %v1293 = vunpack.c.l.b16 %v1205
        %v1294 = vunpack.c.h.b16 %v1205
        %v1295 = vunpack.c.l.b16 %v1206
        %v1296 = vunpack.c.h.b16 %v1206
        %v1297 = vunpack.c.l.b16 %v1207
        %v1298 = vunpack.c.h.b16 %v1207
        %v1299 = vunpack.c.l.b16 %v1208
        %v1300 = vunpack.c.h.b16 %v1208
        %v1301 = vunpack.c.l.b16 %v1209
        %v1302 = vunpack.c.h.b16 %v1209
        %v1303 = vunpack.c.l.b16 %v1210
        %v1304 = vunpack.c.h.b16 %v1210
        %v1305 = vunpack.c.l.b16 %v1211
        %v1306 = vunpack.c.h.b16 %v1211
        %v1307 = vunpack.c.l.b16 %v1212
        %v1308 = vunpack.c.h.b16 %v1212
        %v1309 = vunpack.c.l.b16 %v1213
        %v1310 = vunpack.c.h.b16 %v1213
        %v1311 = vunpack.c.l.b16 %v1214
        %v1312 = vunpack.c.h.b16 %v1214
        %v1313 = vunpack.c.l.b16 %v1215
        %v1314 = vunpack.c.h.b16 %v1215
        %v1315 = vunpack.c.l.b16 %v1216
        %v1316 = vunpack.c.h.b16 %v1216
        %v1317 = vunpack.c.l.b16 %v1217
        %v1318 = vunpack.c.h.b16 %v1217
        %v1319 = vunpack.c.l.b16 %v1218
        %v1320 = vunpack.c.h.b16 %v1218
        %v1321 = vunpack.c.l.b16 %v1219
        %v1322 = vunpack.c.h.b16 %v1219
        %v1323 = vunpack.c.l.b16 %v1220
        %v1324 = vunpack.c.h.b16 %v1220
        %v1325 = vunpack.c.l.b16 %v1221
        %v1326 = vunpack.c.h.b16 %v1221
        %v1327 = vunpack.c.l.b16 %v1222
        %v1328 = vunpack.c.h.b16 %v1222
        %v1329 = vunpack.c.l.b16 %v1223
        %v1330 = vunpack.c.h.b16 %v1223
        %v1331 = vunpack.c.l.b16 %v1224
        %v1332 = vunpack.c.h.b16 %v1224
        %v1333 = vpack.c.b16 %v1271, %v1269
        %v1334 = vpack.c.b16 %v1272, %v1270
        %v1335 = vpack.c.b16 %v1275, %v1273
        %v1336 = vpack.c.b16 %v1276, %v1274
        %v1337 = vpack.c.b16 %v1279, %v1277
        %v1338 = vpack.c.b16 %v1280, %v1278
        %v1339 = vpack.c.b16 %v1283, %v1281
        %v1340 = vpack.c.b16 %v1284, %v1282
        %v1341 = vpack.c.b16 %v1287, %v1285
        %v1342 = vpack.c.b16 %v1288, %v1286
        %v1343 = vpack.c.b16 %v1291, %v1289
        %v1344 = vpack.c.b16 %v1292, %v1290
        %v1345 = vpack.c.b16 %v1295, %v1293
        %v1346 = vpack.c.b16 %v1296, %v1294
        %v1347 = vpack.c.b16 %v1299, %v1297
        %v1348 = vpack.c.b16 %v1300, %v1298
        %v1349 = vpack.c.b16 %v1303, %v1301
        %v1350 = vpack.c.b16 %v1304, %v1302
        %v1351 = vpack.c.b16 %v1307, %v1305
        %v1352 = vpack.c.b16 %v1308, %v1306
        %v1353 = vpack.c.b16 %v1311, %v1309
        %v1354 = vpack.c.b16 %v1312, %v1310
        %v1355 = vpack.c.b16 %v1315, %v1313
        %v1356 = vpack.c.b16 %v1316, %v1314
        %v1357 = vpack.c.b16 %v1319, %v1317
        %v1358 = vpack.c.b16 %v1320, %v1318
        %v1359 = vpack.c.b16 %v1323, %v1321
        %v1360 = vpack.c.b16 %v1324, %v1322
        %v1361 = vpack.c.b16 %v1327, %v1325
        %v1362 = vpack.c.b16 %v1328, %v1326
        %v1363 = vpack.c.b16 %v1331, %v1329
        %v1364 = vpack.c.b16 %v1332, %v1330
        %1397 = vmatprep.subr.bf16.mxu0 %v1334
        %1398 = vmatpush1.bf16.msra.mxu0 %v1333
        %1399 = vmatprep.subr.bf16.mxu0 %v1336
        %1400 = vmatpush1.bf16.msra.mxu0 %v1335
        %1401 = vmatprep.subr.bf16.mxu0 %v1338
        %1402 = vmatpush1.bf16.msra.mxu0 %v1337
        %1403 = vmatprep.subr.bf16.mxu0 %v1340
        %1404 = vmatpush1.bf16.msra.mxu0 %v1339
        %1405 = vmatprep.subr.bf16.mxu0 %v1342
        %1406 = vmatpush1.bf16.msra.mxu0 %v1341
        %1407 = vmatprep.subr.bf16.mxu0 %v1344
        %1408 = vmatpush1.bf16.msra.mxu0 %v1343
        %1409 = vmatprep.subr.bf16.mxu0 %v1346
        %1410 = vmatpush1.bf16.msra.mxu0 %v1345
        %1411 = vmatprep.subr.bf16.mxu0 %v1348
        %1412 = vmatpush1.bf16.msra.mxu0 %v1347
        %1413 = vmatprep.subr.bf16.mxu0 %v1350
        %1414 = vmatpush1.bf16.msra.mxu0 %v1349
        %1415 = vmatprep.subr.bf16.mxu0 %v1352
        %1416 = vmatpush1.bf16.msra.mxu0 %v1351
        %1417 = vmatprep.subr.bf16.mxu0 %v1354
        %1418 = vmatpush1.bf16.msra.mxu0 %v1353
        %1419 = vmatprep.subr.bf16.mxu0 %v1356
        %1420 = vmatpush1.bf16.msra.mxu0 %v1355
        %1421 = vmatprep.subr.bf16.mxu0 %v1358
        %1422 = vmatpush1.bf16.msra.mxu0 %v1357
        %1423 = vmatprep.subr.bf16.mxu0 %v1360
        %1424 = vmatpush1.bf16.msra.mxu0 %v1359
        %1425 = vmatprep.subr.bf16.mxu0 %v1362
        %1426 = vmatpush1.bf16.msra.mxu0 %v1361
        %1427 = vmatprep.subr.bf16.mxu0 %v1364
        %1428 = vmatpush1.bf16.msra.mxu0 %v1363
        %1429 = vmatprep.mubr.bf16.mxu0 %v1178
        %1430 = vmatmul.mubr.bf16.gmra.mrb[0].mxu0 %v1177
        %v1431 = vpop.f32.mrb[0].mxu0
        %v1432 = vadd.f32 %v1230, %v1431
        %v1433 = vpop.f32.mrb[0].mxu0
        %v1434 = vadd.f32 %v1234, %v1433
        %v1435 = vpop.f32.mrb[0].mxu0
        %v1436 = vadd.f32 %v1230, %v1435
        %v1437 = vpop.f32.mrb[0].mxu0
        %v1438 = vadd.f32 %v1234, %v1437
        %1439 = vmatprep.mubr.bf16.mxu0 %v1180
        %1440 = vmatmul.mubr.bf16.gmra.mrb[0].mxu0 %v1179
        %v1441 = vpop.f32.mrb[0].mxu0
        %v1442 = vadd.f32 %v1230, %v1441
        %v1443 = vpop.f32.mrb[0].mxu0
        %v1444 = vadd.f32 %v1234, %v1443
        %v1445 = vpop.f32.mrb[0].mxu0
        %v1446 = vadd.f32 %v1230, %v1445
        %v1447 = vpop.f32.mrb[0].mxu0
        %v1448 = vadd.f32 %v1234, %v1447
        %1449 = vmatprep.mubr.bf16.mxu0 %v1182
        %1450 = vmatmul.mubr.bf16.gmra.mrb[0].mxu0 %v1181
        %v1451 = vpop.f32.mrb[0].mxu0
        %v1452 = vadd.f32 %v1230, %v1451
        %v1453 = vpop.f32.mrb[0].mxu0
        %v1454 = vadd.f32 %v1234, %v1453
        %v1455 = vpop.f32.mrb[0].mxu0
        %v1456 = vadd.f32 %v1230, %v1455
        %v1457 = vpop.f32.mrb[0].mxu0
        %v1458 = vadd.f32 %v1234, %v1457
        %1459 = vmatprep.mubr.bf16.mxu0 %v1184
        %1460 = vmatmul.mubr.bf16.gmra.mrb[0].mxu0 %v1183
        %v1461 = vpop.f32.mrb[0].mxu0
        %v1462 = vadd.f32 %v1230, %v1461
        %v1463 = vpop.f32.mrb[0].mxu0
        %v1464 = vadd.f32 %v1234, %v1463
        %v1465 = vpop.f32.mrb[0].mxu0
        %v1466 = vadd.f32 %v1230, %v1465
        %v1467 = vpop.f32.mrb[0].mxu0
        %v1468 = vadd.f32 %v1234, %v1467
        %1469 = vmatprep.mubr.bf16.mxu0 %v1186
        %1470 = vmatmul.mubr.bf16.gmra.mrb[0].mxu0 %v1185
        %v1471 = vpop.f32.mrb[0].mxu0
        %v1472 = vadd.f32 %v1230, %v1471
        %v1473 = vpop.f32.mrb[0].mxu0
        %v1474 = vadd.f32 %v1234, %v1473
        %v1475 = vpop.f32.mrb[0].mxu0
        %v1476 = vadd.f32 %v1230, %v1475
        %v1477 = vpop.f32.mrb[0].mxu0
        %v1478 = vadd.f32 %v1234, %v1477
        %1479 = vmatprep.mubr.bf16.mxu0 %v1188
        %1480 = vmatmul.mubr.bf16.gmra.mrb[0].mxu0 %v1187
        %v1481 = vpop.f32.mrb[0].mxu0
        %v1482 = vadd.f32 %v1230, %v1481
        %v1483 = vpop.f32.mrb[0].mxu0
        %v1484 = vadd.f32 %v1234, %v1483
        %v1485 = vpop.f32.mrb[0].mxu0
        %v1486 = vadd.f32 %v1230, %v1485
        %v1487 = vpop.f32.mrb[0].mxu0
        %v1488 = vadd.f32 %v1234, %v1487
        %1489 = vmatprep.mubr.bf16.mxu0 %v1190
        %1490 = vmatmul.mubr.bf16.gmra.mrb[0].mxu0 %v1189
        %v1491 = vpop.f32.mrb[0].mxu0
        %v1492 = vadd.f32 %v1230, %v1491
        %v1493 = vpop.f32.mrb[0].mxu0
        %v1494 = vadd.f32 %v1234, %v1493
        %v1495 = vpop.f32.mrb[0].mxu0
        %v1496 = vadd.f32 %v1230, %v1495
        %v1497 = vpop.f32.mrb[0].mxu0
        %v1498 = vadd.f32 %v1234, %v1497
        %1499 = vmatprep.mubr.bf16.mxu0 %v1192
        %1500 = vmatmul.mubr.bf16.gmra.mrb[0].mxu0 %v1191
        %v1501 = vpop.f32.mrb[0].mxu0
        %v1502 = vadd.f32 %v1230, %v1501
        %v1503 = vpop.f32.mrb[0].mxu0
        %v1504 = vadd.f32 %v1234, %v1503
        %v1505 = vpop.f32.mrb[0].mxu0
        %v1506 = vadd.f32 %v1230, %v1505
        %v1507 = vpop.f32.mrb[0].mxu0
        %v1508 = vadd.f32 %v1234, %v1507
        %1509 = vdwg.mxu0
        %v1510 = vmax.f32 %v1432, 0.0
        %v1511 = vmax.f32 %v1434, 0.0
        %v1512 = vmax.f32 %v1436, 0.0
        %v1513 = vmax.f32 %v1438, 0.0
        %v1514 = vmax.f32 %v1442, 0.0
        %v1515 = vmax.f32 %v1444, 0.0
        %v1516 = vmax.f32 %v1446, 0.0
        %v1517 = vmax.f32 %v1448, 0.0
        %v1518 = vmax.f32 %v1452, 0.0
        %v1519 = vmax.f32 %v1454, 0.0
        %v1520 = vmax.f32 %v1456, 0.0
        %v1521 = vmax.f32 %v1458, 0.0
        %v1522 = vmax.f32 %v1462, 0.0
        %v1523 = vmax.f32 %v1464, 0.0
        %v1524 = vmax.f32 %v1466, 0.0
        %v1525 = vmax.f32 %v1468, 0.0
        %v1526 = vmax.f32 %v1472, 0.0
        %v1527 = vmax.f32 %v1474, 0.0
        %v1528 = vmax.f32 %v1476, 0.0
        %v1529 = vmax.f32 %v1478, 0.0
        %v1530 = vmax.f32 %v1482, 0.0
        %v1531 = vmax.f32 %v1484, 0.0
        %v1532 = vmax.f32 %v1486, 0.0
        %v1533 = vmax.f32 %v1488, 0.0
        %v1534 = vmax.f32 %v1492, 0.0
        %v1535 = vmax.f32 %v1494, 0.0
        %v1536 = vmax.f32 %v1496, 0.0
        %v1537 = vmax.f32 %v1498, 0.0
        %v1538 = vmax.f32 %v1502, 0.0
        %v1539 = vmax.f32 %v1504, 0.0
        %v1540 = vmax.f32 %v1506, 0.0
        %v1541 = vmax.f32 %v1508, 0.0
        %v1542 = vpack.c.bf16 %v1512, %v1510
        %v1543 = vpack.c.bf16 %v1513, %v1511
        %v1544 = vpack.c.bf16 %v1516, %v1514
        %v1545 = vpack.c.bf16 %v1517, %v1515
        %v1546 = vpack.c.bf16 %v1520, %v1518
        %v1547 = vpack.c.bf16 %v1521, %v1519
        %v1548 = vpack.c.bf16 %v1524, %v1522
        %v1549 = vpack.c.bf16 %v1525, %v1523
        %v1550 = vpack.c.bf16 %v1528, %v1526
        %v1551 = vpack.c.bf16 %v1529, %v1527
        %v1552 = vpack.c.bf16 %v1532, %v1530
        %v1553 = vpack.c.bf16 %v1533, %v1531
        %v1554 = vpack.c.bf16 %v1536, %v1534
        %v1555 = vpack.c.bf16 %v1537, %v1535
        %v1556 = vpack.c.bf16 %v1540, %v1538
        %v1557 = vpack.c.bf16 %v1541, %v1539
        %v1558 = vld [vmem:[#allocation9] sm:$0xf]
        %v1559 = vld [vmem:[#allocation9 + $0x4] sm:$0xf]
        %v1560 = vld [vmem:[#allocation9 + $0x8] sm:$0xf]
        %v1561 = vld [vmem:[#allocation9 + $0xc] sm:$0xf]
        %v1562 = vld [vmem:[#allocation9 + $0x10] sm:$0xf]
        %v1563 = vld [vmem:[#allocation9 + $0x14] sm:$0xf]
        %v1564 = vld [vmem:[#allocation9 + $0x18] sm:$0xf]
        %v1565 = vld [vmem:[#allocation9 + $0x1c] sm:$0xf]
        %v1566 = vld [vmem:[#allocation9 + $0x20] sm:$0xf]
        %v1567 = vld [vmem:[#allocation9 + $0x24] sm:$0xf]
        %v1568 = vld [vmem:[#allocation9 + $0x28] sm:$0xf]
        %v1569 = vld [vmem:[#allocation9 + $0x2c] sm:$0xf]
        %v1570 = vld [vmem:[#allocation9 + $0x30] sm:$0xf]
        %v1571 = vld [vmem:[#allocation9 + $0x34] sm:$0xf]
        %v1572 = vld [vmem:[#allocation9 + $0x38] sm:$0xf]
        %v1573 = vld [vmem:[#allocation9 + $0x3c] sm:$0xf]
        %v1574 = vld [vmem:[#allocation9 + $0x40] sm:$0xf]
        %v1575 = vld [vmem:[#allocation9 + $0x44] sm:$0xf]
        %v1576 = vld [vmem:[#allocation9 + $0x48] sm:$0xf]
        %v1577 = vld [vmem:[#allocation9 + $0x4c] sm:$0xf]
        %v1578 = vld [vmem:[#allocation9 + $0x50] sm:$0xf]
        %v1579 = vld [vmem:[#allocation9 + $0x54] sm:$0xf]
        %v1580 = vld [vmem:[#allocation9 + $0x58] sm:$0xf]
        %v1581 = vld [vmem:[#allocation9 + $0x5c] sm:$0xf]
        %v1582 = vld [vmem:[#allocation9 + $0x60] sm:$0xf]
        %v1583 = vld [vmem:[#allocation9 + $0x64] sm:$0xf]
        %v1584 = vld [vmem:[#allocation9 + $0x68] sm:$0xf]
        %v1585 = vld [vmem:[#allocation9 + $0x6c] sm:$0xf]
        %v1586 = vld [vmem:[#allocation9 + $0x70] sm:$0xf]
        %v1587 = vld [vmem:[#allocation9 + $0x74] sm:$0xf]
        %v1588 = vld [vmem:[#allocation9 + $0x78] sm:$0xf]
        %v1589 = vld [vmem:[#allocation9 + $0x7c] sm:$0xf]
        %v1590 = vld [vmem:[%s8] sm:$0x1]
        %v1592 = vlaneseq
        %v1593 = vshrl.u32 %v1592, 7
        %v1594 = vsub.s32 0, %v1593
        %v1595 = vrot.slane %v1590, %v1594
        %v1629 = vunpack.c.l.b16 %v1558
        %v1630 = vunpack.c.l.b16 %v1559
        %v1631 = vunpack.c.l.b16 %v1560
        %v1632 = vunpack.c.l.b16 %v1561
        %v1633 = vunpack.c.l.b16 %v1562
        %v1634 = vunpack.c.l.b16 %v1563
        %v1635 = vunpack.c.l.b16 %v1564
        %v1636 = vunpack.c.l.b16 %v1565
        %v1637 = vunpack.c.l.b16 %v1566
        %v1638 = vunpack.c.l.b16 %v1567
        %v1639 = vunpack.c.l.b16 %v1568
        %v1640 = vunpack.c.l.b16 %v1569
        %v1641 = vunpack.c.l.b16 %v1570
        %v1642 = vunpack.c.l.b16 %v1571
        %v1643 = vunpack.c.l.b16 %v1572
        %v1644 = vunpack.c.l.b16 %v1573
        %v1645 = vunpack.c.l.b16 %v1574
        %v1646 = vunpack.c.l.b16 %v1575
        %v1647 = vunpack.c.l.b16 %v1576
        %v1648 = vunpack.c.l.b16 %v1577
        %v1649 = vunpack.c.l.b16 %v1578
        %v1650 = vunpack.c.l.b16 %v1579
        %v1651 = vunpack.c.l.b16 %v1580
        %v1652 = vunpack.c.l.b16 %v1581
        %v1653 = vunpack.c.l.b16 %v1582
        %v1654 = vunpack.c.l.b16 %v1583
        %v1655 = vunpack.c.l.b16 %v1584
        %v1656 = vunpack.c.l.b16 %v1585
        %v1657 = vunpack.c.l.b16 %v1586
        %v1658 = vunpack.c.l.b16 %v1587
        %v1659 = vunpack.c.l.b16 %v1588
        %v1660 = vunpack.c.l.b16 %v1589
        %v1661 = vpack.c.b16 %v1630, %v1629
        %v1662 = vpack.c.b16 %v1632, %v1631
        %v1663 = vpack.c.b16 %v1634, %v1633
        %v1664 = vpack.c.b16 %v1636, %v1635
        %v1665 = vpack.c.b16 %v1638, %v1637
        %v1666 = vpack.c.b16 %v1640, %v1639
        %v1667 = vpack.c.b16 %v1642, %v1641
        %v1668 = vpack.c.b16 %v1644, %v1643
        %v1669 = vpack.c.b16 %v1646, %v1645
        %v1670 = vpack.c.b16 %v1648, %v1647
        %v1671 = vpack.c.b16 %v1650, %v1649
        %v1672 = vpack.c.b16 %v1652, %v1651
        %v1673 = vpack.c.b16 %v1654, %v1653
        %v1674 = vpack.c.b16 %v1656, %v1655
        %v1675 = vpack.c.b16 %v1658, %v1657
        %v1676 = vpack.c.b16 %v1660, %v1659
        %1693 = vmatprep.subr.bf16.mxu0 0
        %1694 = vmatpush1.bf16.msra.mxu0 %v1661
        %1695 = vmatprep.subr.bf16.mxu0 0
        %1696 = vmatpush1.bf16.msra.mxu0 %v1662
        %1697 = vmatprep.subr.bf16.mxu0 0
        %1698 = vmatpush1.bf16.msra.mxu0 %v1663
        %1699 = vmatprep.subr.bf16.mxu0 0
        %1700 = vmatpush1.bf16.msra.mxu0 %v1664
        %1701 = vmatprep.subr.bf16.mxu0 0
        %1702 = vmatpush1.bf16.msra.mxu0 %v1665
        %1703 = vmatprep.subr.bf16.mxu0 0
        %1704 = vmatpush1.bf16.msra.mxu0 %v1666
        %1705 = vmatprep.subr.bf16.mxu0 0
        %1706 = vmatpush1.bf16.msra.mxu0 %v1667
        %1707 = vmatprep.subr.bf16.mxu0 0
        %1708 = vmatpush1.bf16.msra.mxu0 %v1668
        %1709 = vmatprep.subr.bf16.mxu0 0
        %1710 = vmatpush1.bf16.msra.mxu0 %v1669
        %1711 = vmatprep.subr.bf16.mxu0 0
        %1712 = vmatpush1.bf16.msra.mxu0 %v1670
        %1713 = vmatprep.subr.bf16.mxu0 0
        %1714 = vmatpush1.bf16.msra.mxu0 %v1671
        %1715 = vmatprep.subr.bf16.mxu0 0
        %1716 = vmatpush1.bf16.msra.mxu0 %v1672
        %1717 = vmatprep.subr.bf16.mxu0 0
        %1718 = vmatpush1.bf16.msra.mxu0 %v1673
        %1719 = vmatprep.subr.bf16.mxu0 0
        %1720 = vmatpush1.bf16.msra.mxu0 %v1674
        %1721 = vmatprep.subr.bf16.mxu0 0
        %1722 = vmatpush1.bf16.msra.mxu0 %v1675
        %1723 = vmatprep.subr.bf16.mxu0 0
        %1724 = vmatpush1.bf16.msra.mxu0 %v1676
        %1725 = vmatprep.mubr.bf16.mxu0 %v1543
        %1726 = vmatmul.mubr.bf16.gmra.mrb[0].mxu0 %v1542
        %v1727 = vpop.f32.mrb[0].mxu0
        %v1728 = vadd.f32 %v1595, %v1727
        %v1729 = vpop.f32.mrb[0].mxu0
        %v1730 = vpop.f32.mrb[0].mxu0
        %v1731 = vadd.f32 %v1595, %v1730
        %v1732 = vpop.f32.mrb[0].mxu0
        %1733 = vmatprep.mubr.bf16.mxu0 %v1545
        %1734 = vmatmul.mubr.bf16.gmra.mrb[0].mxu0 %v1544
        %v1735 = vpop.f32.mrb[0].mxu0
        %v1736 = vadd.f32 %v1595, %v1735
        %v1737 = vpop.f32.mrb[0].mxu0
        %v1738 = vpop.f32.mrb[0].mxu0
        %v1739 = vadd.f32 %v1595, %v1738
        %v1740 = vpop.f32.mrb[0].mxu0
        %1741 = vmatprep.mubr.bf16.mxu0 %v1547
        %1742 = vmatmul.mubr.bf16.gmra.mrb[0].mxu0 %v1546
        %v1743 = vpop.f32.mrb[0].mxu0
        %v1744 = vadd.f32 %v1595, %v1743
        %v1745 = vpop.f32.mrb[0].mxu0
        %v1746 = vpop.f32.mrb[0].mxu0
        %v1747 = vadd.f32 %v1595, %v1746
        %v1748 = vpop.f32.mrb[0].mxu0
        %1749 = vmatprep.mubr.bf16.mxu0 %v1549
        %1750 = vmatmul.mubr.bf16.gmra.mrb[0].mxu0 %v1548
        %v1751 = vpop.f32.mrb[0].mxu0
        %v1752 = vadd.f32 %v1595, %v1751
        %v1753 = vpop.f32.mrb[0].mxu0
        %v1754 = vpop.f32.mrb[0].mxu0
        %v1755 = vadd.f32 %v1595, %v1754
        %v1756 = vpop.f32.mrb[0].mxu0
        %1757 = vmatprep.mubr.bf16.mxu0 %v1551
        %1758 = vmatmul.mubr.bf16.gmra.mrb[0].mxu0 %v1550
        %v1759 = vpop.f32.mrb[0].mxu0
        %v1760 = vadd.f32 %v1595, %v1759
        %v1761 = vpop.f32.mrb[0].mxu0
        %v1762 = vpop.f32.mrb[0].mxu0
        %v1763 = vadd.f32 %v1595, %v1762
        %v1764 = vpop.f32.mrb[0].mxu0
        %1765 = vmatprep.mubr.bf16.mxu0 %v1553
        %1766 = vmatmul.mubr.bf16.gmra.mrb[0].mxu0 %v1552
        %v1767 = vpop.f32.mrb[0].mxu0
        %v1768 = vadd.f32 %v1595, %v1767
        %v1769 = vpop.f32.mrb[0].mxu0
        %v1770 = vpop.f32.mrb[0].mxu0
        %v1771 = vadd.f32 %v1595, %v1770
        %v1772 = vpop.f32.mrb[0].mxu0
        %1773 = vmatprep.mubr.bf16.mxu0 %v1555
        %1774 = vmatmul.mubr.bf16.gmra.mrb[0].mxu0 %v1554
        %v1775 = vpop.f32.mrb[0].mxu0
        %v1776 = vadd.f32 %v1595, %v1775
        %v1777 = vpop.f32.mrb[0].mxu0
        %v1778 = vpop.f32.mrb[0].mxu0
        %v1779 = vadd.f32 %v1595, %v1778
        %v1780 = vpop.f32.mrb[0].mxu0
        %1781 = vmatprep.mubr.bf16.mxu0 %v1557
        %1782 = vmatmul.mubr.bf16.gmra.mrb[0].mxu0 %v1556
        %v1783 = vpop.f32.mrb[0].mxu0
        %v1784 = vadd.f32 %v1595, %v1783
        %v1785 = vpop.f32.mrb[0].mxu0
        %v1786 = vpop.f32.mrb[0].mxu0
        %v1787 = vadd.f32 %v1595, %v1786
        %v1788 = vpop.f32.mrb[0].mxu0
        %1789 = vdwg.mxu0
        %v1790 = vlaneseq
        %v1791 = vand.u32 %v1790, 127
        %vm1792 = vcmp.lt.s32.totalorder %v1791, 10
        %v1793 = vsel %vm1792, %v1728, -1e+30
        %v1794 = vsel %vm1792, %v1731, -1e+30
        %v1795 = vsel %vm1792, %v1736, -1e+30
        %v1796 = vsel %vm1792, %v1739, -1e+30
        %v1797 = vsel %vm1792, %v1744, -1e+30
        %v1798 = vsel %vm1792, %v1747, -1e+30
        %v1799 = vsel %vm1792, %v1752, -1e+30
        %v1800 = vsel %vm1792, %v1755, -1e+30
        %v1801 = vsel %vm1792, %v1760, -1e+30
        %v1802 = vsel %vm1792, %v1763, -1e+30
        %v1803 = vsel %vm1792, %v1768, -1e+30
        %v1804 = vsel %vm1792, %v1771, -1e+30
        %v1805 = vsel %vm1792, %v1776, -1e+30
        %v1806 = vsel %vm1792, %v1779, -1e+30
        %v1807 = vsel %vm1792, %v1784, -1e+30
        %v1808 = vsel %vm1792, %v1787, -1e+30
        %1809 = vmax.xlane.f32.xlu0 %v1793
        %v1810 = vpop.xlane.xlu0 %1809
        %1811 = vmax.xlane.f32.xlu0 %v1794
        %v1812 = vpop.xlane.xlu0 %1811
        %1813 = vmax.xlane.f32.xlu0 %v1795
        %v1814 = vpop.xlane.xlu0 %1813
        %1815 = vmax.xlane.f32.xlu0 %v1796
        %v1816 = vpop.xlane.xlu0 %1815
        %1817 = vmax.xlane.f32.xlu0 %v1797
        %v1818 = vpop.xlane.xlu0 %1817
        %1819 = vmax.xlane.f32.xlu0 %v1798
        %v1820 = vpop.xlane.xlu0 %1819
        %1821 = vmax.xlane.f32.xlu0 %v1799
        %v1822 = vpop.xlane.xlu0 %1821
        %1823 = vmax.xlane.f32.xlu0 %v1800
        %v1824 = vpop.xlane.xlu0 %1823
        %1825 = vmax.xlane.f32.xlu0 %v1801
        %v1826 = vpop.xlane.xlu0 %1825
        %1827 = vmax.xlane.f32.xlu0 %v1802
        %v1828 = vpop.xlane.xlu0 %1827
        %1829 = vmax.xlane.f32.xlu0 %v1803
        %v1830 = vpop.xlane.xlu0 %1829
        %1831 = vmax.xlane.f32.xlu0 %v1804
        %v1832 = vpop.xlane.xlu0 %1831
        %1833 = vmax.xlane.f32.xlu0 %v1805
        %v1834 = vpop.xlane.xlu0 %1833
        %1835 = vmax.xlane.f32.xlu0 %v1806
        %v1836 = vpop.xlane.xlu0 %1835
        %1837 = vmax.xlane.f32.xlu0 %v1807
        %v1838 = vpop.xlane.xlu0 %1837
        %1839 = vmax.xlane.f32.xlu0 %v1808
        %v1840 = vpop.xlane.xlu0 %1839
        %v1841 = vsub.f32 %v1793, %v1810
        %v1842 = vsub.f32 %v1794, %v1812
        %v1843 = vsub.f32 %v1795, %v1814
        %v1844 = vsub.f32 %v1796, %v1816
        %v1845 = vsub.f32 %v1797, %v1818
        %v1846 = vsub.f32 %v1798, %v1820
        %v1847 = vsub.f32 %v1799, %v1822
        %v1848 = vsub.f32 %v1800, %v1824
        %v1849 = vsub.f32 %v1801, %v1826
        %v1850 = vsub.f32 %v1802, %v1828
        %v1851 = vsub.f32 %v1803, %v1830
        %v1852 = vsub.f32 %v1804, %v1832
        %v1853 = vsub.f32 %v1805, %v1834
        %v1854 = vsub.f32 %v1806, %v1836
        %v1855 = vsub.f32 %v1807, %v1838
        %v1856 = vsub.f32 %v1808, %v1840
        %v1857 = vmul.f32 %v1841, 1.442695
        %v1858 = vpow.pop %v1857
        %v1859 = vmul.f32 %v1842, 1.442695
        %v1860 = vpow.pop %v1859
        %v1861 = vmul.f32 %v1843, 1.442695
        %v1862 = vpow.pop %v1861
        %v1863 = vmul.f32 %v1844, 1.442695
        %v1864 = vpow.pop %v1863
        %v1865 = vmul.f32 %v1845, 1.442695
        %v1866 = vpow.pop %v1865
        %v1867 = vmul.f32 %v1846, 1.442695
        %v1868 = vpow.pop %v1867
        %v1869 = vmul.f32 %v1847, 1.442695
        %v1870 = vpow.pop %v1869
        %v1871 = vmul.f32 %v1848, 1.442695
        %v1872 = vpow.pop %v1871
        %v1873 = vmul.f32 %v1849, 1.442695
        %v1874 = vpow.pop %v1873
        %v1875 = vmul.f32 %v1850, 1.442695
        %v1876 = vpow.pop %v1875
        %v1877 = vmul.f32 %v1851, 1.442695
        %v1878 = vpow.pop %v1877
        %v1879 = vmul.f32 %v1852, 1.442695
        %v1880 = vpow.pop %v1879
        %v1881 = vmul.f32 %v1853, 1.442695
        %v1882 = vpow.pop %v1881
        %v1883 = vmul.f32 %v1854, 1.442695
        %v1884 = vpow.pop %v1883
        %v1885 = vmul.f32 %v1855, 1.442695
        %v1886 = vpow.pop %v1885
        %v1887 = vmul.f32 %v1856, 1.442695
        %v1888 = vpow.pop %v1887
        %v1889 = vsel %vm1792, %v1858, 0.0
        %v1890 = vsel %vm1792, %v1860, 0.0
        %v1891 = vsel %vm1792, %v1862, 0.0
        %v1892 = vsel %vm1792, %v1864, 0.0
        %v1893 = vsel %vm1792, %v1866, 0.0
        %v1894 = vsel %vm1792, %v1868, 0.0
        %v1895 = vsel %vm1792, %v1870, 0.0
        %v1896 = vsel %vm1792, %v1872, 0.0
        %v1897 = vsel %vm1792, %v1874, 0.0
        %v1898 = vsel %vm1792, %v1876, 0.0
        %v1899 = vsel %vm1792, %v1878, 0.0
        %v1900 = vsel %vm1792, %v1880, 0.0
        %v1901 = vsel %vm1792, %v1882, 0.0
        %v1902 = vsel %vm1792, %v1884, 0.0
        %v1903 = vsel %vm1792, %v1886, 0.0
        %v1904 = vsel %vm1792, %v1888, 0.0
        %1905 = vadd.xlane.f32.xlu0 %v1889
        %v1906 = vpop.xlane.xlu0 %1905
        %1907 = vadd.xlane.f32.xlu0 %v1890
        %v1908 = vpop.xlane.xlu0 %1907
        %1909 = vadd.xlane.f32.xlu0 %v1891
        %v1910 = vpop.xlane.xlu0 %1909
        %1911 = vadd.xlane.f32.xlu0 %v1892
        %v1912 = vpop.xlane.xlu0 %1911
        %1913 = vadd.xlane.f32.xlu0 %v1893
        %v1914 = vpop.xlane.xlu0 %1913
        %1915 = vadd.xlane.f32.xlu0 %v1894
        %v1916 = vpop.xlane.xlu0 %1915
        %1917 = vadd.xlane.f32.xlu0 %v1895
        %v1918 = vpop.xlane.xlu0 %1917
        %1919 = vadd.xlane.f32.xlu0 %v1896
        %v1920 = vpop.xlane.xlu0 %1919
        %1921 = vadd.xlane.f32.xlu0 %v1897
        %v1922 = vpop.xlane.xlu0 %1921
        %1923 = vadd.xlane.f32.xlu0 %v1898
        %v1924 = vpop.xlane.xlu0 %1923
        %1925 = vadd.xlane.f32.xlu0 %v1899
        %v1926 = vpop.xlane.xlu0 %1925
        %1927 = vadd.xlane.f32.xlu0 %v1900
        %v1928 = vpop.xlane.xlu0 %1927
        %1929 = vadd.xlane.f32.xlu0 %v1901
        %v1930 = vpop.xlane.xlu0 %1929
        %1931 = vadd.xlane.f32.xlu0 %v1902
        %v1932 = vpop.xlane.xlu0 %1931
        %1933 = vadd.xlane.f32.xlu0 %v1903
        %v1934 = vpop.xlane.xlu0 %1933
        %1935 = vadd.xlane.f32.xlu0 %v1904
        %v1936 = vpop.xlane.xlu0 %1935
        %v1937 = vrcp.pop %v1906
        %v1938 = vmul.f32 %v1889, %v1937
        %v1939 = vrcp.pop %v1908
        %v1940 = vmul.f32 %v1890, %v1939
        %v1941 = vrcp.pop %v1910
        %v1942 = vmul.f32 %v1891, %v1941
        %v1943 = vrcp.pop %v1912
        %v1944 = vmul.f32 %v1892, %v1943
        %v1945 = vrcp.pop %v1914
        %v1946 = vmul.f32 %v1893, %v1945
        %v1947 = vrcp.pop %v1916
        %v1948 = vmul.f32 %v1894, %v1947
        %v1949 = vrcp.pop %v1918
        %v1950 = vmul.f32 %v1895, %v1949
        %v1951 = vrcp.pop %v1920
        %v1952 = vmul.f32 %v1896, %v1951
        %v1953 = vrcp.pop %v1922
        %v1954 = vmul.f32 %v1897, %v1953
        %v1955 = vrcp.pop %v1924
        %v1956 = vmul.f32 %v1898, %v1955
        %v1957 = vrcp.pop %v1926
        %v1958 = vmul.f32 %v1899, %v1957
        %v1959 = vrcp.pop %v1928
        %v1960 = vmul.f32 %v1900, %v1959
        %v1961 = vrcp.pop %v1930
        %v1962 = vmul.f32 %v1901, %v1961
        %v1963 = vrcp.pop %v1932
        %v1964 = vmul.f32 %v1902, %v1963
        %v1965 = vrcp.pop %v1934
        %v1966 = vmul.f32 %v1903, %v1965
        %v1967 = vrcp.pop %v1936
        %v1968 = vmul.f32 %v1904, %v1967
        %1969 = vst [vmem:[%s412] sm:$0xff] %v1938
        %1970 = vst [vmem:[%s412 + $0x8] sm:$0xff] %v1940
        %1971 = vst [vmem:[%s412 + $0x10] sm:$0xff] %v1942
        %1972 = vst [vmem:[%s412 + $0x18] sm:$0xff] %v1944
        %1973 = vst [vmem:[%s412 + $0x20] sm:$0xff] %v1946
        %1974 = vst [vmem:[%s412 + $0x28] sm:$0xff] %v1948
        %1975 = vst [vmem:[%s412 + $0x30] sm:$0xff] %v1950
        %1976 = vst [vmem:[%s412 + $0x38] sm:$0xff] %v1952
        %1977 = vst [vmem:[%s412 + $0x40] sm:$0xff] %v1954
        %1978 = vst [vmem:[%s412 + $0x48] sm:$0xff] %v1956
        %1979 = vst [vmem:[%s412 + $0x50] sm:$0xff] %v1958
        %1980 = vst [vmem:[%s412 + $0x58] sm:$0xff] %v1960
        %1981 = vst [vmem:[%s412 + $0x60] sm:$0xff] %v1962
        %1982 = vst [vmem:[%s412 + $0x68] sm:$0xff] %v1964
        %1983 = vst [vmem:[%s412 + $0x70] sm:$0xff] %v1966
        %1984 = vst [vmem:[%s412 + $0x78] sm:$0xff] %v1968
        %s1985 = smul.u32 16, %s25
        %p1986 = scmp.lt.s32.totalorder %s1985, 31
        %s1987 = scalar_select %p1986, %s1985, 31
        %s1988 = smul.addr %s1987, 8
        %s1989 = scalar_lea.vmem %s9, %s1988
        // Predicated region
        $region77: #{number_classifier_forward.1} parent=55 // pred_check
          %p1990 = pneg %p237
        $region78: #{number_classifier_forward.1} parent=55 // pred_check_branch
          %1992 = sbr.rel (%p1990) target = $region80
        $region79: #{number_classifier_forward.1} parent=55 // pred_region
          %s1993 = smul.u32 16, %s25
        $region80: #{number_classifier_forward.1} parent=55 // pred_fallthru
          _
      $region56: #{number_classifier_forward.1} parent=5 // pred_fallthru
        _
      %p1994 = scmp.le.s32.totalorder 2, %s20
      // Predicated region
      $region81: #{number_classifier_forward.1} parent=5 // pred_check
        %p1995 = pneg %p1994
      $region82: #{number_classifier_forward.1} parent=5 // pred_check_branch
        %1997 = sbr.rel (%p1995) target = $region84
      $region83: #{number_classifier_forward.1} parent=5 // pred_region
        %s1998 = ssub.s32 %s20, 2
        // Predicated region
        $region85: #{number_classifier_forward.1} parent=83 // pred_check
          %p1999 = pneg %p243
        $region86: #{number_classifier_forward.1} parent=83 // pred_check_branch
          %2001 = sbr.rel (%p1999) target = $region88
        $region87: #{number_classifier_forward.1} parent=83 // pred_region
          %s2002 = smul.u32 16, %s26
          %p2003 = scmp.lt.s32.totalorder %s2002, 31
          %s2004 = scalar_select %p2003, %s2002, 31
          %s2005 = smul.addr %s2004, 8
          %s2006 = scalar_lea.vmem %s9, %s2005
        $region88: #{number_classifier_forward.1} parent=83 // pred_fallthru
          _
      $region84: #{number_classifier_forward.1} parent=5 // pred_fallthru
        _
    $region6: #{number_classifier_forward.1} parent=1 // loop_footer
      %s24 = sadd.s32 1, %s20
    $region7: #{number_classifier_forward.1} parent=1 // loop_footer_branch
      %19 = sbr.rel target = $region3
    $region8: #{number_classifier_forward.1} parent=1 // loop_exit
      _
    %2007 = vsyncpa [#allocation3], 1
    %s2008 = scalar_lea.sflag [#allocation3], 1
    %2009 = vsyncpa %s2008, 1
    %2010 = vsyncpa [#allocation5], 1
    %2011 = vsyncpa [#allocation8], 1

// kernel: number_classifier_forward.1
$region0: #{number_classifier_forward.1}
  #allocation0 [shape = 'u32[]', space=smem, size = 0x4, offset = 0x4, fixed_abs, tag = 'smem constant byte address 0x4 - core index']
  #allocation1 [shape = 'u32[144,128]{1,0:T(1,128)}', space=vmem, size = 0x12000, scoped, tag = 'internal scratch']
  %s0 = inlined_call_operand.hbm [shape: f32[256,256], index: 0, kind: input, shape index: {}]
  %s1 = inlined_call_operand.hbm [shape: bf16[256,256], index: 1, kind: input, shape index: {}]
  %s2 = inlined_call_operand.vmem [shape: f32[1,256], index: 2, kind: input, shape index: {}]
  %s3 = inlined_call_operand.hbm [shape: bf16[256,256], index: 3, kind: input, shape index: {}]
  %s4 = inlined_call_operand.vmem [shape: f32[1,256], index: 4, kind: input, shape index: {}]
  %s5 = inlined_call_operand.hbm [shape: bf16[256,256], index: 5, kind: input, shape index: {}]
  %s6 = inlined_call_operand.vmem [shape: f32[1,256], index: 6, kind: input, shape index: {}]
  %s7 = inlined_call_operand.hbm [shape: bf16[256,128], index: 7, kind: input, shape index: {}]
  %s8 = inlined_call_operand.vmem [shape: f32[1,128], index: 8, kind: input, shape index: {}]
  %s9 = inlined_call_operand.vmem [shape: f32[256,128], index: 9, kind: output, shape index: {}]
  %s10 = sld [smem:[#allocation0]]
  $region89: #{number_classifier_forward.1} parent=0
    _
  %s12 = ssub.s32 1, %s10
  %s13 = scalar_select 0, %s12, %s10
  $region1: #{number_classifier_forward.1} parent=0
    #allocation2 [shape = 'u8[262144]{0}', space=vmem, size = 0x40000, scoped, tag = 'input window, operand 0']
    #allocation3 [shape = 's32[2]{0}', space=sflag, size = 0x8, scoped, tag = 'scoped memory for number_classifier_forward.1']
    #allocation4 [shape = 'u8[131072]{0}', space=vmem, size = 0x20000, scoped, tag = 'input window, operand 1, single buffered']
    #allocation5 [shape = 's32[1]{0}', space=sflag, size = 0x4, scoped, tag = 'scoped memory for number_classifier_forward.1']
    #allocation6 [shape = 'u8[131072]{0}', space=vmem, size = 0x20000, scoped, tag = 'input window, operand 3, single buffered']
    #allocation7 [shape = 'u8[131072]{0}', space=vmem, size = 0x20000, scoped, tag = 'input window, operand 5, single buffered']
    #allocation8 [shape = 's32[1]{0}', space=sflag, size = 0x4, scoped, tag = 'scoped memory for number_classifier_forward.1']
    #allocation9 [shape = 'u8[65536]{0}', space=vmem, size = 0x10000, scoped, tag = 'input window, operand 7, single buffered']
    %14 = vsyncpa [#allocation3], 0
    %s15 = scalar_lea.sflag [#allocation3], 1
    %16 = vsyncpa %s15, 0
    %17 = vsyncpa [#allocation5], 0
    %18 = vsyncpa [#allocation8], 0
    loop: start=0, step=1, limit=4
    $region2: #{number_classifier_forward.1} parent=1 // loop_pre_header
      _
    $region3: #{number_classifier_forward.1} parent=1 // loop_header
      %s20 = sphi 0, %s24
      %p21 = scmp.ge.s32.totalorder %s20, 4
      %s30 = sphi 0, %s32
      %s33 = sphi 0, %s30
      %s34 = sphi 0, %s33
      %s50 = sphi 0, %s34
      %s54 = sphi 0, %s54
      %s56 = sphi 0, %s54
      %s57 = sphi 0, %s56
      %s71 = sphi 0, %s57
      %s75 = sphi 0, %s75
      %s77 = sphi 0, %s75
      %s78 = sphi 0, %s77
      %s92 = sphi 0, %s78
      %s96 = sphi 0, %s96
      %s98 = sphi 0, %s96
      %s99 = sphi 0, %s98
      %s113 = sphi 0, %s99
      %s117 = sphi 0, %s117
      %s119 = sphi 0, %s117
      %s120 = sphi 0, %s119
      %s134 = sphi 0, %s120
      %s138 = sphi 0, %s138
      %s140 = sphi 0, %s138
      %s141 = sphi 0, %s140
      %s155 = sphi 0, %s141
      %s159 = sphi 0, %s159
      %s161 = sphi 0, %s159
      %s162 = sphi 0, %s161
      %s176 = sphi 0, %s162
      %s180 = sphi 0, %s180
      %s182 = sphi 0, %s180
      %s183 = sphi 0, %s182
      %s197 = sphi 0, %s183
      %s201 = sphi 0, %s201
      %s203 = sphi 0, %s201
      %s204 = sphi 0, %s203
      %s218 = sphi 0, %s204
      %s224 = sphi 0, %s226
      %s227 = sphi 0, %s224
      %s228 = sphi 0, %s227
      %s244 = sphi 0, %s228
    $region4: #{number_classifier_forward.1} parent=1 // loop_header_branch
      %23 = sbr.rel (%p21) target = $region8
    $region5: #{number_classifier_forward.1} parent=1 // loop_body
      %s25 = ssub.s32 %s20, 1
      %s26 = ssub.s32 %s20, 2
      %s27 = sadd.s32 %s20, 1
      %s28 = ssub.s32 %s20, %s27
      %p29 = scmp.eq.s32.totalorder %s28, 0
      %s31 = sadd.s32 %s30, 1
      %s32 = scalar_select %p29, %s30, %s31
      %p35 = pneg %p29
      %p36 = scmp.eq.s32.totalorder %s20, 1
      %p37 = por %p35, %p36
      %p38 = scmp.ne.s32.totalorder %s30, %s33
      %p39 = scmp.eq.s32.totalorder %s20, 0
      %p40 = por %p38, %p39
      %p41 = scmp.ne.s32.totalorder %s30, %s33
      %p42 = scmp.eq.s32.totalorder %s25, 1
      %p43 = por %p41, %p42
      %p44 = scmp.ne.s32.totalorder %s33, %s34
      %p45 = scmp.eq.s32.totalorder %s25, 0
      %p46 = por %p44, %p45
      %p47 = scmp.ne.s32.totalorder %s33, %s34
      %p48 = scmp.eq.s32.totalorder %s26, 1
      %p49 = por %p47, %p48
      %p51 = scmp.ne.s32.totalorder %s34, %s50
      %p52 = scmp.eq.s32.totalorder %s26, 0
      %p53 = por %p51, %p52
      %s55 = sadd.s32 %s54, 1
      %p58 = scmp.eq.s32.totalorder %s20, 1
      %p59 = scmp.ne.s32.totalorder %s54, %s56
      %p60 = scmp.eq.s32.totalorder %s20, 0
      %p61 = por %p59, %p60
      %p62 = scmp.ne.s32.totalorder %s54, %s56
      %p63 = scmp.eq.s32.totalorder %s25, 1
      %p64 = por %p62, %p63
      %p65 = scmp.ne.s32.totalorder %s56, %s57
      %p66 = scmp.eq.s32.totalorder %s25, 0
      %p67 = por %p65, %p66
      %p68 = scmp.ne.s32.totalorder %s56, %s57
      %p69 = scmp.eq.s32.totalorder %s26, 1
      %p70 = por %p68, %p69
      %p72 = scmp.ne.s32.totalorder %s57, %s71
      %p73 = scmp.eq.s32.totalorder %s26, 0
      %p74 = por %p72, %p73
      %s76 = sadd.s32 %s75, 1
      %p79 = scmp.eq.s32.totalorder %s20, 1
      %p80 = scmp.ne.s32.totalorder %s75, %s77
      %p81 = scmp.eq.s32.totalorder %s20, 0
      %p82 = por %p80, %p81
      %p83 = scmp.ne.s32.totalorder %s75, %s77
      %p84 = scmp.eq.s32.totalorder %s25, 1
      %p85 = por %p83, %p84
      %p86 = scmp.ne.s32.totalorder %s77, %s78
      %p87 = scmp.eq.s32.totalorder %s25, 0
      %p88 = por %p86, %p87
      %p89 = scmp.ne.s32.totalorder %s77, %s78
      %p90 = scmp.eq.s32.totalorder %s26, 1
      %p91 = por %p89, %p90
      %p93 = scmp.ne.s32.totalorder %s78, %s92
      %p94 = scmp.eq.s32.totalorder %s26, 0
      %p95 = por %p93, %p94
      %s97 = sadd.s32 %s96, 1
      %p100 = scmp.eq.s32.totalorder %s20, 1
      %p101 = scmp.ne.s32.totalorder %s96, %s98
      %p102 = scmp.eq.s32.totalorder %s20, 0
      %p103 = por %p101, %p102
      %p104 = scmp.ne.s32.totalorder %s96, %s98
      %p105 = scmp.eq.s32.totalorder %s25, 1
      %p106 = por %p104, %p105
      %p107 = scmp.ne.s32.totalorder %s98, %s99
      %p108 = scmp.eq.s32.totalorder %s25, 0
      %p109 = por %p107, %p108
      %p110 = scmp.ne.s32.totalorder %s98, %s99
      %p111 = scmp.eq.s32.totalorder %s26, 1
      %p112 = por %p110, %p111
      %p114 = scmp.ne.s32.totalorder %s99, %s113
      %p115 = scmp.eq.s32.totalorder %s26, 0
      %p116 = por %p114, %p115
      %s118 = sadd.s32 %s117, 1
      %p121 = scmp.eq.s32.totalorder %s20, 1
      %p122 = scmp.ne.s32.totalorder %s117, %s119
      %p123 = scmp.eq.s32.totalorder %s20, 0
      %p124 = por %p122, %p123
      %p125 = scmp.ne.s32.totalorder %s117, %s119
      %p126 = scmp.eq.s32.totalorder %s25, 1
      %p127 = por %p125, %p126
      %p128 = scmp.ne.s32.totalorder %s119, %s120
      %p129 = scmp.eq.s32.totalorder %s25, 0
      %p130 = por %p128, %p129
      %p131 = scmp.ne.s32.totalorder %s119, %s120
      %p132 = scmp.eq.s32.totalorder %s26, 1
      %p133 = por %p131, %p132
      %p135 = scmp.ne.s32.totalorder %s120, %s134
      %p136 = scmp.eq.s32.totalorder %s26, 0
      %p137 = por %p135, %p136
      %s139 = sadd.s32 %s138, 1
      %p142 = scmp.eq.s32.totalorder %s20, 1
      %p143 = scmp.ne.s32.totalorder %s138, %s140
      %p144 = scmp.eq.s32.totalorder %s20, 0
      %p145 = por %p143, %p144
      %p146 = scmp.ne.s32.totalorder %s138, %s140
      %p147 = scmp.eq.s32.totalorder %s25, 1
      %p148 = por %p146, %p147
      %p149 = scmp.ne.s32.totalorder %s140, %s141
      %p150 = scmp.eq.s32.totalorder %s25, 0
      %p151 = por %p149, %p150
      %p152 = scmp.ne.s32.totalorder %s140, %s141
      %p153 = scmp.eq.s32.totalorder %s26, 1
      %p154 = por %p152, %p153
      %p156 = scmp.ne.s32.totalorder %s141, %s155
      %p157 = scmp.eq.s32.totalorder %s26, 0
      %p158 = por %p156, %p157
      %s160 = sadd.s32 %s159, 1
      %p163 = scmp.eq.s32.totalorder %s20, 1
      %p164 = scmp.ne.s32.totalorder %s159, %s161
      %p165 = scmp.eq.s32.totalorder %s20, 0
      %p166 = por %p164, %p165
      %p167 = scmp.ne.s32.totalorder %s159, %s161
      %p168 = scmp.eq.s32.totalorder %s25, 1
      %p169 = por %p167, %p168
      %p170 = scmp.ne.s32.totalorder %s161, %s162
      %p171 = scmp.eq.s32.totalorder %s25, 0
      %p172 = por %p170, %p171
      %p173 = scmp.ne.s32.totalorder %s161, %s162
      %p174 = scmp.eq.s32.totalorder %s26, 1
      %p175 = por %p173, %p174
      %p177 = scmp.ne.s32.totalorder %s162, %s176
      %p178 = scmp.eq.s32.totalorder %s26, 0
      %p179 = por %p177, %p178
      %s181 = sadd.s32 %s180, 1
      %p184 = scmp.eq.s32.totalorder %s20, 1
      %p185 = scmp.ne.s32.totalorder %s180, %s182
      %p186 = scmp.eq.s32.totalorder %s20, 0
      %p187 = por %p185, %p186
      %p188 = scmp.ne.s32.totalorder %s180, %s182
      %p189 = scmp.eq.s32.totalorder %s25, 1
      %p190 = por %p188, %p189
      %p191 = scmp.ne.s32.totalorder %s182, %s183
      %p192 = scmp.eq.s32.totalorder %s25, 0
      %p193 = por %p191, %p192
      %p194 = scmp.ne.s32.totalorder %s182, %s183
      %p195 = scmp.eq.s32.totalorder %s26, 1
      %p196 = por %p194, %p195
      %p198 = scmp.ne.s32.totalorder %s183, %s197
      %p199 = scmp.eq.s32.totalorder %s26, 0
      %p200 = por %p198, %p199
      %s202 = sadd.s32 %s201, 1
      %p205 = scmp.eq.s32.totalorder %s20, 1
      %p206 = scmp.ne.s32.totalorder %s201, %s203
      %p207 = scmp.eq.s32.totalorder %s20, 0
      %p208 = por %p206, %p207
      %p209 = scmp.ne.s32.totalorder %s201, %s203
      %p210 = scmp.eq.s32.totalorder %s25, 1
      %p211 = por %p209, %p210
      %p212 = scmp.ne.s32.totalorder %s203, %s204
      %p213 = scmp.eq.s32.totalorder %s25, 0
      %p214 = por %p212, %p213
      %p215 = scmp.ne.s32.totalorder %s203, %s204
      %p216 = scmp.eq.s32.totalorder %s26, 1
      %p217 = por %p215, %p216
      %p219 = scmp.ne.s32.totalorder %s204, %s218
      %p220 = scmp.eq.s32.totalorder %s26, 0
      %p221 = por %p219, %p220
      %s222 = ssub.s32 %s20, %s27
      %p223 = scmp.eq.s32.totalorder %s222, 0
      %s225 = sadd.s32 %s224, 1
      %s226 = scalar_select %p223, %s224, %s225
      %p229 = pneg %p223
      %p230 = scmp.eq.s32.totalorder %s20, 1
      %p231 = por %p229, %p230
      %p232 = scmp.ne.s32.totalorder %s224, %s227
      %p233 = scmp.eq.s32.totalorder %s20, 0
      %p234 = por %p232, %p233
      %p235 = scmp.ne.s32.totalorder %s224, %s227
      %p236 = scmp.eq.s32.totalorder %s25, 1
      %p237 = por %p235, %p236
      %p238 = scmp.ne.s32.totalorder %s227, %s228
      %p239 = scmp.eq.s32.totalorder %s25, 0
      %p240 = por %p238, %p239
      %p241 = scmp.ne.s32.totalorder %s227, %s228
      %p242 = scmp.eq.s32.totalorder %s26, 1
      %p243 = por %p241, %p242
      %p245 = scmp.ne.s32.totalorder %s228, %s244
      %p246 = scmp.eq.s32.totalorder %s26, 0
      %p247 = por %p245, %p246
      %p248 = scmp.le.s32.totalorder 1, %s20
      %p249 = scmp.lt.s32.totalorder %s20, 3
      %p250 = pnand %p248, %p249
      %p251 = pneg %p250
      // Predicated region
      $region9: #{number_classifier_forward.1} parent=5 // pred_check
        _
      $region10: #{number_classifier_forward.1} parent=5 // pred_check_branch
        %253 = sbr.rel (%p250) target = $region12
      $region11: #{number_classifier_forward.1} parent=5 // pred_region
        %s254 = ssub.s32 %s20, 1
        // Predicated region
        $region13: #{number_classifier_forward.1} parent=11 // pred_check
          %p255 = pneg %p67
        $region14: #{number_classifier_forward.1} parent=11 // pred_check_branch
          %257 = sbr.rel (%p255) target = $region16
        $region15: #{number_classifier_forward.1} parent=11 // pred_region
          %s259 = ssub.s32 4096, 4096
          %260 = vsyncadd [#allocation5], %s259
          %s261 = sshll.u32 [#allocation4], 4
          %s262 = int_to_ptr.vmem [resolvable:$true] %s261
          %267 = dma.hbm_to_vmem [thread:$0]  %s1, 4096, %s262, [#allocation5], 128, 128, 8
        $region16: #{number_classifier_forward.1} parent=11 // pred_fallthru
          _
        // Predicated region
        $region17: #{number_classifier_forward.1} parent=11 // pred_check
          %p268 = pneg %p88
        $region18: #{number_classifier_forward.1} parent=11 // pred_check_branch
          %270 = sbr.rel (%p268) target = $region20
        $region19: #{number_classifier_forward.1} parent=11 // pred_region
          _
        $region20: #{number_classifier_forward.1} parent=11 // pred_fallthru
          _
        // Predicated region
        $region21: #{number_classifier_forward.1} parent=11 // pred_check
          %p271 = pneg %p109
        $region22: #{number_classifier_forward.1} parent=11 // pred_check_branch
          %273 = sbr.rel (%p271) target = $region24
        $region23: #{number_classifier_forward.1} parent=11 // pred_region
          %s275 = ssub.s32 4096, 4096
          %276 = vsyncadd [#allocation5], %s275
          %s277 = sshll.u32 [#allocation6], 4
          %s278 = int_to_ptr.vmem [resolvable:$true] %s277
          %283 = dma.hbm_to_vmem [thread:$0]  %s3, 4096, %s278, [#allocation5], 128, 128, 8
        $region24: #{number_classifier_forward.1} parent=11 // pred_fallthru
          _
        // Predicated region
        $region25: #{number_classifier_forward.1} parent=11 // pred_check
          %p284 = pneg %p130
        $region26: #{number_classifier_forward.1} parent=11 // pred_check_branch
          %286 = sbr.rel (%p284) target = $region28
        $region27: #{number_classifier_forward.1} parent=11 // pred_region
          _
        $region28: #{number_classifier_forward.1} parent=11 // pred_fallthru
          _
        // Predicated region
        $region29: #{number_classifier_forward.1} parent=11 // pred_check
          %p287 = pneg %p151
        $region30: #{number_classifier_forward.1} parent=11 // pred_check_branch
          %289 = sbr.rel (%p287) target = $region32
        $region31: #{number_classifier_forward.1} parent=11 // pred_region
          %s291 = ssub.s32 4096, 4096
          %292 = vsyncadd [#allocation8], %s291
          %s293 = sshll.u32 [#allocation7], 4
          %s294 = int_to_ptr.vmem [resolvable:$true] %s293
          %299 = dma.hbm_to_vmem [thread:$0]  %s5, 4096, %s294, [#allocation8], 128, 128, 8
        $region32: #{number_classifier_forward.1} parent=11 // pred_fallthru
          _
        // Predicated region
        $region33: #{number_classifier_forward.1} parent=11 // pred_check
          %p300 = pneg %p172
        $region34: #{number_classifier_forward.1} parent=11 // pred_check_branch
          %302 = sbr.rel (%p300) target = $region36
        $region35: #{number_classifier_forward.1} parent=11 // pred_region
          _
        $region36: #{number_classifier_forward.1} parent=11 // pred_fallthru
          _
        // Predicated region
        $region37: #{number_classifier_forward.1} parent=11 // pred_check
          %p303 = pneg %p193
        $region38: #{number_classifier_forward.1} parent=11 // pred_check_branch
          %305 = sbr.rel (%p303) target = $region40
        $region39: #{number_classifier_forward.1} parent=11 // pred_region
          %s307 = ssub.s32 2048, 2048
          %308 = vsyncadd [#allocation8], %s307
          %s309 = sshll.u32 [#allocation9], 4
          %s310 = int_to_ptr.vmem [resolvable:$true] %s309
          %315 = dma.hbm_to_vmem [thread:$0]  %s7, 2048, %s310, [#allocation8], 64, 64, 4
        $region40: #{number_classifier_forward.1} parent=11 // pred_fallthru
          _
        // Predicated region
        $region41: #{number_classifier_forward.1} parent=11 // pred_check
          %p316 = pneg %p214
        $region42: #{number_classifier_forward.1} parent=11 // pred_check_branch
          %318 = sbr.rel (%p316) target = $region44
        $region43: #{number_classifier_forward.1} parent=11 // pred_region
          _
        $region44: #{number_classifier_forward.1} parent=11 // pred_fallthru
          _
      $region12: #{number_classifier_forward.1} parent=5 // pred_fallthru
        _
      %p319 = scmp.lt.s32.totalorder %s20, 2
      // Predicated region
      $region45: #{number_classifier_forward.1} parent=5 // pred_check
        %p320 = pneg %p319
      $region46: #{number_classifier_forward.1} parent=5 // pred_check_branch
        %322 = sbr.rel (%p320) target = $region48
      $region47: #{number_classifier_forward.1} parent=5 // pred_region
        // Predicated region
        $region49: #{number_classifier_forward.1} parent=47 // pred_check
          %p323 = pneg %p40
        $region50: #{number_classifier_forward.1} parent=47 // pred_check_branch
          %325 = sbr.rel (%p323) target = $region52
        $region51: #{number_classifier_forward.1} parent=47 // pred_region
          %s326 = sand.u32 %s30, 1
          %s327 = scalar_lea.sflag [#allocation3], %s326
          %s328 = sand.u32 %s30, 1
          %s329 = smul.addr %s328, 256
          %s330 = scalar_lea.vmem [#allocation2], %s329
          %s331 = smul.u32 16, %s20
          %s333 = ssub.s32 4096, 4096
          %334 = vsyncadd %s327, %s333
          %s335 = smul.addr %s331, 2
          %s336 = smul.addr %s335, 128
          %s337 = scalar_lea.hbm %s0, %s336
          %s338 = sshll.u32 %s330, 4
          %s339 = int_to_ptr.vmem [resolvable:$true] %s338
          %344 = dma.hbm_to_vmem [thread:$0]  %s337, 4096, %s339, %s327, 256, 256, 16
        $region52: #{number_classifier_forward.1} parent=47 // pred_fallthru
          _
      $region48: #{number_classifier_forward.1} parent=5 // pred_fallthru
        _
      %p345 = scmp.le.s32.totalorder 1, %s20
      %p346 = scmp.lt.s32.totalorder %s20, 3
      %p347 = pnand %p345, %p346
      %p348 = pneg %p347
      // Predicated region
      $region53: #{number_classifier_forward.1} parent=5 // pred_check
        _
      $region54: #{number_classifier_forward.1} parent=5 // pred_check_branch
        %350 = sbr.rel (%p347) target = $region56
      $region55: #{number_classifier_forward.1} parent=5 // pred_region
        %s351 = ssub.s32 %s20, 1
        %s352 = sand.u32 %s33, 1
        %s353 = scalar_lea.sflag [#allocation3], %s352
        %s354 = sand.u32 %s33, 1
        %s355 = smul.addr %s354, 256
        %s356 = scalar_lea.vmem [#allocation2], %s355
        // Predicated region
        $region57: #{number_classifier_forward.1} parent=55 // pred_check
          %p357 = pneg %p46
        $region58: #{number_classifier_forward.1} parent=55 // pred_check_branch
          %359 = sbr.rel (%p357) target = $region60
        $region59: #{number_classifier_forward.1} parent=55 // pred_region
          %360 = dma.done %s353, 4096
        $region60: #{number_classifier_forward.1} parent=55 // pred_fallthru
          _
        // Predicated region
        $region61: #{number_classifier_forward.1} parent=55 // pred_check
          %p361 = pneg %p67
        $region62: #{number_classifier_forward.1} parent=55 // pred_check_branch
          %363 = sbr.rel (%p361) target = $region64
        $region63: #{number_classifier_forward.1} parent=55 // pred_region
          %364 = dma.done [#allocation5], 4096
        $region64: #{number_classifier_forward.1} parent=55 // pred_fallthru
          _
        // Predicated region
        $region65: #{number_classifier_forward.1} parent=55 // pred_check
          %p365 = pneg %p109
        $region66: #{number_classifier_forward.1} parent=55 // pred_check_branch
          %367 = sbr.rel (%p365) target = $region68
        $region67: #{number_classifier_forward.1} parent=55 // pred_region
          %368 = dma.done [#allocation5], 4096
        $region68: #{number_classifier_forward.1} parent=55 // pred_fallthru
          _
        // Predicated region
        $region69: #{number_classifier_forward.1} parent=55 // pred_check
          %p369 = pneg %p151
        $region70: #{number_classifier_forward.1} parent=55 // pred_check_branch
          %371 = sbr.rel (%p369) target = $region72
        $region71: #{number_classifier_forward.1} parent=55 // pred_region
          %372 = dma.done [#allocation8], 4096
        $region72: #{number_classifier_forward.1} parent=55 // pred_fallthru
          _
        // Predicated region
        $region73: #{number_classifier_forward.1} parent=55 // pred_check
          %p373 = pneg %p193
        $region74: #{number_classifier_forward.1} parent=55 // pred_check_branch
          %375 = sbr.rel (%p373) target = $region76
        $region75: #{number_classifier_forward.1} parent=55 // pred_region
          %376 = dma.done [#allocation8], 2048
        $region76: #{number_classifier_forward.1} parent=55 // pred_fallthru
          _
        %s377 = sand.u32 %s33, 1
        %s378 = scalar_lea.sflag [#allocation3], %s377
        %s379 = sand.u32 %s33, 1
        %s380 = smul.addr %s379, 256
        %s381 = scalar_lea.vmem [#allocation2], %s380
        %p382 = pneg %p46
        %p383 = pneg %p43
        %p384 = pneg %p67
        %p385 = pneg %p64
        %p386 = pneg %p88
        %p387 = pneg %p85
        %p388 = pneg %p109
        %p389 = pneg %p106
        %p390 = pneg %p130
        %p391 = pneg %p127
        %p392 = pneg %p151
        %p393 = pneg %p148
        %p394 = pneg %p172
        %p395 = pneg %p169
        %p396 = pneg %p193
        %p397 = pneg %p190
        %p398 = pneg %p214
        %p399 = pneg %p211
        %p400 = pneg %p240
        %p401 = pneg %p237
        %s402 = smul.u32 16, %s25
        %p403 = scmp.lt.s32.totalorder %s402, 31
        %s404 = scalar_select %p403, %s402, 31
        %s405 = smul.addr %s404, 8
        %s406 = scalar_lea.vmem %s9, %s405
        %s407 = smul.u32 16, %s25
        %s408 = smul.u32 16, %s25
        %p409 = scmp.lt.s32.totalorder %s408, 31
        %s410 = scalar_select %p409, %s408, 31
        %s411 = smul.addr %s410, 8
        %s412 = scalar_lea.vmem %s9, %s411
        %s413 = smul.u32 16, %s25
        %v415 = vld [vmem:[%s356] sm:$0xff]
        %v416 = vld [vmem:[%s356 + $0x8] sm:$0xff]
        %v417 = vld [vmem:[%s356 + $0x10] sm:$0xff]
        %v418 = vld [vmem:[%s356 + $0x18] sm:$0xff]
        %v419 = vld [vmem:[%s356 + $0x20] sm:$0xff]
        %v420 = vld [vmem:[%s356 + $0x28] sm:$0xff]
        %v421 = vld [vmem:[%s356 + $0x30] sm:$0xff]
        %v422 = vld [vmem:[%s356 + $0x38] sm:$0xff]
        %v423 = vld [vmem:[%s356 + $0x40] sm:$0xff]
        %v424 = vld [vmem:[%s356 + $0x48] sm:$0xff]
        %v425 = vld [vmem:[%s356 + $0x50] sm:$0xff]
        %v426 = vld [vmem:[%s356 + $0x58] sm:$0xff]
        %v427 = vld [vmem:[%s356 + $0x60] sm:$0xff]
        %v428 = vld [vmem:[%s356 + $0x68] sm:$0xff]
        %v429 = vld [vmem:[%s356 + $0x70] sm:$0xff]
        %v430 = vld [vmem:[%s356 + $0x78] sm:$0xff]
        %v431 = vld [vmem:[%s356 + $0x80] sm:$0xff]
        %v432 = vld [vmem:[%s356 + $0x88] sm:$0xff]
        %v433 = vld [vmem:[%s356 + $0x90] sm:$0xff]
        %v434 = vld [vmem:[%s356 + $0x98] sm:$0xff]
        %v435 = vld [vmem:[%s356 + $0xa0] sm:$0xff]
        %v436 = vld [vmem:[%s356 + $0xa8] sm:$0xff]
        %v437 = vld [vmem:[%s356 + $0xb0] sm:$0xff]
        %v438 = vld [vmem:[%s356 + $0xb8] sm:$0xff]
        %v439 = vld [vmem:[%s356 + $0xc0] sm:$0xff]
        %v440 = vld [vmem:[%s356 + $0xc8] sm:$0xff]
        %v441 = vld [vmem:[%s356 + $0xd0] sm:$0xff]
        %v442 = vld [vmem:[%s356 + $0xd8] sm:$0xff]
        %v443 = vld [vmem:[%s356 + $0xe0] sm:$0xff]
        %v444 = vld [vmem:[%s356 + $0xe8] sm:$0xff]
        %v445 = vld [vmem:[%s356 + $0xf0] sm:$0xff]
        %v446 = vld [vmem:[%s356 + $0xf8] sm:$0xff]
        %v447 = vpack.c.bf16 %v417, %v415
        %v448 = vpack.c.bf16 %v418, %v416
        %v449 = vpack.c.bf16 %v421, %v419
        %v450 = vpack.c.bf16 %v422, %v420
        %v451 = vpack.c.bf16 %v425, %v423
        %v452 = vpack.c.bf16 %v426, %v424
        %v453 = vpack.c.bf16 %v429, %v427
        %v454 = vpack.c.bf16 %v430, %v428
        %v455 = vpack.c.bf16 %v433, %v431
        %v456 = vpack.c.bf16 %v434, %v432
        %v457 = vpack.c.bf16 %v437, %v435
        %v458 = vpack.c.bf16 %v438, %v436
        %v459 = vpack.c.bf16 %v441, %v439
        %v460 = vpack.c.bf16 %v442, %v440
        %v461 = vpack.c.bf16 %v445, %v443
        %v462 = vpack.c.bf16 %v446, %v444
        %v463 = vld [vmem:[#allocation4] sm:$0xff]
        %v464 = vld [vmem:[#allocation4 + $0x8] sm:$0xff]
        %v465 = vld [vmem:[#allocation4 + $0x10] sm:$0xff]
        %v466 = vld [vmem:[#allocation4 + $0x18] sm:$0xff]
        %v467 = vld [vmem:[#allocation4 + $0x20] sm:$0xff]
        %v468 = vld [vmem:[#allocation4 + $0x28] sm:$0xff]
        %v469 = vld [vmem:[#allocation4 + $0x30] sm:$0xff]
        %v470 = vld [vmem:[#allocation4 + $0x38] sm:$0xff]
        %v471 = vld [vmem:[#allocation4 + $0x40] sm:$0xff]
        %v472 = vld [vmem:[#allocation4 + $0x48] sm:$0xff]
        %v473 = vld [vmem:[#allocation4 + $0x50] sm:$0xff]
        %v474 = vld [vmem:[#allocation4 + $0x58] sm:$0xff]
        %v475 = vld [vmem:[#allocation4 + $0x60] sm:$0xff]
        %v476 = vld [vmem:[#allocation4 + $0x68] sm:$0xff]
        %v477 = vld [vmem:[#allocation4 + $0x70] sm:$0xff]
        %v478 = vld [vmem:[#allocation4 + $0x78] sm:$0xff]
        %v479 = vld [vmem:[#allocation4 + $0x80] sm:$0xff]
        %v480 = vld [vmem:[#allocation4 + $0x88] sm:$0xff]
        %v481 = vld [vmem:[#allocation4 + $0x90] sm:$0xff]
        %v482 = vld [vmem:[#allocation4 + $0x98] sm:$0xff]
        %v483 = vld [vmem:[#allocation4 + $0xa0] sm:$0xff]
        %v484 = vld [vmem:[#allocation4 + $0xa8] sm:$0xff]
        %v485 = vld [vmem:[#allocation4 + $0xb0] sm:$0xff]
        %v486 = vld [vmem:[#allocation4 + $0xb8] sm:$0xff]
        %v487 = vld [vmem:[#allocation4 + $0xc0] sm:$0xff]
        %v488 = vld [vmem:[#allocation4 + $0xc8] sm:$0xff]
        %v489 = vld [vmem:[#allocation4 + $0xd0] sm:$0xff]
        %v490 = vld [vmem:[#allocation4 + $0xd8] sm:$0xff]
        %v491 = vld [vmem:[#allocation4 + $0xe0] sm:$0xff]
        %v492 = vld [vmem:[#allocation4 + $0xe8] sm:$0xff]
        %v493 = vld [vmem:[#allocation4 + $0xf0] sm:$0xff]
        %v494 = vld [vmem:[#allocation4 + $0xf8] sm:$0xff]
        %v495 = vld [vmem:[%s2] sm:$0x3]
        %v497 = vlaneseq
        %v498 = vshrl.u32 %v497, 7
        %v499 = vsub.s32 0, %v498
        %v500 = vrot.slane %v495, %v499
        %v501 = vlaneseq
        %v502 = vshrl.u32 %v501, 7
        %v503 = vsub.s32 1, %v502
        %v504 = vrot.slane %v495, %v503
        %v539 = vunpack.c.l.b16 %v463
        %v540 = vunpack.c.h.b16 %v463
        %v541 = vunpack.c.l.b16 %v464
        %v542 = vunpack.c.h.b16 %v464
        %v543 = vunpack.c.l.b16 %v465
        %v544 = vunpack.c.h.b16 %v465
        %v545 = vunpack.c.l.b16 %v466
        %v546 = vunpack.c.h.b16 %v466
        %v547 = vunpack.c.l.b16 %v467
        %v548 = vunpack.c.h.b16 %v467
        %v549 = vunpack.c.l.b16 %v468
        %v550 = vunpack.c.h.b16 %v468
        %v551 = vunpack.c.l.b16 %v469
        %v552 = vunpack.c.h.b16 %v469
        %v553 = vunpack.c.l.b16 %v470
        %v554 = vunpack.c.h.b16 %v470
        %v555 = vunpack.c.l.b16 %v471
        %v556 = vunpack.c.h.b16 %v471
        %v557 = vunpack.c.l.b16 %v472
        %v558 = vunpack.c.h.b16 %v472
        %v559 = vunpack.c.l.b16 %v473
        %v560 = vunpack.c.h.b16 %v473
        %v561 = vunpack.c.l.b16 %v474
        %v562 = vunpack.c.h.b16 %v474
        %v563 = vunpack.c.l.b16 %v475
        %v564 = vunpack.c.h.b16 %v475
        %v565 = vunpack.c.l.b16 %v476
        %v566 = vunpack.c.h.b16 %v476
        %v567 = vunpack.c.l.b16 %v477
        %v568 = vunpack.c.h.b16 %v477
        %v569 = vunpack.c.l.b16 %v478
        %v570 = vunpack.c.h.b16 %v478
        %v571 = vunpack.c.l.b16 %v479
        %v572 = vunpack.c.h.b16 %v479
        %v573 = vunpack.c.l.b16 %v480
        %v574 = vunpack.c.h.b16 %v480
        %v575 = vunpack.c.l.b16 %v481
        %v576 = vunpack.c.h.b16 %v481
        %v577 = vunpack.c.l.b16 %v482
        %v578 = vunpack.c.h.b16 %v482
        %v579 = vunpack.c.l.b16 %v483
        %v580 = vunpack.c.h.b16 %v483
        %v581 = vunpack.c.l.b16 %v484
        %v582 = vunpack.c.h.b16 %v484
        %v583 = vunpack.c.l.b16 %v485
        %v584 = vunpack.c.h.b16 %v485
        %v585 = vunpack.c.l.b16 %v486
        %v586 = vunpack.c.h.b16 %v486
        %v587 = vunpack.c.l.b16 %v487
        %v588 = vunpack.c.h.b16 %v487
        %v589 = vunpack.c.l.b16 %v488
        %v590 = vunpack.c.h.b16 %v488
        %v591 = vunpack.c.l.b16 %v489
        %v592 = vunpack.c.h.b16 %v489
        %v593 = vunpack.c.l.b16 %v490
        %v594 = vunpack.c.h.b16 %v490
        %v595 = vunpack.c.l.b16 %v491
        %v596 = vunpack.c.h.b16 %v491
        %v597 = vunpack.c.l.b16 %v492
        %v598 = vunpack.c.h.b16 %v492
        %v599 = vunpack.c.l.b16 %v493
        %v600 = vunpack.c.h.b16 %v493
        %v601 = vunpack.c.l.b16 %v494
        %v602 = vunpack.c.h.b16 %v494
        %v603 = vpack.c.b16 %v541, %v539
        %v604 = vpack.c.b16 %v542, %v540
        %v605 = vpack.c.b16 %v545, %v543
        %v606 = vpack.c.b16 %v546, %v544
        %v607 = vpack.c.b16 %v549, %v547
        %v608 = vpack.c.b16 %v550, %v548
        %v609 = vpack.c.b16 %v553, %v551
        %v610 = vpack.c.b16 %v554, %v552
        %v611 = vpack.c.b16 %v557, %v555
        %v612 = vpack.c.b16 %v558, %v556
        %v613 = vpack.c.b16 %v561, %v559
        %v614 = vpack.c.b16 %v562, %v560
        %v615 = vpack.c.b16 %v565, %v563
        %v616 = vpack.c.b16 %v566, %v564
        %v617 = vpack.c.b16 %v569, %v567
        %v618 = vpack.c.b16 %v570, %v568
        %v619 = vpack.c.b16 %v573, %v571
        %v620 = vpack.c.b16 %v574, %v572
        %v621 = vpack.c.b16 %v577, %v575
        %v622 = vpack.c.b16 %v578, %v576
        %v623 = vpack.c.b16 %v581, %v579
        %v624 = vpack.c.b16 %v582, %v580
        %v625 = vpack.c.b16 %v585, %v583
        %v626 = vpack.c.b16 %v586, %v584
        %v627 = vpack.c.b16 %v589, %v587
        %v628 = vpack.c.b16 %v590, %v588
        %v629 = vpack.c.b16 %v593, %v591
        %v630 = vpack.c.b16 %v594, %v592
        %v631 = vpack.c.b16 %v597, %v595
        %v632 = vpack.c.b16 %v598, %v596
        %v633 = vpack.c.b16 %v601, %v599
        %v634 = vpack.c.b16 %v602, %v600
        %667 = vmatprep.subr.bf16.mxu0 %v604
        %668 = vmatpush1.bf16.msra.mxu0 %v603
        %669 = vmatprep.subr.bf16.mxu0 %v606
        %670 = vmatpush1.bf16.msra.mxu0 %v605
        %671 = vmatprep.subr.bf16.mxu0 %v608
        %672 = vmatpush1.bf16.msra.mxu0 %v607
        %673 = vmatprep.subr.bf16.mxu0 %v610
        %674 = vmatpush1.bf16.msra.mxu0 %v609
        %675 = vmatprep.subr.bf16.mxu0 %v612
        %676 = vmatpush1.bf16.msra.mxu0 %v611
        %677 = vmatprep.subr.bf16.mxu0 %v614
        %678 = vmatpush1.bf16.msra.mxu0 %v613
        %679 = vmatprep.subr.bf16.mxu0 %v616
        %680 = vmatpush1.bf16.msra.mxu0 %v615
        %681 = vmatprep.subr.bf16.mxu0 %v618
        %682 = vmatpush1.bf16.msra.mxu0 %v617
        %683 = vmatprep.subr.bf16.mxu0 %v620
        %684 = vmatpush1.bf16.msra.mxu0 %v619
        %685 = vmatprep.subr.bf16.mxu0 %v622
        %686 = vmatpush1.bf16.msra.mxu0 %v621
        %687 = vmatprep.subr.bf16.mxu0 %v624
        %688 = vmatpush1.bf16.msra.mxu0 %v623
        %689 = vmatprep.subr.bf16.mxu0 %v626
        %690 = vmatpush1.bf16.msra.mxu0 %v625
        %691 = vmatprep.subr.bf16.mxu0 %v628
        %692 = vmatpush1.bf16.msra.mxu0 %v627
        %693 = vmatprep.subr.bf16.mxu0 %v630
        %694 = vmatpush1.bf16.msra.mxu0 %v629
        %695 = vmatprep.subr.bf16.mxu0 %v632
        %696 = vmatpush1.bf16.msra.mxu0 %v631
        %697 = vmatprep.subr.bf16.mxu0 %v634
        %698 = vmatpush1.bf16.msra.mxu0 %v633
        %699 = vmatprep.mubr.bf16.mxu0 %v448
        %700 = vmatmul.mubr.bf16.gmra.mrb[0].mxu0 %v447
        %v701 = vpop.f32.mrb[0].mxu0
        %v702 = vadd.f32 %v500, %v701
        %v703 = vpop.f32.mrb[0].mxu0
        %v704 = vadd.f32 %v504, %v703
        %v705 = vpop.f32.mrb[0].mxu0
        %v706 = vadd.f32 %v500, %v705
        %v707 = vpop.f32.mrb[0].mxu0
        %v708 = vadd.f32 %v504, %v707
        %709 = vmatprep.mubr.bf16.mxu0 %v450
        %710 = vmatmul.mubr.bf16.gmra.mrb[0].mxu0 %v449
        %v711 = vpop.f32.mrb[0].mxu0
        %v712 = vadd.f32 %v500, %v711
        %v713 = vpop.f32.mrb[0].mxu0
        %v714 = vadd.f32 %v504, %v713
        %v715 = vpop.f32.mrb[0].mxu0
        %v716 = vadd.f32 %v500, %v715
        %v717 = vpop.f32.mrb[0].mxu0
        %v718 = vadd.f32 %v504, %v717
        %719 = vmatprep.mubr.bf16.mxu0 %v452
        %720 = vmatmul.mubr.bf16.gmra.mrb[0].mxu0 %v451
        %v721 = vpop.f32.mrb[0].mxu0
        %v722 = vadd.f32 %v500, %v721
        %v723 = vpop.f32.mrb[0].mxu0
        %v724 = vadd.f32 %v504, %v723
        %v725 = vpop.f32.mrb[0].mxu0
        %v726 = vadd.f32 %v500, %v725
        %v727 = vpop.f32.mrb[0].mxu0
        %v728 = vadd.f32 %v504, %v727
        %729 = vmatprep.mubr.bf16.mxu0 %v454
        %730 = vmatmul.mubr.bf16.gmra.mrb[0].mxu0 %v453
        %v731 = vpop.f32.mrb[0].mxu0
        %v732 = vadd.f32 %v500, %v731
        %v733 = vpop.f32.mrb[0].mxu0
        %v734 = vadd.f32 %v504, %v733
        %v735 = vpop.f32.mrb[0].mxu0
        %v736 = vadd.f32 %v500, %v735
        %v737 = vpop.f32.mrb[0].mxu0
        %v738 = vadd.f32 %v504, %v737
        %739 = vmatprep.mubr.bf16.mxu0 %v456
        %740 = vmatmul.mubr.bf16.gmra.mrb[0].mxu0 %v455
        %v741 = vpop.f32.mrb[0].mxu0
        %v742 = vadd.f32 %v500, %v741
        %v743 = vpop.f32.mrb[0].mxu0
        %v744 = vadd.f32 %v504, %v743
        %v745 = vpop.f32.mrb[0].mxu0
        %v746 = vadd.f32 %v500, %v745
        %v747 = vpop.f32.mrb[0].mxu0
        %v748 = vadd.f32 %v504, %v747
        %749 = vmatprep.mubr.bf16.mxu0 %v458
        %750 = vmatmul.mubr.bf16.gmra.mrb[0].mxu0 %v457
        %v751 = vpop.f32.mrb[0].mxu0
        %v752 = vadd.f32 %v500, %v751
        %v753 = vpop.f32.mrb[0].mxu0
        %v754 = vadd.f32 %v504, %v753
        %v755 = vpop.f32.mrb[0].mxu0
        %v756 = vadd.f32 %v500, %v755
        %v757 = vpop.f32.mrb[0].mxu0
        %v758 = vadd.f32 %v504, %v757
        %759 = vmatprep.mubr.bf16.mxu0 %v460
        %760 = vmatmul.mubr.bf16.gmra.mrb[0].mxu0 %v459
        %v761 = vpop.f32.mrb[0].mxu0
        %v762 = vadd.f32 %v500, %v761
        %v763 = vpop.f32.mrb[0].mxu0
        %v764 = vadd.f32 %v504, %v763
        %v765 = vpop.f32.mrb[0].mxu0
        %v766 = vadd.f32 %v500, %v765
        %v767 = vpop.f32.mrb[0].mxu0
        %v768 = vadd.f32 %v504, %v767
        %769 = vmatprep.mubr.bf16.mxu0 %v462
        %770 = vmatmul.mubr.bf16.gmra.mrb[0].mxu0 %v461
        %v771 = vpop.f32.mrb[0].mxu0
        %v772 = vadd.f32 %v500, %v771
        %v773 = vpop.f32.mrb[0].mxu0
        %v774 = vadd.f32 %v504, %v773
        %v775 = vpop.f32.mrb[0].mxu0
        %v776 = vadd.f32 %v500, %v775
        %v777 = vpop.f32.mrb[0].mxu0
        %v778 = vadd.f32 %v504, %v777
        %779 = vdwg.mxu0
        %v780 = vmax.f32 %v702, 0.0
        %v781 = vmax.f32 %v704, 0.0
        %v782 = vmax.f32 %v706, 0.0
        %v783 = vmax.f32 %v708, 0.0
        %v784 = vmax.f32 %v712, 0.0
        %v785 = vmax.f32 %v714, 0.0
        %v786 = vmax.f32 %v716, 0.0
        %v787 = vmax.f32 %v718, 0.0
        %v788 = vmax.f32 %v722, 0.0
        %v789 = vmax.f32 %v724, 0.0
        %v790 = vmax.f32 %v726, 0.0
        %v791 = vmax.f32 %v728, 0.0
        %v792 = vmax.f32 %v732, 0.0
        %v793 = vmax.f32 %v734, 0.0
        %v794 = vmax.f32 %v736, 0.0
        %v795 = vmax.f32 %v738, 0.0
        %v796 = vmax.f32 %v742, 0.0
        %v797 = vmax.f32 %v744, 0.0
        %v798 = vmax.f32 %v746, 0.0
        %v799 = vmax.f32 %v748, 0.0
        %v800 = vmax.f32 %v752, 0.0
        %v801 = vmax.f32 %v754, 0.0
        %v802 = vmax.f32 %v756, 0.0
        %v803 = vmax.f32 %v758, 0.0
        %v804 = vmax.f32 %v762, 0.0
        %v805 = vmax.f32 %v764, 0.0
        %v806 = vmax.f32 %v766, 0.0
        %v807 = vmax.f32 %v768, 0.0
        %v808 = vmax.f32 %v772, 0.0
        %v809 = vmax.f32 %v774, 0.0
        %v810 = vmax.f32 %v776, 0.0
        %v811 = vmax.f32 %v778, 0.0
        %v812 = vpack.c.bf16 %v782, %v780
        %v813 = vpack.c.bf16 %v783, %v781
        %v814 = vpack.c.bf16 %v786, %v784
        %v815 = vpack.c.bf16 %v787, %v785
        %v816 = vpack.c.bf16 %v790, %v788
        %v817 = vpack.c.bf16 %v791, %v789
        %v818 = vpack.c.bf16 %v794, %v792
        %v819 = vpack.c.bf16 %v795, %v793
        %v820 = vpack.c.bf16 %v798, %v796
        %v821 = vpack.c.bf16 %v799, %v797
        %v822 = vpack.c.bf16 %v802, %v800
        %v823 = vpack.c.bf16 %v803, %v801
        %v824 = vpack.c.bf16 %v806, %v804
        %v825 = vpack.c.bf16 %v807, %v805
        %v826 = vpack.c.bf16 %v810, %v808
        %v827 = vpack.c.bf16 %v811, %v809
        %v828 = vld [vmem:[#allocation6] sm:$0xff]
        %v829 = vld [vmem:[#allocation6 + $0x8] sm:$0xff]
        %v830 = vld [vmem:[#allocation6 + $0x10] sm:$0xff]
        %v831 = vld [vmem:[#allocation6 + $0x18] sm:$0xff]
        %v832 = vld [vmem:[#allocation6 + $0x20] sm:$0xff]
        %v833 = vld [vmem:[#allocation6 + $0x28] sm:$0xff]
        %v834 = vld [vmem:[#allocation6 + $0x30] sm:$0xff]
        %v835 = vld [vmem:[#allocation6 + $0x38] sm:$0xff]
        %v836 = vld [vmem:[#allocation6 + $0x40] sm:$0xff]
        %v837 = vld [vmem:[#allocation6 + $0x48] sm:$0xff]
        %v838 = vld [vmem:[#allocation6 + $0x50] sm:$0xff]
        %v839 = vld [vmem:[#allocation6 + $0x58] sm:$0xff]
        %v840 = vld [vmem:[#allocation6 + $0x60] sm:$0xff]
        %v841 = vld [vmem:[#allocation6 + $0x68] sm:$0xff]
        %v842 = vld [vmem:[#allocation6 + $0x70] sm:$0xff]
        %v843 = vld [vmem:[#allocation6 + $0x78] sm:$0xff]
        %v844 = vld [vmem:[#allocation6 + $0x80] sm:$0xff]
        %v845 = vld [vmem:[#allocation6 + $0x88] sm:$0xff]
        %v846 = vld [vmem:[#allocation6 + $0x90] sm:$0xff]
        %v847 = vld [vmem:[#allocation6 + $0x98] sm:$0xff]
        %v848 = vld [vmem:[#allocation6 + $0xa0] sm:$0xff]
        %v849 = vld [vmem:[#allocation6 + $0xa8] sm:$0xff]
        %v850 = vld [vmem:[#allocation6 + $0xb0] sm:$0xff]
        %v851 = vld [vmem:[#allocation6 + $0xb8] sm:$0xff]
        %v852 = vld [vmem:[#allocation6 + $0xc0] sm:$0xff]
        %v853 = vld [vmem:[#allocation6 + $0xc8] sm:$0xff]
        %v854 = vld [vmem:[#allocation6 + $0xd0] sm:$0xff]
        %v855 = vld [vmem:[#allocation6 + $0xd8] sm:$0xff]
        %v856 = vld [vmem:[#allocation6 + $0xe0] sm:$0xff]
        %v857 = vld [vmem:[#allocation6 + $0xe8] sm:$0xff]
        %v858 = vld [vmem:[#allocation6 + $0xf0] sm:$0xff]
        %v859 = vld [vmem:[#allocation6 + $0xf8] sm:$0xff]
        %v860 = vld [vmem:[%s4] sm:$0x3]
        %v862 = vlaneseq
        %v863 = vshrl.u32 %v862, 7
        %v864 = vsub.s32 0, %v863
        %v865 = vrot.slane %v860, %v864
        %v866 = vlaneseq
        %v867 = vshrl.u32 %v866, 7
        %v868 = vsub.s32 1, %v867
        %v869 = vrot.slane %v860, %v868
        %v904 = vunpack.c.l.b16 %v828
        %v905 = vunpack.c.h.b16 %v828
        %v906 = vunpack.c.l.b16 %v829
        %v907 = vunpack.c.h.b16 %v829
        %v908 = vunpack.c.l.b16 %v830
        %v909 = vunpack.c.h.b16 %v830
        %v910 = vunpack.c.l.b16 %v831
        %v911 = vunpack.c.h.b16 %v831
        %v912 = vunpack.c.l.b16 %v832
        %v913 = vunpack.c.h.b16 %v832
        %v914 = vunpack.c.l.b16 %v833
        %v915 = vunpack.c.h.b16 %v833
        %v916 = vunpack.c.l.b16 %v834
        %v917 = vunpack.c.h.b16 %v834
        %v918 = vunpack.c.l.b16 %v835
        %v919 = vunpack.c.h.b16 %v835
        %v920 = vunpack.c.l.b16 %v836
        %v921 = vunpack.c.h.b16 %v836
        %v922 = vunpack.c.l.b16 %v837
        %v923 = vunpack.c.h.b16 %v837
        %v924 = vunpack.c.l.b16 %v838
        %v925 = vunpack.c.h.b16 %v838
        %v926 = vunpack.c.l.b16 %v839
        %v927 = vunpack.c.h.b16 %v839
        %v928 = vunpack.c.l.b16 %v840
        %v929 = vunpack.c.h.b16 %v840
        %v930 = vunpack.c.l.b16 %v841
        %v931 = vunpack.c.h.b16 %v841
        %v932 = vunpack.c.l.b16 %v842
        %v933 = vunpack.c.h.b16 %v842
        %v934 = vunpack.c.l.b16 %v843
        %v935 = vunpack.c.h.b16 %v843
        %v936 = vunpack.c.l.b16 %v844
        %v937 = vunpack.c.h.b16 %v844
        %v938 = vunpack.c.l.b16 %v845
        %v939 = vunpack.c.h.b16 %v845
        %v940 = vunpack.c.l.b16 %v846
        %v941 = vunpack.c.h.b16 %v846
        %v942 = vunpack.c.l.b16 %v847
        %v943 = vunpack.c.h.b16 %v847
        %v944 = vunpack.c.l.b16 %v848
        %v945 = vunpack.c.h.b16 %v848
        %v946 = vunpack.c.l.b16 %v849
        %v947 = vunpack.c.h.b16 %v849
        %v948 = vunpack.c.l.b16 %v850
        %v949 = vunpack.c.h.b16 %v850
        %v950 = vunpack.c.l.b16 %v851
        %v951 = vunpack.c.h.b16 %v851
        %v952 = vunpack.c.l.b16 %v852
        %v953 = vunpack.c.h.b16 %v852
        %v954 = vunpack.c.l.b16 %v853
        %v955 = vunpack.c.h.b16 %v853
        %v956 = vunpack.c.l.b16 %v854
        %v957 = vunpack.c.h.b16 %v854
        %v958 = vunpack.c.l.b16 %v855
        %v959 = vunpack.c.h.b16 %v855
        %v960 = vunpack.c.l.b16 %v856
        %v961 = vunpack.c.h.b16 %v856
        %v962 = vunpack.c.l.b16 %v857
        %v963 = vunpack.c.h.b16 %v857
        %v964 = vunpack.c.l.b16 %v858
        %v965 = vunpack.c.h.b16 %v858
        %v966 = vunpack.c.l.b16 %v859
        %v967 = vunpack.c.h.b16 %v859
        %v968 = vpack.c.b16 %v906, %v904
        %v969 = vpack.c.b16 %v907, %v905
        %v970 = vpack.c.b16 %v910, %v908
        %v971 = vpack.c.b16 %v911, %v909
        %v972 = vpack.c.b16 %v914, %v912
        %v973 = vpack.c.b16 %v915, %v913
        %v974 = vpack.c.b16 %v918, %v916
        %v975 = vpack.c.b16 %v919, %v917
        %v976 = vpack.c.b16 %v922, %v920
        %v977 = vpack.c.b16 %v923, %v921
        %v978 = vpack.c.b16 %v926, %v924
        %v979 = vpack.c.b16 %v927, %v925
        %v980 = vpack.c.b16 %v930, %v928
        %v981 = vpack.c.b16 %v931, %v929
        %v982 = vpack.c.b16 %v934, %v932
        %v983 = vpack.c.b16 %v935, %v933
        %v984 = vpack.c.b16 %v938, %v936
        %v985 = vpack.c.b16 %v939, %v937
        %v986 = vpack.c.b16 %v942, %v940
        %v987 = vpack.c.b16 %v943, %v941
        %v988 = vpack.c.b16 %v946, %v944
        %v989 = vpack.c.b16 %v947, %v945
        %v990 = vpack.c.b16 %v950, %v948
        %v991 = vpack.c.b16 %v951, %v949
        %v992 = vpack.c.b16 %v954, %v952
        %v993 = vpack.c.b16 %v955, %v953
        %v994 = vpack.c.b16 %v958, %v956
        %v995 = vpack.c.b16 %v959, %v957
        %v996 = vpack.c.b16 %v962, %v960
        %v997 = vpack.c.b16 %v963, %v961
        %v998 = vpack.c.b16 %v966, %v964
        %v999 = vpack.c.b16 %v967, %v965
        %1032 = vmatprep.subr.bf16.mxu0 %v969
        %1033 = vmatpush1.bf16.msra.mxu0 %v968
        %1034 = vmatprep.subr.bf16.mxu0 %v971
        %1035 = vmatpush1.bf16.msra.mxu0 %v970
        %1036 = vmatprep.subr.bf16.mxu0 %v973
        %1037 = vmatpush1.bf16.msra.mxu0 %v972
        %1038 = vmatprep.subr.bf16.mxu0 %v975
        %1039 = vmatpush1.bf16.msra.mxu0 %v974
        %1040 = vmatprep.subr.bf16.mxu0 %v977
        %1041 = vmatpush1.bf16.msra.mxu0 %v976
        %1042 = vmatprep.subr.bf16.mxu0 %v979
        %1043 = vmatpush1.bf16.msra.mxu0 %v978
        %1044 = vmatprep.subr.bf16.mxu0 %v981
        %1045 = vmatpush1.bf16.msra.mxu0 %v980
        %1046 = vmatprep.subr.bf16.mxu0 %v983
        %1047 = vmatpush1.bf16.msra.mxu0 %v982
        %1048 = vmatprep.subr.bf16.mxu0 %v985
        %1049 = vmatpush1.bf16.msra.mxu0 %v984
        %1050 = vmatprep.subr.bf16.mxu0 %v987
        %1051 = vmatpush1.bf16.msra.mxu0 %v986
        %1052 = vmatprep.subr.bf16.mxu0 %v989
        %1053 = vmatpush1.bf16.msra.mxu0 %v988
        %1054 = vmatprep.subr.bf16.mxu0 %v991
        %1055 = vmatpush1.bf16.msra.mxu0 %v990
        %1056 = vmatprep.subr.bf16.mxu0 %v993
        %1057 = vmatpush1.bf16.msra.mxu0 %v992
        %1058 = vmatprep.subr.bf16.mxu0 %v995
        %1059 = vmatpush1.bf16.msra.mxu0 %v994
        %1060 = vmatprep.subr.bf16.mxu0 %v997
        %1061 = vmatpush1.bf16.msra.mxu0 %v996
        %1062 = vmatprep.subr.bf16.mxu0 %v999
        %1063 = vmatpush1.bf16.msra.mxu0 %v998
        %1064 = vmatprep.mubr.bf16.mxu0 %v813
        %1065 = vmatmul.mubr.bf16.gmra.mrb[0].mxu0 %v812
        %v1066 = vpop.f32.mrb[0].mxu0
        %v1067 = vadd.f32 %v865, %v1066
        %v1068 = vpop.f32.mrb[0].mxu0
        %v1069 = vadd.f32 %v869, %v1068
        %v1070 = vpop.f32.mrb[0].mxu0
        %v1071 = vadd.f32 %v865, %v1070
        %v1072 = vpop.f32.mrb[0].mxu0
        %v1073 = vadd.f32 %v869, %v1072
        %1074 = vmatprep.mubr.bf16.mxu0 %v815
        %1075 = vmatmul.mubr.bf16.gmra.mrb[0].mxu0 %v814
        %v1076 = vpop.f32.mrb[0].mxu0
        %v1077 = vadd.f32 %v865, %v1076
        %v1078 = vpop.f32.mrb[0].mxu0
        %v1079 = vadd.f32 %v869, %v1078
        %v1080 = vpop.f32.mrb[0].mxu0
        %v1081 = vadd.f32 %v865, %v1080
        %v1082 = vpop.f32.mrb[0].mxu0
        %v1083 = vadd.f32 %v869, %v1082
        %1084 = vmatprep.mubr.bf16.mxu0 %v817
        %1085 = vmatmul.mubr.bf16.gmra.mrb[0].mxu0 %v816
        %v1086 = vpop.f32.mrb[0].mxu0
        %v1087 = vadd.f32 %v865, %v1086
        %v1088 = vpop.f32.mrb[0].mxu0
        %v1089 = vadd.f32 %v869, %v1088
        %v1090 = vpop.f32.mrb[0].mxu0
        %v1091 = vadd.f32 %v865, %v1090
        %v1092 = vpop.f32.mrb[0].mxu0
        %v1093 = vadd.f32 %v869, %v1092
        %1094 = vmatprep.mubr.bf16.mxu0 %v819
        %1095 = vmatmul.mubr.bf16.gmra.mrb[0].mxu0 %v818
        %v1096 = vpop.f32.mrb[0].mxu0
        %v1097 = vadd.f32 %v865, %v1096
        %v1098 = vpop.f32.mrb[0].mxu0
        %v1099 = vadd.f32 %v869, %v1098
        %v1100 = vpop.f32.mrb[0].mxu0
        %v1101 = vadd.f32 %v865, %v1100
        %v1102 = vpop.f32.mrb[0].mxu0
        %v1103 = vadd.f32 %v869, %v1102
        %1104 = vmatprep.mubr.bf16.mxu0 %v821
        %1105 = vmatmul.mubr.bf16.gmra.mrb[0].mxu0 %v820
        %v1106 = vpop.f32.mrb[0].mxu0
        %v1107 = vadd.f32 %v865, %v1106
        %v1108 = vpop.f32.mrb[0].mxu0
        %v1109 = vadd.f32 %v869, %v1108
        %v1110 = vpop.f32.mrb[0].mxu0
        %v1111 = vadd.f32 %v865, %v1110
        %v1112 = vpop.f32.mrb[0].mxu0
        %v1113 = vadd.f32 %v869, %v1112
        %1114 = vmatprep.mubr.bf16.mxu0 %v823
        %1115 = vmatmul.mubr.bf16.gmra.mrb[0].mxu0 %v822
        %v1116 = vpop.f32.mrb[0].mxu0
        %v1117 = vadd.f32 %v865, %v1116
        %v1118 = vpop.f32.mrb[0].mxu0
        %v1119 = vadd.f32 %v869, %v1118
        %v1120 = vpop.f32.mrb[0].mxu0
        %v1121 = vadd.f32 %v865, %v1120
        %v1122 = vpop.f32.mrb[0].mxu0
        %v1123 = vadd.f32 %v869, %v1122
        %1124 = vmatprep.mubr.bf16.mxu0 %v825
        %1125 = vmatmul.mubr.bf16.gmra.mrb[0].mxu0 %v824
        %v1126 = vpop.f32.mrb[0].mxu0
        %v1127 = vadd.f32 %v865, %v1126
        %v1128 = vpop.f32.mrb[0].mxu0
        %v1129 = vadd.f32 %v869, %v1128
        %v1130 = vpop.f32.mrb[0].mxu0
        %v1131 = vadd.f32 %v865, %v1130
        %v1132 = vpop.f32.mrb[0].mxu0
        %v1133 = vadd.f32 %v869, %v1132
        %1134 = vmatprep.mubr.bf16.mxu0 %v827
        %1135 = vmatmul.mubr.bf16.gmra.mrb[0].mxu0 %v826
        %v1136 = vpop.f32.mrb[0].mxu0
        %v1137 = vadd.f32 %v865, %v1136
        %v1138 = vpop.f32.mrb[0].mxu0
        %v1139 = vadd.f32 %v869, %v1138
        %v1140 = vpop.f32.mrb[0].mxu0
        %v1141 = vadd.f32 %v865, %v1140
        %v1142 = vpop.f32.mrb[0].mxu0
        %v1143 = vadd.f32 %v869, %v1142
        %1144 = vdwg.mxu0
        %v1145 = vmax.f32 %v1067, 0.0
        %v1146 = vmax.f32 %v1069, 0.0
        %v1147 = vmax.f32 %v1071, 0.0
        %v1148 = vmax.f32 %v1073, 0.0
        %v1149 = vmax.f32 %v1077, 0.0
        %v1150 = vmax.f32 %v1079, 0.0
        %v1151 = vmax.f32 %v1081, 0.0
        %v1152 = vmax.f32 %v1083, 0.0
        %v1153 = vmax.f32 %v1087, 0.0
        %v1154 = vmax.f32 %v1089, 0.0
        %v1155 = vmax.f32 %v1091, 0.0
        %v1156 = vmax.f32 %v1093, 0.0
        %v1157 = vmax.f32 %v1097, 0.0
        %v1158 = vmax.f32 %v1099, 0.0
        %v1159 = vmax.f32 %v1101, 0.0
        %v1160 = vmax.f32 %v1103, 0.0
        %v1161 = vmax.f32 %v1107, 0.0
        %v1162 = vmax.f32 %v1109, 0.0
        %v1163 = vmax.f32 %v1111, 0.0
        %v1164 = vmax.f32 %v1113, 0.0
        %v1165 = vmax.f32 %v1117, 0.0
        %v1166 = vmax.f32 %v1119, 0.0
        %v1167 = vmax.f32 %v1121, 0.0
        %v1168 = vmax.f32 %v1123, 0.0
        %v1169 = vmax.f32 %v1127, 0.0
        %v1170 = vmax.f32 %v1129, 0.0
        %v1171 = vmax.f32 %v1131, 0.0
        %v1172 = vmax.f32 %v1133, 0.0
        %v1173 = vmax.f32 %v1137, 0.0
        %v1174 = vmax.f32 %v1139, 0.0
        %v1175 = vmax.f32 %v1141, 0.0
        %v1176 = vmax.f32 %v1143, 0.0
        %v1177 = vpack.c.bf16 %v1147, %v1145
        %v1178 = vpack.c.bf16 %v1148, %v1146
        %v1179 = vpack.c.bf16 %v1151, %v1149
        %v1180 = vpack.c.bf16 %v1152, %v1150
        %v1181 = vpack.c.bf16 %v1155, %v1153
        %v1182 = vpack.c.bf16 %v1156, %v1154
        %v1183 = vpack.c.bf16 %v1159, %v1157
        %v1184 = vpack.c.bf16 %v1160, %v1158
        %v1185 = vpack.c.bf16 %v1163, %v1161
        %v1186 = vpack.c.bf16 %v1164, %v1162
        %v1187 = vpack.c.bf16 %v1167, %v1165
        %v1188 = vpack.c.bf16 %v1168, %v1166
        %v1189 = vpack.c.bf16 %v1171, %v1169
        %v1190 = vpack.c.bf16 %v1172, %v1170
        %v1191 = vpack.c.bf16 %v1175, %v1173
        %v1192 = vpack.c.bf16 %v1176, %v1174
        %v1193 = vld [vmem:[#allocation7] sm:$0xff]
        %v1194 = vld [vmem:[#allocation7 + $0x8] sm:$0xff]
        %v1195 = vld [vmem:[#allocation7 + $0x10] sm:$0xff]
        %v1196 = vld [vmem:[#allocation7 + $0x18] sm:$0xff]
        %v1197 = vld [vmem:[#allocation7 + $0x20] sm:$0xff]
        %v1198 = vld [vmem:[#allocation7 + $0x28] sm:$0xff]
        %v1199 = vld [vmem:[#allocation7 + $0x30] sm:$0xff]
        %v1200 = vld [vmem:[#allocation7 + $0x38] sm:$0xff]
        %v1201 = vld [vmem:[#allocation7 + $0x40] sm:$0xff]
        %v1202 = vld [vmem:[#allocation7 + $0x48] sm:$0xff]
        %v1203 = vld [vmem:[#allocation7 + $0x50] sm:$0xff]
        %v1204 = vld [vmem:[#allocation7 + $0x58] sm:$0xff]
        %v1205 = vld [vmem:[#allocation7 + $0x60] sm:$0xff]
        %v1206 = vld [vmem:[#allocation7 + $0x68] sm:$0xff]
        %v1207 = vld [vmem:[#allocation7 + $0x70] sm:$0xff]
        %v1208 = vld [vmem:[#allocation7 + $0x78] sm:$0xff]
        %v1209 = vld [vmem:[#allocation7 + $0x80] sm:$0xff]
        %v1210 = vld [vmem:[#allocation7 + $0x88] sm:$0xff]
        %v1211 = vld [vmem:[#allocation7 + $0x90] sm:$0xff]
        %v1212 = vld [vmem:[#allocation7 + $0x98] sm:$0xff]
        %v1213 = vld [vmem:[#allocation7 + $0xa0] sm:$0xff]
        %v1214 = vld [vmem:[#allocation7 + $0xa8] sm:$0xff]
        %v1215 = vld [vmem:[#allocation7 + $0xb0] sm:$0xff]
        %v1216 = vld [vmem:[#allocation7 + $0xb8] sm:$0xff]
        %v1217 = vld [vmem:[#allocation7 + $0xc0] sm:$0xff]
        %v1218 = vld [vmem:[#allocation7 + $0xc8] sm:$0xff]
        %v1219 = vld [vmem:[#allocation7 + $0xd0] sm:$0xff]
        %v1220 = vld [vmem:[#allocation7 + $0xd8] sm:$0xff]
        %v1221 = vld [vmem:[#allocation7 + $0xe0] sm:$0xff]
        %v1222 = vld [vmem:[#allocation7 + $0xe8] sm:$0xff]
        %v1223 = vld [vmem:[#allocation7 + $0xf0] sm:$0xff]
        %v1224 = vld [vmem:[#allocation7 + $0xf8] sm:$0xff]
        %v1225 = vld [vmem:[%s6] sm:$0x3]
        %v1227 = vlaneseq
        %v1228 = vshrl.u32 %v1227, 7
        %v1229 = vsub.s32 0, %v1228
        %v1230 = vrot.slane %v1225, %v1229
        %v1231 = vlaneseq
        %v1232 = vshrl.u32 %v1231, 7
        %v1233 = vsub.s32 1, %v1232
        %v1234 = vrot.slane %v1225, %v1233
        %v1269 = vunpack.c.l.b16 %v1193
        %v1270 = vunpack.c.h.b16 %v1193
        %v1271 = vunpack.c.l.b16 %v1194
        %v1272 = vunpack.c.h.b16 %v1194
        %v1273 = vunpack.c.l.b16 %v1195
        %v1274 = vunpack.c.h.b16 %v1195
        %v1275 = vunpack.c.l.b16 %v1196
        %v1276 = vunpack.c.h.b16 %v1196
        %v1277 = vunpack.c.l.b16 %v1197
        %v1278 = vunpack.c.h.b16 %v1197
        %v1279 = vunpack.c.l.b16 %v1198
        %v1280 = vunpack.c.h.b16 %v1198
        %v1281 = vunpack.c.l.b16 %v1199
        %v1282 = vunpack.c.h.b16 %v1199
        %v1283 = vunpack.c.l.b16 %v1200
        %v1284 = vunpack.c.h.b16 %v1200
        %v1285 = vunpack.c.l.b16 %v1201
        %v1286 = vunpack.c.h.b16 %v1201
        %v1287 = vunpack.c.l.b16 %v1202
        %v1288 = vunpack.c.h.b16 %v1202
        %v1289 = vunpack.c.l.b16 %v1203
        %v1290 = vunpack.c.h.b16 %v1203
        %v1291 = vunpack.c.l.b16 %v1204
        %v1292 = vunpack.c.h.b16 %v1204
        %v1293 = vunpack.c.l.b16 %v1205
        %v1294 = vunpack.c.h.b16 %v1205
        %v1295 = vunpack.c.l.b16 %v1206
        %v1296 = vunpack.c.h.b16 %v1206
        %v1297 = vunpack.c.l.b16 %v1207
        %v1298 = vunpack.c.h.b16 %v1207
        %v1299 = vunpack.c.l.b16 %v1208
        %v1300 = vunpack.c.h.b16 %v1208
        %v1301 = vunpack.c.l.b16 %v1209
        %v1302 = vunpack.c.h.b16 %v1209
        %v1303 = vunpack.c.l.b16 %v1210
        %v1304 = vunpack.c.h.b16 %v1210
        %v1305 = vunpack.c.l.b16 %v1211
        %v1306 = vunpack.c.h.b16 %v1211
        %v1307 = vunpack.c.l.b16 %v1212
        %v1308 = vunpack.c.h.b16 %v1212
        %v1309 = vunpack.c.l.b16 %v1213
        %v1310 = vunpack.c.h.b16 %v1213
        %v1311 = vunpack.c.l.b16 %v1214
        %v1312 = vunpack.c.h.b16 %v1214
        %v1313 = vunpack.c.l.b16 %v1215
        %v1314 = vunpack.c.h.b16 %v1215
        %v1315 = vunpack.c.l.b16 %v1216
        %v1316 = vunpack.c.h.b16 %v1216
        %v1317 = vunpack.c.l.b16 %v1217
        %v1318 = vunpack.c.h.b16 %v1217
        %v1319 = vunpack.c.l.b16 %v1218
        %v1320 = vunpack.c.h.b16 %v1218
        %v1321 = vunpack.c.l.b16 %v1219
        %v1322 = vunpack.c.h.b16 %v1219
        %v1323 = vunpack.c.l.b16 %v1220
        %v1324 = vunpack.c.h.b16 %v1220
        %v1325 = vunpack.c.l.b16 %v1221
        %v1326 = vunpack.c.h.b16 %v1221
        %v1327 = vunpack.c.l.b16 %v1222
        %v1328 = vunpack.c.h.b16 %v1222
        %v1329 = vunpack.c.l.b16 %v1223
        %v1330 = vunpack.c.h.b16 %v1223
        %v1331 = vunpack.c.l.b16 %v1224
        %v1332 = vunpack.c.h.b16 %v1224
        %v1333 = vpack.c.b16 %v1271, %v1269
        %v1334 = vpack.c.b16 %v1272, %v1270
        %v1335 = vpack.c.b16 %v1275, %v1273
        %v1336 = vpack.c.b16 %v1276, %v1274
        %v1337 = vpack.c.b16 %v1279, %v1277
        %v1338 = vpack.c.b16 %v1280, %v1278
        %v1339 = vpack.c.b16 %v1283, %v1281
        %v1340 = vpack.c.b16 %v1284, %v1282
        %v1341 = vpack.c.b16 %v1287, %v1285
        %v1342 = vpack.c.b16 %v1288, %v1286
        %v1343 = vpack.c.b16 %v1291, %v1289
        %v1344 = vpack.c.b16 %v1292, %v1290
        %v1345 = vpack.c.b16 %v1295, %v1293
        %v1346 = vpack.c.b16 %v1296, %v1294
        %v1347 = vpack.c.b16 %v1299, %v1297
        %v1348 = vpack.c.b16 %v1300, %v1298
        %v1349 = vpack.c.b16 %v1303, %v1301
        %v1350 = vpack.c.b16 %v1304, %v1302
        %v1351 = vpack.c.b16 %v1307, %v1305
        %v1352 = vpack.c.b16 %v1308, %v1306
        %v1353 = vpack.c.b16 %v1311, %v1309
        %v1354 = vpack.c.b16 %v1312, %v1310
        %v1355 = vpack.c.b16 %v1315, %v1313
        %v1356 = vpack.c.b16 %v1316, %v1314
        %v1357 = vpack.c.b16 %v1319, %v1317
        %v1358 = vpack.c.b16 %v1320, %v1318
        %v1359 = vpack.c.b16 %v1323, %v1321
        %v1360 = vpack.c.b16 %v1324, %v1322
        %v1361 = vpack.c.b16 %v1327, %v1325
        %v1362 = vpack.c.b16 %v1328, %v1326
        %v1363 = vpack.c.b16 %v1331, %v1329
        %v1364 = vpack.c.b16 %v1332, %v1330
        %1397 = vmatprep.subr.bf16.mxu0 %v1334
        %1398 = vmatpush1.bf16.msra.mxu0 %v1333
        %1399 = vmatprep.subr.bf16.mxu0 %v1336
        %1400 = vmatpush1.bf16.msra.mxu0 %v1335
        %1401 = vmatprep.subr.bf16.mxu0 %v1338
        %1402 = vmatpush1.bf16.msra.mxu0 %v1337
        %1403 = vmatprep.subr.bf16.mxu0 %v1340
        %1404 = vmatpush1.bf16.msra.mxu0 %v1339
        %1405 = vmatprep.subr.bf16.mxu0 %v1342
        %1406 = vmatpush1.bf16.msra.mxu0 %v1341
        %1407 = vmatprep.subr.bf16.mxu0 %v1344
        %1408 = vmatpush1.bf16.msra.mxu0 %v1343
        %1409 = vmatprep.subr.bf16.mxu0 %v1346
        %1410 = vmatpush1.bf16.msra.mxu0 %v1345
        %1411 = vmatprep.subr.bf16.mxu0 %v1348
        %1412 = vmatpush1.bf16.msra.mxu0 %v1347
        %1413 = vmatprep.subr.bf16.mxu0 %v1350
        %1414 = vmatpush1.bf16.msra.mxu0 %v1349
        %1415 = vmatprep.subr.bf16.mxu0 %v1352
        %1416 = vmatpush1.bf16.msra.mxu0 %v1351
        %1417 = vmatprep.subr.bf16.mxu0 %v1354
        %1418 = vmatpush1.bf16.msra.mxu0 %v1353
        %1419 = vmatprep.subr.bf16.mxu0 %v1356
        %1420 = vmatpush1.bf16.msra.mxu0 %v1355
        %1421 = vmatprep.subr.bf16.mxu0 %v1358
        %1422 = vmatpush1.bf16.msra.mxu0 %v1357
        %1423 = vmatprep.subr.bf16.mxu0 %v1360
        %1424 = vmatpush1.bf16.msra.mxu0 %v1359
        %1425 = vmatprep.subr.bf16.mxu0 %v1362
        %1426 = vmatpush1.bf16.msra.mxu0 %v1361
        %1427 = vmatprep.subr.bf16.mxu0 %v1364
        %1428 = vmatpush1.bf16.msra.mxu0 %v1363
        %1429 = vmatprep.mubr.bf16.mxu0 %v1178
        %1430 = vmatmul.mubr.bf16.gmra.mrb[0].mxu0 %v1177
        %v1431 = vpop.f32.mrb[0].mxu0
        %v1432 = vadd.f32 %v1230, %v1431
        %v1433 = vpop.f32.mrb[0].mxu0
        %v1434 = vadd.f32 %v1234, %v1433
        %v1435 = vpop.f32.mrb[0].mxu0
        %v1436 = vadd.f32 %v1230, %v1435
        %v1437 = vpop.f32.mrb[0].mxu0
        %v1438 = vadd.f32 %v1234, %v1437
        %1439 = vmatprep.mubr.bf16.mxu0 %v1180
        %1440 = vmatmul.mubr.bf16.gmra.mrb[0].mxu0 %v1179
        %v1441 = vpop.f32.mrb[0].mxu0
        %v1442 = vadd.f32 %v1230, %v1441
        %v1443 = vpop.f32.mrb[0].mxu0
        %v1444 = vadd.f32 %v1234, %v1443
        %v1445 = vpop.f32.mrb[0].mxu0
        %v1446 = vadd.f32 %v1230, %v1445
        %v1447 = vpop.f32.mrb[0].mxu0
        %v1448 = vadd.f32 %v1234, %v1447
        %1449 = vmatprep.mubr.bf16.mxu0 %v1182
        %1450 = vmatmul.mubr.bf16.gmra.mrb[0].mxu0 %v1181
        %v1451 = vpop.f32.mrb[0].mxu0
        %v1452 = vadd.f32 %v1230, %v1451
        %v1453 = vpop.f32.mrb[0].mxu0
        %v1454 = vadd.f32 %v1234, %v1453
        %v1455 = vpop.f32.mrb[0].mxu0
        %v1456 = vadd.f32 %v1230, %v1455
        %v1457 = vpop.f32.mrb[0].mxu0
        %v1458 = vadd.f32 %v1234, %v1457
        %1459 = vmatprep.mubr.bf16.mxu0 %v1184
        %1460 = vmatmul.mubr.bf16.gmra.mrb[0].mxu0 %v1183
        %v1461 = vpop.f32.mrb[0].mxu0
        %v1462 = vadd.f32 %v1230, %v1461
        %v1463 = vpop.f32.mrb[0].mxu0
        %v1464 = vadd.f32 %v1234, %v1463
        %v1465 = vpop.f32.mrb[0].mxu0
        %v1466 = vadd.f32 %v1230, %v1465
        %v1467 = vpop.f32.mrb[0].mxu0
        %v1468 = vadd.f32 %v1234, %v1467
        %1469 = vmatprep.mubr.bf16.mxu0 %v1186
        %1470 = vmatmul.mubr.bf16.gmra.mrb[0].mxu0 %v1185
        %v1471 = vpop.f32.mrb[0].mxu0
        %v1472 = vadd.f32 %v1230, %v1471
        %v1473 = vpop.f32.mrb[0].mxu0
        %v1474 = vadd.f32 %v1234, %v1473
        %v1475 = vpop.f32.mrb[0].mxu0
        %v1476 = vadd.f32 %v1230, %v1475
        %v1477 = vpop.f32.mrb[0].mxu0
        %v1478 = vadd.f32 %v1234, %v1477
        %1479 = vmatprep.mubr.bf16.mxu0 %v1188
        %1480 = vmatmul.mubr.bf16.gmra.mrb[0].mxu0 %v1187
        %v1481 = vpop.f32.mrb[0].mxu0
        %v1482 = vadd.f32 %v1230, %v1481
        %v1483 = vpop.f32.mrb[0].mxu0
        %v1484 = vadd.f32 %v1234, %v1483
        %v1485 = vpop.f32.mrb[0].mxu0
        %v1486 = vadd.f32 %v1230, %v1485
        %v1487 = vpop.f32.mrb[0].mxu0
        %v1488 = vadd.f32 %v1234, %v1487
        %1489 = vmatprep.mubr.bf16.mxu0 %v1190
        %1490 = vmatmul.mubr.bf16.gmra.mrb[0].mxu0 %v1189
        %v1491 = vpop.f32.mrb[0].mxu0
        %v1492 = vadd.f32 %v1230, %v1491
        %v1493 = vpop.f32.mrb[0].mxu0
        %v1494 = vadd.f32 %v1234, %v1493
        %v1495 = vpop.f32.mrb[0].mxu0
        %v1496 = vadd.f32 %v1230, %v1495
        %v1497 = vpop.f32.mrb[0].mxu0
        %v1498 = vadd.f32 %v1234, %v1497
        %1499 = vmatprep.mubr.bf16.mxu0 %v1192
        %1500 = vmatmul.mubr.bf16.gmra.mrb[0].mxu0 %v1191
        %v1501 = vpop.f32.mrb[0].mxu0
        %v1502 = vadd.f32 %v1230, %v1501
        %v1503 = vpop.f32.mrb[0].mxu0
        %v1504 = vadd.f32 %v1234, %v1503
        %v1505 = vpop.f32.mrb[0].mxu0
        %v1506 = vadd.f32 %v1230, %v1505
        %v1507 = vpop.f32.mrb[0].mxu0
        %v1508 = vadd.f32 %v1234, %v1507
        %1509 = vdwg.mxu0
        %v1510 = vmax.f32 %v1432, 0.0
        %v1511 = vmax.f32 %v1434, 0.0
        %v1512 = vmax.f32 %v1436, 0.0
        %v1513 = vmax.f32 %v1438, 0.0
        %v1514 = vmax.f32 %v1442, 0.0
        %v1515 = vmax.f32 %v1444, 0.0
        %v1516 = vmax.f32 %v1446, 0.0
        %v1517 = vmax.f32 %v1448, 0.0
        %v1518 = vmax.f32 %v1452, 0.0
        %v1519 = vmax.f32 %v1454, 0.0
        %v1520 = vmax.f32 %v1456, 0.0
        %v1521 = vmax.f32 %v1458, 0.0
        %v1522 = vmax.f32 %v1462, 0.0
        %v1523 = vmax.f32 %v1464, 0.0
        %v1524 = vmax.f32 %v1466, 0.0
        %v1525 = vmax.f32 %v1468, 0.0
        %v1526 = vmax.f32 %v1472, 0.0
        %v1527 = vmax.f32 %v1474, 0.0
        %v1528 = vmax.f32 %v1476, 0.0
        %v1529 = vmax.f32 %v1478, 0.0
        %v1530 = vmax.f32 %v1482, 0.0
        %v1531 = vmax.f32 %v1484, 0.0
        %v1532 = vmax.f32 %v1486, 0.0
        %v1533 = vmax.f32 %v1488, 0.0
        %v1534 = vmax.f32 %v1492, 0.0
        %v1535 = vmax.f32 %v1494, 0.0
        %v1536 = vmax.f32 %v1496, 0.0
        %v1537 = vmax.f32 %v1498, 0.0
        %v1538 = vmax.f32 %v1502, 0.0
        %v1539 = vmax.f32 %v1504, 0.0
        %v1540 = vmax.f32 %v1506, 0.0
        %v1541 = vmax.f32 %v1508, 0.0
        %v1542 = vpack.c.bf16 %v1512, %v1510
        %v1543 = vpack.c.bf16 %v1513, %v1511
        %v1544 = vpack.c.bf16 %v1516, %v1514
        %v1545 = vpack.c.bf16 %v1517, %v1515
        %v1546 = vpack.c.bf16 %v1520, %v1518
        %v1547 = vpack.c.bf16 %v1521, %v1519
        %v1548 = vpack.c.bf16 %v1524, %v1522
        %v1549 = vpack.c.bf16 %v1525, %v1523
        %v1550 = vpack.c.bf16 %v1528, %v1526
        %v1551 = vpack.c.bf16 %v1529, %v1527
        %v1552 = vpack.c.bf16 %v1532, %v1530
        %v1553 = vpack.c.bf16 %v1533, %v1531
        %v1554 = vpack.c.bf16 %v1536, %v1534
        %v1555 = vpack.c.bf16 %v1537, %v1535
        %v1556 = vpack.c.bf16 %v1540, %v1538
        %v1557 = vpack.c.bf16 %v1541, %v1539
        %v1558 = vld [vmem:[#allocation9] sm:$0xf]
        %v1559 = vld [vmem:[#allocation9 + $0x4] sm:$0xf]
        %v1560 = vld [vmem:[#allocation9 + $0x8] sm:$0xf]
        %v1561 = vld [vmem:[#allocation9 + $0xc] sm:$0xf]
        %v1562 = vld [vmem:[#allocation9 + $0x10] sm:$0xf]
        %v1563 = vld [vmem:[#allocation9 + $0x14] sm:$0xf]
        %v1564 = vld [vmem:[#allocation9 + $0x18] sm:$0xf]
        %v1565 = vld [vmem:[#allocation9 + $0x1c] sm:$0xf]
        %v1566 = vld [vmem:[#allocation9 + $0x20] sm:$0xf]
        %v1567 = vld [vmem:[#allocation9 + $0x24] sm:$0xf]
        %v1568 = vld [vmem:[#allocation9 + $0x28] sm:$0xf]
        %v1569 = vld [vmem:[#allocation9 + $0x2c] sm:$0xf]
        %v1570 = vld [vmem:[#allocation9 + $0x30] sm:$0xf]
        %v1571 = vld [vmem:[#allocation9 + $0x34] sm:$0xf]
        %v1572 = vld [vmem:[#allocation9 + $0x38] sm:$0xf]
        %v1573 = vld [vmem:[#allocation9 + $0x3c] sm:$0xf]
        %v1574 = vld [vmem:[#allocation9 + $0x40] sm:$0xf]
        %v1575 = vld [vmem:[#allocation9 + $0x44] sm:$0xf]
        %v1576 = vld [vmem:[#allocation9 + $0x48] sm:$0xf]
        %v1577 = vld [vmem:[#allocation9 + $0x4c] sm:$0xf]
        %v1578 = vld [vmem:[#allocation9 + $0x50] sm:$0xf]
        %v1579 = vld [vmem:[#allocation9 + $0x54] sm:$0xf]
        %v1580 = vld [vmem:[#allocation9 + $0x58] sm:$0xf]
        %v1581 = vld [vmem:[#allocation9 + $0x5c] sm:$0xf]
        %v1582 = vld [vmem:[#allocation9 + $0x60] sm:$0xf]
        %v1583 = vld [vmem:[#allocation9 + $0x64] sm:$0xf]
        %v1584 = vld [vmem:[#allocation9 + $0x68] sm:$0xf]
        %v1585 = vld [vmem:[#allocation9 + $0x6c] sm:$0xf]
        %v1586 = vld [vmem:[#allocation9 + $0x70] sm:$0xf]
        %v1587 = vld [vmem:[#allocation9 + $0x74] sm:$0xf]
        %v1588 = vld [vmem:[#allocation9 + $0x78] sm:$0xf]
        %v1589 = vld [vmem:[#allocation9 + $0x7c] sm:$0xf]
        %v1590 = vld [vmem:[%s8] sm:$0x1]
        %v1592 = vlaneseq
        %v1593 = vshrl.u32 %v1592, 7
        %v1594 = vsub.s32 0, %v1593
        %v1595 = vrot.slane %v1590, %v1594
        %v1629 = vunpack.c.l.b16 %v1558
        %v1630 = vunpack.c.l.b16 %v1559
        %v1631 = vunpack.c.l.b16 %v1560
        %v1632 = vunpack.c.l.b16 %v1561
        %v1633 = vunpack.c.l.b16 %v1562
        %v1634 = vunpack.c.l.b16 %v1563
        %v1635 = vunpack.c.l.b16 %v1564
        %v1636 = vunpack.c.l.b16 %v1565
        %v1637 = vunpack.c.l.b16 %v1566
        %v1638 = vunpack.c.l.b16 %v1567
        %v1639 = vunpack.c.l.b16 %v1568
        %v1640 = vunpack.c.l.b16 %v1569
        %v1641 = vunpack.c.l.b16 %v1570
        %v1642 = vunpack.c.l.b16 %v1571
        %v1643 = vunpack.c.l.b16 %v1572
        %v1644 = vunpack.c.l.b16 %v1573
        %v1645 = vunpack.c.l.b16 %v1574
        %v1646 = vunpack.c.l.b16 %v1575
        %v1647 = vunpack.c.l.b16 %v1576
        %v1648 = vunpack.c.l.b16 %v1577
        %v1649 = vunpack.c.l.b16 %v1578
        %v1650 = vunpack.c.l.b16 %v1579
        %v1651 = vunpack.c.l.b16 %v1580
        %v1652 = vunpack.c.l.b16 %v1581
        %v1653 = vunpack.c.l.b16 %v1582
        %v1654 = vunpack.c.l.b16 %v1583
        %v1655 = vunpack.c.l.b16 %v1584
        %v1656 = vunpack.c.l.b16 %v1585
        %v1657 = vunpack.c.l.b16 %v1586
        %v1658 = vunpack.c.l.b16 %v1587
        %v1659 = vunpack.c.l.b16 %v1588
        %v1660 = vunpack.c.l.b16 %v1589
        %v1661 = vpack.c.b16 %v1630, %v1629
        %v1662 = vpack.c.b16 %v1632, %v1631
        %v1663 = vpack.c.b16 %v1634, %v1633
        %v1664 = vpack.c.b16 %v1636, %v1635
        %v1665 = vpack.c.b16 %v1638, %v1637
        %v1666 = vpack.c.b16 %v1640, %v1639
        %v1667 = vpack.c.b16 %v1642, %v1641
        %v1668 = vpack.c.b16 %v1644, %v1643
        %v1669 = vpack.c.b16 %v1646, %v1645
        %v1670 = vpack.c.b16 %v1648, %v1647
        %v1671 = vpack.c.b16 %v1650, %v1649
        %v1672 = vpack.c.b16 %v1652, %v1651
        %v1673 = vpack.c.b16 %v1654, %v1653
        %v1674 = vpack.c.b16 %v1656, %v1655
        %v1675 = vpack.c.b16 %v1658, %v1657
        %v1676 = vpack.c.b16 %v1660, %v1659
        %1693 = vmatprep.subr.bf16.mxu0 0
        %1694 = vmatpush1.bf16.msra.mxu0 %v1661
        %1695 = vmatprep.subr.bf16.mxu0 0
        %1696 = vmatpush1.bf16.msra.mxu0 %v1662
        %1697 = vmatprep.subr.bf16.mxu0 0
        %1698 = vmatpush1.bf16.msra.mxu0 %v1663
        %1699 = vmatprep.subr.bf16.mxu0 0
        %1700 = vmatpush1.bf16.msra.mxu0 %v1664
        %1701 = vmatprep.subr.bf16.mxu0 0
        %1702 = vmatpush1.bf16.msra.mxu0 %v1665
        %1703 = vmatprep.subr.bf16.mxu0 0
        %1704 = vmatpush1.bf16.msra.mxu0 %v1666
        %1705 = vmatprep.subr.bf16.mxu0 0
        %1706 = vmatpush1.bf16.msra.mxu0 %v1667
        %1707 = vmatprep.subr.bf16.mxu0 0
        %1708 = vmatpush1.bf16.msra.mxu0 %v1668
        %1709 = vmatprep.subr.bf16.mxu0 0
        %1710 = vmatpush1.bf16.msra.mxu0 %v1669
        %1711 = vmatprep.subr.bf16.mxu0 0
        %1712 = vmatpush1.bf16.msra.mxu0 %v1670
        %1713 = vmatprep.subr.bf16.mxu0 0
        %1714 = vmatpush1.bf16.msra.mxu0 %v1671
        %1715 = vmatprep.subr.bf16.mxu0 0
        %1716 = vmatpush1.bf16.msra.mxu0 %v1672
        %1717 = vmatprep.subr.bf16.mxu0 0
        %1718 = vmatpush1.bf16.msra.mxu0 %v1673
        %1719 = vmatprep.subr.bf16.mxu0 0
        %1720 = vmatpush1.bf16.msra.mxu0 %v1674
        %1721 = vmatprep.subr.bf16.mxu0 0
        %1722 = vmatpush1.bf16.msra.mxu0 %v1675
        %1723 = vmatprep.subr.bf16.mxu0 0
        %1724 = vmatpush1.bf16.msra.mxu0 %v1676
        %1725 = vmatprep.mubr.bf16.mxu0 %v1543
        %1726 = vmatmul.mubr.bf16.gmra.mrb[0].mxu0 %v1542
        %v1727 = vpop.f32.mrb[0].mxu0
        %v1728 = vadd.f32 %v1595, %v1727
        %v1729 = vpop.f32.mrb[0].mxu0
        %v1730 = vpop.f32.mrb[0].mxu0
        %v1731 = vadd.f32 %v1595, %v1730
        %v1732 = vpop.f32.mrb[0].mxu0
        %1733 = vmatprep.mubr.bf16.mxu0 %v1545
        %1734 = vmatmul.mubr.bf16.gmra.mrb[0].mxu0 %v1544
        %v1735 = vpop.f32.mrb[0].mxu0
        %v1736 = vadd.f32 %v1595, %v1735
        %v1737 = vpop.f32.mrb[0].mxu0
        %v1738 = vpop.f32.mrb[0].mxu0
        %v1739 = vadd.f32 %v1595, %v1738
        %v1740 = vpop.f32.mrb[0].mxu0
        %1741 = vmatprep.mubr.bf16.mxu0 %v1547
        %1742 = vmatmul.mubr.bf16.gmra.mrb[0].mxu0 %v1546
        %v1743 = vpop.f32.mrb[0].mxu0
        %v1744 = vadd.f32 %v1595, %v1743
        %v1745 = vpop.f32.mrb[0].mxu0
        %v1746 = vpop.f32.mrb[0].mxu0
        %v1747 = vadd.f32 %v1595, %v1746
        %v1748 = vpop.f32.mrb[0].mxu0
        %1749 = vmatprep.mubr.bf16.mxu0 %v1549
        %1750 = vmatmul.mubr.bf16.gmra.mrb[0].mxu0 %v1548
        %v1751 = vpop.f32.mrb[0].mxu0
        %v1752 = vadd.f32 %v1595, %v1751
        %v1753 = vpop.f32.mrb[0].mxu0
        %v1754 = vpop.f32.mrb[0].mxu0
        %v1755 = vadd.f32 %v1595, %v1754
        %v1756 = vpop.f32.mrb[0].mxu0
        %1757 = vmatprep.mubr.bf16.mxu0 %v1551
        %1758 = vmatmul.mubr.bf16.gmra.mrb[0].mxu0 %v1550
        %v1759 = vpop.f32.mrb[0].mxu0
        %v1760 = vadd.f32 %v1595, %v1759
        %v1761 = vpop.f32.mrb[0].mxu0
        %v1762 = vpop.f32.mrb[0].mxu0
        %v1763 = vadd.f32 %v1595, %v1762
        %v1764 = vpop.f32.mrb[0].mxu0
        %1765 = vmatprep.mubr.bf16.mxu0 %v1553
        %1766 = vmatmul.mubr.bf16.gmra.mrb[0].mxu0 %v1552
        %v1767 = vpop.f32.mrb[0].mxu0
        %v1768 = vadd.f32 %v1595, %v1767
        %v1769 = vpop.f32.mrb[0].mxu0
        %v1770 = vpop.f32.mrb[0].mxu0
        %v1771 = vadd.f32 %v1595, %v1770
        %v1772 = vpop.f32.mrb[0].mxu0
        %1773 = vmatprep.mubr.bf16.mxu0 %v1555
        %1774 = vmatmul.mubr.bf16.gmra.mrb[0].mxu0 %v1554
        %v1775 = vpop.f32.mrb[0].mxu0
        %v1776 = vadd.f32 %v1595, %v1775
        %v1777 = vpop.f32.mrb[0].mxu0
        %v1778 = vpop.f32.mrb[0].mxu0
        %v1779 = vadd.f32 %v1595, %v1778
        %v1780 = vpop.f32.mrb[0].mxu0
        %1781 = vmatprep.mubr.bf16.mxu0 %v1557
        %1782 = vmatmul.mubr.bf16.gmra.mrb[0].mxu0 %v1556
        %v1783 = vpop.f32.mrb[0].mxu0
        %v1784 = vadd.f32 %v1595, %v1783
        %v1785 = vpop.f32.mrb[0].mxu0
        %v1786 = vpop.f32.mrb[0].mxu0
        %v1787 = vadd.f32 %v1595, %v1786
        %v1788 = vpop.f32.mrb[0].mxu0
        %1789 = vdwg.mxu0
        %v1790 = vlaneseq
        %v1791 = vand.u32 %v1790, 127
        %vm1792 = vcmp.lt.s32.totalorder %v1791, 10
        %v1793 = vsel %vm1792, %v1728, -1e+30
        %v1794 = vsel %vm1792, %v1731, -1e+30
        %v1795 = vsel %vm1792, %v1736, -1e+30
        %v1796 = vsel %vm1792, %v1739, -1e+30
        %v1797 = vsel %vm1792, %v1744, -1e+30
        %v1798 = vsel %vm1792, %v1747, -1e+30
        %v1799 = vsel %vm1792, %v1752, -1e+30
        %v1800 = vsel %vm1792, %v1755, -1e+30
        %v1801 = vsel %vm1792, %v1760, -1e+30
        %v1802 = vsel %vm1792, %v1763, -1e+30
        %v1803 = vsel %vm1792, %v1768, -1e+30
        %v1804 = vsel %vm1792, %v1771, -1e+30
        %v1805 = vsel %vm1792, %v1776, -1e+30
        %v1806 = vsel %vm1792, %v1779, -1e+30
        %v1807 = vsel %vm1792, %v1784, -1e+30
        %v1808 = vsel %vm1792, %v1787, -1e+30
        %1809 = vmax.xlane.f32.xlu0 %v1793
        %v1810 = vpop.xlane.xlu0 %1809
        %1811 = vmax.xlane.f32.xlu0 %v1794
        %v1812 = vpop.xlane.xlu0 %1811
        %1813 = vmax.xlane.f32.xlu0 %v1795
        %v1814 = vpop.xlane.xlu0 %1813
        %1815 = vmax.xlane.f32.xlu0 %v1796
        %v1816 = vpop.xlane.xlu0 %1815
        %1817 = vmax.xlane.f32.xlu0 %v1797
        %v1818 = vpop.xlane.xlu0 %1817
        %1819 = vmax.xlane.f32.xlu0 %v1798
        %v1820 = vpop.xlane.xlu0 %1819
        %1821 = vmax.xlane.f32.xlu0 %v1799
        %v1822 = vpop.xlane.xlu0 %1821
        %1823 = vmax.xlane.f32.xlu0 %v1800
        %v1824 = vpop.xlane.xlu0 %1823
        %1825 = vmax.xlane.f32.xlu0 %v1801
        %v1826 = vpop.xlane.xlu0 %1825
        %1827 = vmax.xlane.f32.xlu0 %v1802
        %v1828 = vpop.xlane.xlu0 %1827
        %1829 = vmax.xlane.f32.xlu0 %v1803
        %v1830 = vpop.xlane.xlu0 %1829
        %1831 = vmax.xlane.f32.xlu0 %v1804
        %v1832 = vpop.xlane.xlu0 %1831
        %1833 = vmax.xlane.f32.xlu0 %v1805
        %v1834 = vpop.xlane.xlu0 %1833
        %1835 = vmax.xlane.f32.xlu0 %v1806
        %v1836 = vpop.xlane.xlu0 %1835
        %1837 = vmax.xlane.f32.xlu0 %v1807
        %v1838 = vpop.xlane.xlu0 %1837
        %1839 = vmax.xlane.f32.xlu0 %v1808
        %v1840 = vpop.xlane.xlu0 %1839
        %v1841 = vsub.f32 %v1793, %v1810
        %v1842 = vsub.f32 %v1794, %v1812
        %v1843 = vsub.f32 %v1795, %v1814
        %v1844 = vsub.f32 %v1796, %v1816
        %v1845 = vsub.f32 %v1797, %v1818
        %v1846 = vsub.f32 %v1798, %v1820
        %v1847 = vsub.f32 %v1799, %v1822
        %v1848 = vsub.f32 %v1800, %v1824
        %v1849 = vsub.f32 %v1801, %v1826
        %v1850 = vsub.f32 %v1802, %v1828
        %v1851 = vsub.f32 %v1803, %v1830
        %v1852 = vsub.f32 %v1804, %v1832
        %v1853 = vsub.f32 %v1805, %v1834
        %v1854 = vsub.f32 %v1806, %v1836
        %v1855 = vsub.f32 %v1807, %v1838
        %v1856 = vsub.f32 %v1808, %v1840
        %v1857 = vmul.f32 %v1841, 1.442695
        %v1858 = vpow.pop %v1857
        %v1859 = vmul.f32 %v1842, 1.442695
        %v1860 = vpow.pop %v1859
        %v1861 = vmul.f32 %v1843, 1.442695
        %v1862 = vpow.pop %v1861
        %v1863 = vmul.f32 %v1844, 1.442695
        %v1864 = vpow.pop %v1863
        %v1865 = vmul.f32 %v1845, 1.442695
        %v1866 = vpow.pop %v1865
        %v1867 = vmul.f32 %v1846, 1.442695
        %v1868 = vpow.pop %v1867
        %v1869 = vmul.f32 %v1847, 1.442695
        %v1870 = vpow.pop %v1869
        %v1871 = vmul.f32 %v1848, 1.442695
        %v1872 = vpow.pop %v1871
        %v1873 = vmul.f32 %v1849, 1.442695
        %v1874 = vpow.pop %v1873
        %v1875 = vmul.f32 %v1850, 1.442695
        %v1876 = vpow.pop %v1875
        %v1877 = vmul.f32 %v1851, 1.442695
        %v1878 = vpow.pop %v1877
        %v1879 = vmul.f32 %v1852, 1.442695
        %v1880 = vpow.pop %v1879
        %v1881 = vmul.f32 %v1853, 1.442695
        %v1882 = vpow.pop %v1881
        %v1883 = vmul.f32 %v1854, 1.442695
        %v1884 = vpow.pop %v1883
        %v1885 = vmul.f32 %v1855, 1.442695
        %v1886 = vpow.pop %v1885
        %v1887 = vmul.f32 %v1856, 1.442695
        %v1888 = vpow.pop %v1887
        %v1889 = vsel %vm1792, %v1858, 0.0
        %v1890 = vsel %vm1792, %v1860, 0.0
        %v1891 = vsel %vm1792, %v1862, 0.0
        %v1892 = vsel %vm1792, %v1864, 0.0
        %v1893 = vsel %vm1792, %v1866, 0.0
        %v1894 = vsel %vm1792, %v1868, 0.0
        %v1895 = vsel %vm1792, %v1870, 0.0
        %v1896 = vsel %vm1792, %v1872, 0.0
        %v1897 = vsel %vm1792, %v1874, 0.0
        %v1898 = vsel %vm1792, %v1876, 0.0
        %v1899 = vsel %vm1792, %v1878, 0.0
        %v1900 = vsel %vm1792, %v1880, 0.0
        %v1901 = vsel %vm1792, %v1882, 0.0
        %v1902 = vsel %vm1792, %v1884, 0.0
        %v1903 = vsel %vm1792, %v1886, 0.0
        %v1904 = vsel %vm1792, %v1888, 0.0
        %1905 = vadd.xlane.f32.xlu0 %v1889
        %v1906 = vpop.xlane.xlu0 %1905
        %1907 = vadd.xlane.f32.xlu0 %v1890
        %v1908 = vpop.xlane.xlu0 %1907
        %1909 = vadd.xlane.f32.xlu0 %v1891
        %v1910 = vpop.xlane.xlu0 %1909
        %1911 = vadd.xlane.f32.xlu0 %v1892
        %v1912 = vpop.xlane.xlu0 %1911
        %1913 = vadd.xlane.f32.xlu0 %v1893
        %v1914 = vpop.xlane.xlu0 %1913
        %1915 = vadd.xlane.f32.xlu0 %v1894
        %v1916 = vpop.xlane.xlu0 %1915
        %1917 = vadd.xlane.f32.xlu0 %v1895
        %v1918 = vpop.xlane.xlu0 %1917
        %1919 = vadd.xlane.f32.xlu0 %v1896
        %v1920 = vpop.xlane.xlu0 %1919
        %1921 = vadd.xlane.f32.xlu0 %v1897
        %v1922 = vpop.xlane.xlu0 %1921
        %1923 = vadd.xlane.f32.xlu0 %v1898
        %v1924 = vpop.xlane.xlu0 %1923
        %1925 = vadd.xlane.f32.xlu0 %v1899
        %v1926 = vpop.xlane.xlu0 %1925
        %1927 = vadd.xlane.f32.xlu0 %v1900
        %v1928 = vpop.xlane.xlu0 %1927
        %1929 = vadd.xlane.f32.xlu0 %v1901
        %v1930 = vpop.xlane.xlu0 %1929
        %1931 = vadd.xlane.f32.xlu0 %v1902
        %v1932 = vpop.xlane.xlu0 %1931
        %1933 = vadd.xlane.f32.xlu0 %v1903
        %v1934 = vpop.xlane.xlu0 %1933
        %1935 = vadd.xlane.f32.xlu0 %v1904
        %v1936 = vpop.xlane.xlu0 %1935
        %v1937 = vrcp.pop %v1906
        %v1938 = vmul.f32 %v1889, %v1937
        %v1939 = vrcp.pop %v1908
        %v1940 = vmul.f32 %v1890, %v1939
        %v1941 = vrcp.pop %v1910
        %v1942 = vmul.f32 %v1891, %v1941
        %v1943 = vrcp.pop %v1912
        %v1944 = vmul.f32 %v1892, %v1943
        %v1945 = vrcp.pop %v1914
        %v1946 = vmul.f32 %v1893, %v1945
        %v1947 = vrcp.pop %v1916
        %v1948 = vmul.f32 %v1894, %v1947
        %v1949 = vrcp.pop %v1918
        %v1950 = vmul.f32 %v1895, %v1949
        %v1951 = vrcp.pop %v1920
        %v1952 = vmul.f32 %v1896, %v1951
        %v1953 = vrcp.pop %v1922
        %v1954 = vmul.f32 %v1897, %v1953
        %v1955 = vrcp.pop %v1924
        %v1956 = vmul.f32 %v1898, %v1955
        %v1957 = vrcp.pop %v1926
        %v1958 = vmul.f32 %v1899, %v1957
        %v1959 = vrcp.pop %v1928
        %v1960 = vmul.f32 %v1900, %v1959
        %v1961 = vrcp.pop %v1930
        %v1962 = vmul.f32 %v1901, %v1961
        %v1963 = vrcp.pop %v1932
        %v1964 = vmul.f32 %v1902, %v1963
        %v1965 = vrcp.pop %v1934
        %v1966 = vmul.f32 %v1903, %v1965
        %v1967 = vrcp.pop %v1936
        %v1968 = vmul.f32 %v1904, %v1967
        %1969 = vst [vmem:[%s412] sm:$0xff] %v1938
        %1970 = vst [vmem:[%s412 + $0x8] sm:$0xff] %v1940
        %1971 = vst [vmem:[%s412 + $0x10] sm:$0xff] %v1942
        %1972 = vst [vmem:[%s412 + $0x18] sm:$0xff] %v1944
        %1973 = vst [vmem:[%s412 + $0x20] sm:$0xff] %v1946
        %1974 = vst [vmem:[%s412 + $0x28] sm:$0xff] %v1948
        %1975 = vst [vmem:[%s412 + $0x30] sm:$0xff] %v1950
        %1976 = vst [vmem:[%s412 + $0x38] sm:$0xff] %v1952
        %1977 = vst [vmem:[%s412 + $0x40] sm:$0xff] %v1954
        %1978 = vst [vmem:[%s412 + $0x48] sm:$0xff] %v1956
        %1979 = vst [vmem:[%s412 + $0x50] sm:$0xff] %v1958
        %1980 = vst [vmem:[%s412 + $0x58] sm:$0xff] %v1960
        %1981 = vst [vmem:[%s412 + $0x60] sm:$0xff] %v1962
        %1982 = vst [vmem:[%s412 + $0x68] sm:$0xff] %v1964
        %1983 = vst [vmem:[%s412 + $0x70] sm:$0xff] %v1966
        %1984 = vst [vmem:[%s412 + $0x78] sm:$0xff] %v1968
        %s1985 = smul.u32 16, %s25
        %p1986 = scmp.lt.s32.totalorder %s1985, 31
        %s1987 = scalar_select %p1986, %s1985, 31
        %s1988 = smul.addr %s1987, 8
        %s1989 = scalar_lea.vmem %s9, %s1988
        // Predicated region
        $region77: #{number_classifier_forward.1} parent=55 // pred_check
          %p1990 = pneg %p237
        $region78: #{number_classifier_forward.1} parent=55 // pred_check_branch
          %1992 = sbr.rel (%p1990) target = $region80
        $region79: #{number_classifier_forward.1} parent=55 // pred_region
          %s1993 = smul.u32 16, %s25
        $region80: #{number_classifier_forward.1} parent=55 // pred_fallthru
          _
      $region56: #{number_classifier_forward.1} parent=5 // pred_fallthru
        _
      %p1994 = scmp.le.s32.totalorder 2, %s20
      // Predicated region
      $region81: #{number_classifier_forward.1} parent=5 // pred_check
        %p1995 = pneg %p1994
      $region82: #{number_classifier_forward.1} parent=5 // pred_check_branch
        %1997 = sbr.rel (%p1995) target = $region84
      $region83: #{number_classifier_forward.1} parent=5 // pred_region
        %s1998 = ssub.s32 %s20, 2
        // Predicated region
        $region85: #{number_classifier_forward.1} parent=83 // pred_check
          %p1999 = pneg %p243
        $region86: #{number_classifier_forward.1} parent=83 // pred_check_branch
          %2001 = sbr.rel (%p1999) target = $region88
        $region87: #{number_classifier_forward.1} parent=83 // pred_region
          %s2002 = smul.u32 16, %s26
          %p2003 = scmp.lt.s32.totalorder %s2002, 31
          %s2004 = scalar_select %p2003, %s2002, 31
          %s2005 = smul.addr %s2004, 8
          %s2006 = scalar_lea.vmem %s9, %s2005
        $region88: #{number_classifier_forward.1} parent=83 // pred_fallthru
          _
      $region84: #{number_classifier_forward.1} parent=5 // pred_fallthru
        _
    $region6: #{number_classifier_forward.1} parent=1 // loop_footer
      %s24 = sadd.s32 1, %s20
    $region7: #{number_classifier_forward.1} parent=1 // loop_footer_branch
      %19 = sbr.rel target = $region3
    $region8: #{number_classifier_forward.1} parent=1 // loop_exit
      _
    %2007 = vsyncpa [#allocation3], 1
    %s2008 = scalar_lea.sflag [#allocation3], 1
    %2009 = vsyncpa %s2008, 1
    %2010 = vsyncpa [#allocation5], 1
    %2011 = vsyncpa [#allocation8], 1

</llo_original>
